<compile_context>
chip_gen: v5e
topology: v5e:2x2
jax: 0.10.0
libtpu: 0.0.40
codegen_flags: <defaults>
</compile_context>

<pallas_src>
import functools

import jax
import jax.numpy as jnp
from jax.experimental import pallas as pl
from jax.experimental.pallas import tpu as pltpu


def _round_up(x, m):
    return (x + m - 1) // m * m


def _decoder_kernel(z_ref, w1_ref, b1_ref, w2_ref, b2_ref, out_ref):
    """Fused 2-layer MLP: sigmoid(relu(z @ W1 + b1) @ W2 + b2).

    Weights arrive as bf16 (MXU-native); biases and accumulation stay f32.
    """
    z = z_ref[...].astype(jnp.bfloat16)                              # [TB, Z]
    # First linear + ReLU (MXU matmul, f32 accumulation).
    h = jnp.dot(z, w1_ref[...], preferred_element_type=jnp.float32)  # [TB, Hp]
    h = jnp.maximum(h + b1_ref[...], 0.0)                            # ReLU (VPU)
    # Second linear + sigmoid.
    o = jnp.dot(h.astype(jnp.bfloat16), w2_ref[...],
                preferred_element_type=jnp.float32)                  # [TB, Op]
    out_ref[...] = jax.nn.sigmoid(o + b2_ref[...])                   # EUP + VPU


@functools.partial(jax.jit, static_argnames=("batch_tile",))
def decoder_forward(z, w1, b1, w2, b2, *, batch_tile=None):
    """Fused decoder MLP as a single Pallas kernel, tiled over the batch.

    z : [B, z_dim] f32
    w1: [z_dim, hidden_dim], b1: [hidden_dim]
    w2: [hidden_dim, 784],   b2: [784]
    Returns [B, 784] f32 (sigmoid mean), identical semantics to the nn.Module
    up to bf16 matmul inputs.
    """
    B, Z = z.shape
    H = w1.shape[1]
    O = w2.shape[1]

    # Lane-dense feature padding: 500 -> 512, 784 -> 896.
    H_pad = _round_up(H, 128)
    O_pad = _round_up(O, 128)

    # Batch tile: big enough to fill the MXU; >=2 grid steps when the batch
    # allows so v7x can shard the 'parallel' axis across both TensorCores.
    if batch_tile is None:
        if B >= 512:
            batch_tile = 256
        elif B >= 16:
            batch_tile = _round_up((B + 1) // 2, 8)
        else:
            batch_tile = _round_up(B, 8)
    B_pad = _round_up(B, batch_tile)

    # Zero padding contributes exact zeros to every dot product; the padded
    # output columns are sliced off below.
    z_p = jnp.pad(z.astype(jnp.float32), ((0, B_pad - B), (0, 0)))
    w1_p = jnp.pad(w1, ((0, 0), (0, H_pad - H))).astype(jnp.bfloat16)
    b1_p = jnp.pad(b1.reshape(1, H), ((0, 0), (0, H_pad - H))).astype(jnp.float32)
    w2_p = jnp.pad(w2, ((0, H_pad - H), (0, O_pad - O))).astype(jnp.bfloat16)
    b2_p = jnp.pad(b2.reshape(1, O), ((0, 0), (0, O_pad - O))).astype(jnp.float32)

    grid = (B_pad // batch_tile,)

    out = pl.pallas_call(
        _decoder_kernel,
        out_shape=jax.ShapeDtypeStruct((B_pad, O_pad), jnp.float32),
        grid_spec=pltpu.PrefetchScalarGridSpec(
            num_scalar_prefetch=0,
            grid=grid,
            in_specs=[
                # Activations: one batch tile per grid step.
                pl.BlockSpec((batch_tile, Z), lambda i: (i, 0)),
                # Weights / biases: whole tensors, resident across grid steps.
                pl.BlockSpec((Z, H_pad), lambda i: (0, 0)),
                pl.BlockSpec((1, H_pad), lambda i: (0, 0)),
                pl.BlockSpec((H_pad, O_pad), lambda i: (0, 0)),
                pl.BlockSpec((1, O_pad), lambda i: (0, 0)),
            ],
            out_specs=pl.BlockSpec((batch_tile, O_pad), lambda i: (i, 0)),
        ),
        compiler_params=pltpu.CompilerParams(
            dimension_semantics=("parallel",),
        ),
    )(z_p, w1_p, b1_p, w2_p, b2_p)

    return out[:B, :O]


def init_decoder_params(key, z_dim=20, hidden_dim=500, out_dim=784):
    """Deterministic init mimicking nn.Linear's U(-1/sqrt(fan_in), 1/sqrt(fan_in))."""
    k1, k2, k3, k4 = jax.random.split(key, 4)
    lim1 = 1.0 / float(z_dim) ** 0.5
    lim2 = 1.0 / float(hidden_dim) ** 0.5
    w1 = jax.random.uniform(k1, (z_dim, hidden_dim), jnp.float32, -lim1, lim1)
    b1 = jax.random.uniform(k2, (hidden_dim,), jnp.float32, -lim1, lim1)
    w2 = jax.random.uniform(k3, (hidden_dim, out_dim), jnp.float32, -lim2, lim2)
    b2 = jax.random.uniform(k4, (out_dim,), jnp.float32, -lim2, lim2)
    return w1, b1, w2, b2


if __name__ == "__main__":
    key = jax.random.PRNGKey(0)
    k_params, k_a, k_b = jax.random.split(key, 3)

    Z_DIM, HIDDEN_DIM, OUT_DIM = 20, 500, 784
    w1, b1, w2, b2 = init_decoder_params(k_params, Z_DIM, HIDDEN_DIM, OUT_DIM)

    def ref_fwd(z):
        # Pure-JAX f32 reference of the same forward pass.
        return jax.nn.sigmoid(jnp.maximum(z @ w1 + b1, 0.0) @ w2 + b2)

    # Batch large enough to exercise two parallel grid steps (128-row tiles).
    z_a = jax.random.normal(k_a, (256, Z_DIM), jnp.float32)
    out_a = decoder_forward(z_a, w1, b1, w2, b2)
    jax.block_until_ready(out_a)
    assert out_a.shape == (256, OUT_DIM)
    assert jnp.allclose(out_a, ref_fwd(z_a), atol=1e-2), float(
        jnp.max(jnp.abs(out_a - ref_fwd(z_a))))

    # Odd, tiny batch exercises the batch-padding path (pads 5 -> 8 rows).
    z_b = jax.random.normal(k_b, (5, Z_DIM), jnp.float32)
    out_b = decoder_forward(z_b, w1, b1, w2, b2)
    jax.block_until_ready(out_b)
    assert out_b.shape == (5, OUT_DIM)
    assert jnp.allclose(out_b, ref_fwd(z_b), atol=1e-2), float(
        jnp.max(jnp.abs(out_b - ref_fwd(z_b))))

    print("KERNEL_OK")
</pallas_src>

<mosaic_0001>
module attributes {stable_mosaic.version = 11 : i64} {
  func.func @_decoder_kernel(%arg0: i32, %arg1: memref<128x20xf32, #tpu.memory_space<vmem>>, %arg2: memref<20x512xbf16, #tpu.memory_space<vmem>>, %arg3: memref<1x512xf32, #tpu.memory_space<vmem>>, %arg4: memref<512x896xbf16, #tpu.memory_space<vmem>>, %arg5: memref<1x896xf32, #tpu.memory_space<vmem>>, %arg6: memref<128x896xf32, #tpu.memory_space<vmem>>) attributes {dimension_semantics = [#tpu.dimension_semantics<parallel>], iteration_bounds = array<i64: 2>, scalar_prefetch = 0 : i64, scratch_operands = 0 : i64, tpu.core_type = #tpu.core_type<tc>, window_params = [{transform_indices = @transform_0, window_bounds = array<i64: 128, 20>}, {pipeline_mode = #tpu.pipeline_mode<synchronous>, transform_indices = @transform_1, window_bounds = array<i64: 20, 512>}, {pipeline_mode = #tpu.pipeline_mode<synchronous>, transform_indices = @transform_2, window_bounds = array<i64: 1, 512>}, {pipeline_mode = #tpu.pipeline_mode<synchronous>, transform_indices = @transform_3, window_bounds = array<i64: 512, 896>}, {pipeline_mode = #tpu.pipeline_mode<synchronous>, transform_indices = @transform_4, window_bounds = array<i64: 1, 896>}, {transform_indices = @transform_5, window_bounds = array<i64: 128, 896>}]} {
    %c0 = arith.constant 0 : index
    %c0_0 = arith.constant 0 : index
    %0 = vector.load %arg1[%c0, %c0_0] : memref<128x20xf32, #tpu.memory_space<vmem>>, vector<128x20xf32>
    %1 = arith.truncf %0 : vector<128x20xf32> to vector<128x20xbf16>
    %c0_1 = arith.constant 0 : index
    %c0_2 = arith.constant 0 : index
    %2 = vector.load %arg2[%c0_1, %c0_2] : memref<20x512xbf16, #tpu.memory_space<vmem>>, vector<20x512xbf16>
    %cst = arith.constant dense<0.000000e+00> : vector<128x512xf32>
    %3 = tpu.matmul %1, %2, %cst {dimension_numbers = #tpu.dot_dimension_numbers<[1], [0], [0], [1], [0, 0, 1, 1], [], []>} : vector<128x20xbf16>, vector<20x512xbf16>, vector<128x512xf32> -> vector<128x512xf32>
    %c0_3 = arith.constant 0 : index
    %c0_4 = arith.constant 0 : index
    %4 = vector.load %arg3[%c0_3, %c0_4] : memref<1x512xf32, #tpu.memory_space<vmem>>, vector<1x512xf32>
    %5 = vector.broadcast %4 : vector<1x512xf32> to vector<128x512xf32>
    %6 = arith.addf %3, %5 : vector<128x512xf32>
    %cst_5 = arith.constant 0.000000e+00 : f32
    %7 = vector.broadcast %cst_5 : f32 to vector<128x512xf32>
    %8 = arith.maximumf %6, %7 : vector<128x512xf32>
    %9 = arith.truncf %8 : vector<128x512xf32> to vector<128x512xbf16>
    %c0_6 = arith.constant 0 : index
    %c0_7 = arith.constant 0 : index
    %10 = vector.load %arg4[%c0_6, %c0_7] : memref<512x896xbf16, #tpu.memory_space<vmem>>, vector<512x896xbf16>
    %cst_8 = arith.constant dense<0.000000e+00> : vector<128x896xf32>
    %11 = tpu.matmul %9, %10, %cst_8 {dimension_numbers = #tpu.dot_dimension_numbers<[1], [0], [0], [1], [0, 0, 1, 1], [], []>} : vector<128x512xbf16>, vector<512x896xbf16>, vector<128x896xf32> -> vector<128x896xf32>
    %c0_9 = arith.constant 0 : index
    %c0_10 = arith.constant 0 : index
    %12 = vector.load %arg5[%c0_9, %c0_10] : memref<1x896xf32, #tpu.memory_space<vmem>>, vector<1x896xf32>
    %13 = vector.broadcast %12 : vector<1x896xf32> to vector<128x896xf32>
    %14 = arith.addf %11, %13 : vector<128x896xf32>
    %15 = arith.negf %14 : vector<128x896xf32>
    %16 = math.exp %15 : vector<128x896xf32>
    %cst_11 = arith.constant 1.000000e+00 : f32
    %17 = vector.broadcast %cst_11 : f32 to vector<128x896xf32>
    %18 = arith.addf %17, %16 : vector<128x896xf32>
    %19 = arith.divf %17, %18 : vector<128x896xf32>
    %c0_12 = arith.constant 0 : index
    %c0_13 = arith.constant 0 : index
    %20 = vector.load %arg6[%c0_12, %c0_13] : memref<128x896xf32, #tpu.memory_space<vmem>>, vector<128x896xf32>
    tpu.vector_store %arg6[%c0_12, %c0_13], %19 {strides = array<i32>} : memref<128x896xf32, #tpu.memory_space<vmem>>, vector<128x896xf32>,
    return
  }
  func.func @transform_0(%arg0: i32) -> (i32, i32) {
    %c0_i32 = arith.constant 0 : i32
    %c0_i32_0 = arith.constant 0 : i32
    return %arg0, %c0_i32 : i32, i32
  }
  func.func @transform_1(%arg0: i32) -> (i32, i32) {
    %c0_i32 = arith.constant 0 : i32
    %c0_i32_0 = arith.constant 0 : i32
    %c0_i32_1 = arith.constant 0 : i32
    return %c0_i32, %c0_i32_0 : i32, i32
  }
  func.func @transform_2(%arg0: i32) -> (i32, i32) {
    %c0_i32 = arith.constant 0 : i32
    %c0_i32_0 = arith.constant 0 : i32
    %c0_i32_1 = arith.constant 0 : i32
    return %c0_i32, %c0_i32_0 : i32, i32
  }
  func.func @transform_3(%arg0: i32) -> (i32, i32) {
    %c0_i32 = arith.constant 0 : i32
    %c0_i32_0 = arith.constant 0 : i32
    %c0_i32_1 = arith.constant 0 : i32
    return %c0_i32, %c0_i32_0 : i32, i32
  }
  func.func @transform_4(%arg0: i32) -> (i32, i32) {
    %c0_i32 = arith.constant 0 : i32
    %c0_i32_0 = arith.constant 0 : i32
    %c0_i32_1 = arith.constant 0 : i32
    return %c0_i32, %c0_i32_0 : i32, i32
  }
  func.func @transform_5(%arg0: i32) -> (i32, i32) {
    %c0_i32 = arith.constant 0 : i32
    %c0_i32_0 = arith.constant 0 : i32
    return %arg0, %c0_i32 : i32, i32
  }
}

</mosaic_0001>

<llo_original>
// kernel: decoder_forward.1
$region0: #{decoder_forward.1}
  #allocation0 [shape = 'u32[]', space=smem, size = 0x4, offset = 0x4, fixed_abs, tag = 'smem constant byte address 0x4 - core index']
  #allocation1 [shape = 'u32[72,128]{1,0:T(1,128)}', space=vmem, size = 0x9000, scoped, tag = 'internal scratch']
  %s0 = inlined_call_operand.vmem [shape: f32[256,20], index: 0, kind: input, shape index: {}]
  %s1 = inlined_call_operand.vmem [shape: bf16[20,512], index: 1, kind: input, shape index: {}]
  %s2 = inlined_call_operand.vmem [shape: f32[1,512], index: 2, kind: input, shape index: {}]
  %s3 = inlined_call_operand.vmem [shape: bf16[512,896], index: 3, kind: input, shape index: {}]
  %s4 = inlined_call_operand.vmem [shape: f32[1,896], index: 4, kind: input, shape index: {}]
  %s5 = inlined_call_operand.vmem [shape: f32[256,896], index: 5, kind: output, shape index: {}]
  %s6 = sld [smem:[#allocation0]]
  $region53: #{decoder_forward.1} parent=0
    _
  %s8 = ssub.s32 1, %s6
  %s9 = scalar_select 0, %s8, %s6
  loop: start=0, step=1, limit=4
  $region2: #{decoder_forward.1} parent=0 // loop_pre_header
    _
  $region3: #{decoder_forward.1} parent=0 // loop_header
    %s11 = sphi 0, %s15
    %p12 = scmp.ge.s32.totalorder %s11, 4
    %s21 = sphi 0, %s23
    %s24 = sphi 0, %s21
    %s25 = sphi 0, %s24
    %s41 = sphi 0, %s25
    %s45 = sphi 0, %s45
    %s47 = sphi 0, %s45
    %s48 = sphi 0, %s47
    %s62 = sphi 0, %s48
    %s66 = sphi 0, %s66
    %s68 = sphi 0, %s66
    %s69 = sphi 0, %s68
    %s83 = sphi 0, %s69
    %s87 = sphi 0, %s87
    %s89 = sphi 0, %s87
    %s90 = sphi 0, %s89
    %s104 = sphi 0, %s90
    %s108 = sphi 0, %s108
    %s110 = sphi 0, %s108
    %s111 = sphi 0, %s110
    %s125 = sphi 0, %s111
    %s131 = sphi 0, %s133
    %s134 = sphi 0, %s131
    %s135 = sphi 0, %s134
    %s151 = sphi 0, %s135
  $region4: #{decoder_forward.1} parent=0 // loop_header_branch
    %14 = sbr.rel (%p12) target = $region8
  $region5: #{decoder_forward.1} parent=0 // loop_body
    %s16 = ssub.s32 %s11, 1
    %s17 = ssub.s32 %s11, 2
    %s18 = sadd.s32 %s11, 1
    %s19 = ssub.s32 %s11, %s18
    %p20 = scmp.eq.s32.totalorder %s19, 0
    %s22 = sadd.s32 %s21, 1
    %s23 = scalar_select %p20, %s21, %s22
    %p26 = pneg %p20
    %p27 = scmp.eq.s32.totalorder %s11, 1
    %p28 = por %p26, %p27
    %p29 = scmp.ne.s32.totalorder %s21, %s24
    %p30 = scmp.eq.s32.totalorder %s11, 0
    %p31 = por %p29, %p30
    %p32 = scmp.ne.s32.totalorder %s21, %s24
    %p33 = scmp.eq.s32.totalorder %s16, 1
    %p34 = por %p32, %p33
    %p35 = scmp.ne.s32.totalorder %s24, %s25
    %p36 = scmp.eq.s32.totalorder %s16, 0
    %p37 = por %p35, %p36
    %p38 = scmp.ne.s32.totalorder %s24, %s25
    %p39 = scmp.eq.s32.totalorder %s17, 1
    %p40 = por %p38, %p39
    %p42 = scmp.ne.s32.totalorder %s25, %s41
    %p43 = scmp.eq.s32.totalorder %s17, 0
    %p44 = por %p42, %p43
    %s46 = sadd.s32 %s45, 1
    %p49 = scmp.eq.s32.totalorder %s11, 1
    %p50 = scmp.ne.s32.totalorder %s45, %s47
    %p51 = scmp.eq.s32.totalorder %s11, 0
    %p52 = por %p50, %p51
    %p53 = scmp.ne.s32.totalorder %s45, %s47
    %p54 = scmp.eq.s32.totalorder %s16, 1
    %p55 = por %p53, %p54
    %p56 = scmp.ne.s32.totalorder %s47, %s48
    %p57 = scmp.eq.s32.totalorder %s16, 0
    %p58 = por %p56, %p57
    %p59 = scmp.ne.s32.totalorder %s47, %s48
    %p60 = scmp.eq.s32.totalorder %s17, 1
    %p61 = por %p59, %p60
    %p63 = scmp.ne.s32.totalorder %s48, %s62
    %p64 = scmp.eq.s32.totalorder %s17, 0
    %p65 = por %p63, %p64
    %s67 = sadd.s32 %s66, 1
    %p70 = scmp.eq.s32.totalorder %s11, 1
    %p71 = scmp.ne.s32.totalorder %s66, %s68
    %p72 = scmp.eq.s32.totalorder %s11, 0
    %p73 = por %p71, %p72
    %p74 = scmp.ne.s32.totalorder %s66, %s68
    %p75 = scmp.eq.s32.totalorder %s16, 1
    %p76 = por %p74, %p75
    %p77 = scmp.ne.s32.totalorder %s68, %s69
    %p78 = scmp.eq.s32.totalorder %s16, 0
    %p79 = por %p77, %p78
    %p80 = scmp.ne.s32.totalorder %s68, %s69
    %p81 = scmp.eq.s32.totalorder %s17, 1
    %p82 = por %p80, %p81
    %p84 = scmp.ne.s32.totalorder %s69, %s83
    %p85 = scmp.eq.s32.totalorder %s17, 0
    %p86 = por %p84, %p85
    %s88 = sadd.s32 %s87, 1
    %p91 = scmp.eq.s32.totalorder %s11, 1
    %p92 = scmp.ne.s32.totalorder %s87, %s89
    %p93 = scmp.eq.s32.totalorder %s11, 0
    %p94 = por %p92, %p93
    %p95 = scmp.ne.s32.totalorder %s87, %s89
    %p96 = scmp.eq.s32.totalorder %s16, 1
    %p97 = por %p95, %p96
    %p98 = scmp.ne.s32.totalorder %s89, %s90
    %p99 = scmp.eq.s32.totalorder %s16, 0
    %p100 = por %p98, %p99
    %p101 = scmp.ne.s32.totalorder %s89, %s90
    %p102 = scmp.eq.s32.totalorder %s17, 1
    %p103 = por %p101, %p102
    %p105 = scmp.ne.s32.totalorder %s90, %s104
    %p106 = scmp.eq.s32.totalorder %s17, 0
    %p107 = por %p105, %p106
    %s109 = sadd.s32 %s108, 1
    %p112 = scmp.eq.s32.totalorder %s11, 1
    %p113 = scmp.ne.s32.totalorder %s108, %s110
    %p114 = scmp.eq.s32.totalorder %s11, 0
    %p115 = por %p113, %p114
    %p116 = scmp.ne.s32.totalorder %s108, %s110
    %p117 = scmp.eq.s32.totalorder %s16, 1
    %p118 = por %p116, %p117
    %p119 = scmp.ne.s32.totalorder %s110, %s111
    %p120 = scmp.eq.s32.totalorder %s16, 0
    %p121 = por %p119, %p120
    %p122 = scmp.ne.s32.totalorder %s110, %s111
    %p123 = scmp.eq.s32.totalorder %s17, 1
    %p124 = por %p122, %p123
    %p126 = scmp.ne.s32.totalorder %s111, %s125
    %p127 = scmp.eq.s32.totalorder %s17, 0
    %p128 = por %p126, %p127
    %s129 = ssub.s32 %s11, %s18
    %p130 = scmp.eq.s32.totalorder %s129, 0
    %s132 = sadd.s32 %s131, 1
    %s133 = scalar_select %p130, %s131, %s132
    %p136 = pneg %p130
    %p137 = scmp.eq.s32.totalorder %s11, 1
    %p138 = por %p136, %p137
    %p139 = scmp.ne.s32.totalorder %s131, %s134
    %p140 = scmp.eq.s32.totalorder %s11, 0
    %p141 = por %p139, %p140
    %p142 = scmp.ne.s32.totalorder %s131, %s134
    %p143 = scmp.eq.s32.totalorder %s16, 1
    %p144 = por %p142, %p143
    %p145 = scmp.ne.s32.totalorder %s134, %s135
    %p146 = scmp.eq.s32.totalorder %s16, 0
    %p147 = por %p145, %p146
    %p148 = scmp.ne.s32.totalorder %s134, %s135
    %p149 = scmp.eq.s32.totalorder %s17, 1
    %p150 = por %p148, %p149
    %p152 = scmp.ne.s32.totalorder %s135, %s151
    %p153 = scmp.eq.s32.totalorder %s17, 0
    %p154 = por %p152, %p153
    %p155 = scmp.le.s32.totalorder 1, %s11
    %p156 = scmp.lt.s32.totalorder %s11, 3
    %p157 = pnand %p155, %p156
    %p158 = pneg %p157
    // Predicated region
    $region9: #{decoder_forward.1} parent=5 // pred_check
      _
    $region10: #{decoder_forward.1} parent=5 // pred_check_branch
      %160 = sbr.rel (%p157) target = $region12
    $region11: #{decoder_forward.1} parent=5 // pred_region
      %s161 = ssub.s32 %s11, 1
      // Predicated region
      $region13: #{decoder_forward.1} parent=11 // pred_check
        %p162 = pneg %p58
      $region14: #{decoder_forward.1} parent=11 // pred_check_branch
        %164 = sbr.rel (%p162) target = $region16
      $region15: #{decoder_forward.1} parent=11 // pred_region
        _
      $region16: #{decoder_forward.1} parent=11 // pred_fallthru
        _
      // Predicated region
      $region17: #{decoder_forward.1} parent=11 // pred_check
        %p165 = pneg %p79
      $region18: #{decoder_forward.1} parent=11 // pred_check_branch
        %167 = sbr.rel (%p165) target = $region20
      $region19: #{decoder_forward.1} parent=11 // pred_region
        _
      $region20: #{decoder_forward.1} parent=11 // pred_fallthru
        _
      // Predicated region
      $region21: #{decoder_forward.1} parent=11 // pred_check
        %p168 = pneg %p100
      $region22: #{decoder_forward.1} parent=11 // pred_check_branch
        %170 = sbr.rel (%p168) target = $region24
      $region23: #{decoder_forward.1} parent=11 // pred_region
        _
      $region24: #{decoder_forward.1} parent=11 // pred_fallthru
        _
      // Predicated region
      $region25: #{decoder_forward.1} parent=11 // pred_check
        %p171 = pneg %p121
      $region26: #{decoder_forward.1} parent=11 // pred_check_branch
        %173 = sbr.rel (%p171) target = $region28
      $region27: #{decoder_forward.1} parent=11 // pred_region
        _
      $region28: #{decoder_forward.1} parent=11 // pred_fallthru
        _
    $region12: #{decoder_forward.1} parent=5 // pred_fallthru
      _
    %p174 = scmp.lt.s32.totalorder %s11, 2
    // Predicated region
    $region29: #{decoder_forward.1} parent=5 // pred_check
      %p175 = pneg %p174
    $region30: #{decoder_forward.1} parent=5 // pred_check_branch
      %177 = sbr.rel (%p175) target = $region32
    $region31: #{decoder_forward.1} parent=5 // pred_region
      // Predicated region
      $region33: #{decoder_forward.1} parent=31 // pred_check
        %p178 = pneg %p31
      $region34: #{decoder_forward.1} parent=31 // pred_check_branch
        %180 = sbr.rel (%p178) target = $region36
      $region35: #{decoder_forward.1} parent=31 // pred_region
        %s181 = smul.u32 16, %s11
        %p182 = scmp.lt.s32.totalorder %s181, 31
        %s183 = scalar_select %p182, %s181, 31
        %s184 = smul.addr %s183, 8
        %s185 = scalar_lea.vmem %s0, %s184
        %s186 = smul.u32 16, %s11
      $region36: #{decoder_forward.1} parent=31 // pred_fallthru
        _
    $region32: #{decoder_forward.1} parent=5 // pred_fallthru
      _
    %p187 = scmp.le.s32.totalorder 1, %s11
    %p188 = scmp.lt.s32.totalorder %s11, 3
    %p189 = pnand %p187, %p188
    %p190 = pneg %p189
    // Predicated region
    $region37: #{decoder_forward.1} parent=5 // pred_check
      _
    $region38: #{decoder_forward.1} parent=5 // pred_check_branch
      %192 = sbr.rel (%p189) target = $region40
    $region39: #{decoder_forward.1} parent=5 // pred_region
      %s193 = ssub.s32 %s11, 1
      %s194 = smul.u32 16, %s16
      %p195 = scmp.lt.s32.totalorder %s194, 31
      %s196 = scalar_select %p195, %s194, 31
      %s197 = smul.addr %s196, 8
      %s198 = scalar_lea.vmem %s0, %s197
      %p199 = pneg %p37
      %p200 = pneg %p34
      %p201 = pneg %p58
      %p202 = pneg %p55
      %p203 = pneg %p79
      %p204 = pneg %p76
      %p205 = pneg %p100
      %p206 = pneg %p97
      %p207 = pneg %p121
      %p208 = pneg %p118
      %p209 = pneg %p147
      %p210 = pneg %p144
      %s211 = smul.u32 16, %s16
      %p212 = scmp.lt.s32.totalorder %s211, 31
      %s213 = scalar_select %p212, %s211, 31
      %s214 = smul.addr %s213, 7
      %s215 = smul.addr %s214, 8
      %s216 = scalar_lea.vmem %s5, %s215
      %s217 = smul.u32 16, %s16
      %p218 = scmp.lt.s32.totalorder %s217, 31
      %s219 = scalar_select %p218, %s217, 31
      %s220 = smul.addr %s219, 8
      %s221 = scalar_lea.vmem %s0, %s220
      %s222 = smul.u32 16, %s16
      %s223 = smul.u32 16, %s16
      %p224 = scmp.lt.s32.totalorder %s223, 31
      %s225 = scalar_select %p224, %s223, 31
      %s226 = smul.addr %s225, 7
      %s227 = smul.addr %s226, 8
      %s228 = scalar_lea.vmem %s5, %s227
      %s229 = smul.u32 16, %s16
      %v231 = vld [vmem:[%s221] sm:$0xff]
      %v232 = vld [vmem:[%s221 + $0x8] sm:$0xff]
      %v233 = vld [vmem:[%s221 + $0x10] sm:$0xff]
      %v234 = vld [vmem:[%s221 + $0x18] sm:$0xff]
      %v235 = vld [vmem:[%s221 + $0x20] sm:$0xff]
      %v236 = vld [vmem:[%s221 + $0x28] sm:$0xff]
      %v237 = vld [vmem:[%s221 + $0x30] sm:$0xff]
      %v238 = vld [vmem:[%s221 + $0x38] sm:$0xff]
      %v239 = vld [vmem:[%s221 + $0x40] sm:$0xff]
      %v240 = vld [vmem:[%s221 + $0x48] sm:$0xff]
      %v241 = vld [vmem:[%s221 + $0x50] sm:$0xff]
      %v242 = vld [vmem:[%s221 + $0x58] sm:$0xff]
      %v243 = vld [vmem:[%s221 + $0x60] sm:$0xff]
      %v244 = vld [vmem:[%s221 + $0x68] sm:$0xff]
      %v245 = vld [vmem:[%s221 + $0x70] sm:$0xff]
      %v246 = vld [vmem:[%s221 + $0x78] sm:$0xff]
      %v247 = vpack.c.bf16 %v232, %v231
      %v248 = vpack.c.bf16 %v234, %v233
      %v249 = vpack.c.bf16 %v236, %v235
      %v250 = vpack.c.bf16 %v238, %v237
      %v251 = vpack.c.bf16 %v240, %v239
      %v252 = vpack.c.bf16 %v242, %v241
      %v253 = vpack.c.bf16 %v244, %v243
      %v254 = vpack.c.bf16 %v246, %v245
      %v255 = vld [vmem:[%s1] sm:$0xff]
      %v256 = vld [vmem:[%s1 + $0x8] sm:$0xff]
      %v257 = vld [vmem:[%s1 + $0x10] sm:$0xff]
      %v258 = vld [vmem:[%s1 + $0x18] sm:$0xff]
      %v259 = vld [vmem:[%s1 + $0x20] sm:$0x33]
      %v260 = vld [vmem:[%s1 + $0x28] sm:$0x33]
      %v261 = vld [vmem:[%s2] sm:$0xf]
      %v263 = vperm.slane %v261, 0
      %v264 = vperm.slane %v261, 1
      %v265 = vperm.slane %v261, 2
      %v266 = vperm.slane %v261, 3
      %v277 = vunpack.c.l.b16 %v255
      %v278 = vunpack.c.h.b16 %v255
      %v279 = vunpack.c.l.b16 %v256
      %v280 = vunpack.c.h.b16 %v256
      %v281 = vunpack.c.l.b16 %v257
      %v282 = vunpack.c.h.b16 %v257
      %v283 = vunpack.c.l.b16 %v258
      %v284 = vunpack.c.h.b16 %v258
      %v285 = vunpack.c.l.b16 %v259
      %v286 = vunpack.c.h.b16 %v259
      %v287 = vunpack.c.l.b16 %v260
      %v288 = vunpack.c.h.b16 %v260
      %v289 = vpack.c.b16 %v281, %v277
      %v290 = vpack.c.b16 %v282, %v278
      %v291 = vpack.c.b16 %v283, %v279
      %v292 = vpack.c.b16 %v284, %v280
      %v293 = vpack.c.b16 %v285, %v285
      %v294 = vpack.c.b16 %v286, %v286
      %v295 = vpack.c.b16 %v287, %v287
      %v296 = vpack.c.b16 %v288, %v288
      %vm301 = vcmask 162816
      %v303 = vsel %vm301, %v247, 0
      %v306 = vsel %vm301, %v248, 0
      %v309 = vsel %vm301, %v249, 0
      %v312 = vsel %vm301, %v250, 0
      %v315 = vsel %vm301, %v251, 0
      %v318 = vsel %vm301, %v252, 0
      %v321 = vsel %vm301, %v253, 0
      %v324 = vsel %vm301, %v254, 0
      %vm326 = vcmask 1041408
      %v328 = vsel %vm326, %v293, 0
      %v331 = vsel %vm326, %v294, 0
      %v334 = vsel %vm326, %v295, 0
      %v337 = vsel %vm326, %v296, 0
      %339 = vmatpush.bf16.msra.mxu0 0
      %340 = vmatpush.bf16.msra.mxu0 0
      %341 = vmatpush.bf16.msra.mxu0 0
      %342 = vmatpush.bf16.msra.mxu0 0
      %343 = vmatpush.bf16.msra.mxu0 0
      %344 = vmatpush.bf16.msra.mxu0 0
      %345 = vmatpush.bf16.msra.mxu0 %v328
      %346 = vmatpush.bf16.msra.mxu0 %v289
      %347 = vmatmul.bf16.gmra.mxu0 %v303
      %v348 = vpop.f32.mrf.mxu0
      %v349 = vadd.f32 %v263, %v348
      %v350 = vpop.f32.mrf.mxu0
      %v351 = vadd.f32 %v263, %v350
      %352 = vmatmul.bf16.gmra.mxu0 %v306
      %v353 = vpop.f32.mrf.mxu0
      %v354 = vadd.f32 %v263, %v353
      %v355 = vpop.f32.mrf.mxu0
      %v356 = vadd.f32 %v263, %v355
      %357 = vmatmul.bf16.gmra.mxu0 %v309
      %v358 = vpop.f32.mrf.mxu0
      %v359 = vadd.f32 %v263, %v358
      %v360 = vpop.f32.mrf.mxu0
      %v361 = vadd.f32 %v263, %v360
      %362 = vmatmul.bf16.gmra.mxu0 %v312
      %v363 = vpop.f32.mrf.mxu0
      %v364 = vadd.f32 %v263, %v363
      %v365 = vpop.f32.mrf.mxu0
      %v366 = vadd.f32 %v263, %v365
      %367 = vmatmul.bf16.gmra.mxu0 %v315
      %v368 = vpop.f32.mrf.mxu0
      %v369 = vadd.f32 %v263, %v368
      %v370 = vpop.f32.mrf.mxu0
      %v371 = vadd.f32 %v263, %v370
      %372 = vmatmul.bf16.gmra.mxu0 %v318
      %v373 = vpop.f32.mrf.mxu0
      %v374 = vadd.f32 %v263, %v373
      %v375 = vpop.f32.mrf.mxu0
      %v376 = vadd.f32 %v263, %v375
      %377 = vmatmul.bf16.gmra.mxu0 %v321
      %v378 = vpop.f32.mrf.mxu0
      %v379 = vadd.f32 %v263, %v378
      %v380 = vpop.f32.mrf.mxu0
      %v381 = vadd.f32 %v263, %v380
      %382 = vmatmul.bf16.gmra.mxu0 %v324
      %v383 = vpop.f32.mrf.mxu0
      %v384 = vadd.f32 %v263, %v383
      %v385 = vpop.f32.mrf.mxu0
      %v386 = vadd.f32 %v263, %v385
      %387 = vdwg.mxu0
      %388 = vmatpush.bf16.msra.mxu0 0
      %389 = vmatpush.bf16.msra.mxu0 0
      %390 = vmatpush.bf16.msra.mxu0 0
      %391 = vmatpush.bf16.msra.mxu0 0
      %392 = vmatpush.bf16.msra.mxu0 0
      %393 = vmatpush.bf16.msra.mxu0 0
      %394 = vmatpush.bf16.msra.mxu0 %v331
      %395 = vmatpush.bf16.msra.mxu0 %v290
      %396 = vmatmul.bf16.gmra.mxu0 %v303
      %v397 = vpop.f32.mrf.mxu0
      %v398 = vadd.f32 %v264, %v397
      %v399 = vpop.f32.mrf.mxu0
      %v400 = vadd.f32 %v264, %v399
      %401 = vmatmul.bf16.gmra.mxu0 %v306
      %v402 = vpop.f32.mrf.mxu0
      %v403 = vadd.f32 %v264, %v402
      %v404 = vpop.f32.mrf.mxu0
      %v405 = vadd.f32 %v264, %v404
      %406 = vmatmul.bf16.gmra.mxu0 %v309
      %v407 = vpop.f32.mrf.mxu0
      %v408 = vadd.f32 %v264, %v407
      %v409 = vpop.f32.mrf.mxu0
      %v410 = vadd.f32 %v264, %v409
      %411 = vmatmul.bf16.gmra.mxu0 %v312
      %v412 = vpop.f32.mrf.mxu0
      %v413 = vadd.f32 %v264, %v412
      %v414 = vpop.f32.mrf.mxu0
      %v415 = vadd.f32 %v264, %v414
      %416 = vmatmul.bf16.gmra.mxu0 %v315
      %v417 = vpop.f32.mrf.mxu0
      %v418 = vadd.f32 %v264, %v417
      %v419 = vpop.f32.mrf.mxu0
      %v420 = vadd.f32 %v264, %v419
      %421 = vmatmul.bf16.gmra.mxu0 %v318
      %v422 = vpop.f32.mrf.mxu0
      %v423 = vadd.f32 %v264, %v422
      %v424 = vpop.f32.mrf.mxu0
      %v425 = vadd.f32 %v264, %v424
      %426 = vmatmul.bf16.gmra.mxu0 %v321
      %v427 = vpop.f32.mrf.mxu0
      %v428 = vadd.f32 %v264, %v427
      %v429 = vpop.f32.mrf.mxu0
      %v430 = vadd.f32 %v264, %v429
      %431 = vmatmul.bf16.gmra.mxu0 %v324
      %v432 = vpop.f32.mrf.mxu0
      %v433 = vadd.f32 %v264, %v432
      %v434 = vpop.f32.mrf.mxu0
      %v435 = vadd.f32 %v264, %v434
      %436 = vdwg.mxu0
      %437 = vmatpush.bf16.msra.mxu0 0
      %438 = vmatpush.bf16.msra.mxu0 0
      %439 = vmatpush.bf16.msra.mxu0 0
      %440 = vmatpush.bf16.msra.mxu0 0
      %441 = vmatpush.bf16.msra.mxu0 0
      %442 = vmatpush.bf16.msra.mxu0 0
      %443 = vmatpush.bf16.msra.mxu0 %v334
      %444 = vmatpush.bf16.msra.mxu0 %v291
      %445 = vmatmul.bf16.gmra.mxu0 %v303
      %v446 = vpop.f32.mrf.mxu0
      %v447 = vadd.f32 %v265, %v446
      %v448 = vpop.f32.mrf.mxu0
      %v449 = vadd.f32 %v265, %v448
      %450 = vmatmul.bf16.gmra.mxu0 %v306
      %v451 = vpop.f32.mrf.mxu0
      %v452 = vadd.f32 %v265, %v451
      %v453 = vpop.f32.mrf.mxu0
      %v454 = vadd.f32 %v265, %v453
      %455 = vmatmul.bf16.gmra.mxu0 %v309
      %v456 = vpop.f32.mrf.mxu0
      %v457 = vadd.f32 %v265, %v456
      %v458 = vpop.f32.mrf.mxu0
      %v459 = vadd.f32 %v265, %v458
      %460 = vmatmul.bf16.gmra.mxu0 %v312
      %v461 = vpop.f32.mrf.mxu0
      %v462 = vadd.f32 %v265, %v461
      %v463 = vpop.f32.mrf.mxu0
      %v464 = vadd.f32 %v265, %v463
      %465 = vmatmul.bf16.gmra.mxu0 %v315
      %v466 = vpop.f32.mrf.mxu0
      %v467 = vadd.f32 %v265, %v466
      %v468 = vpop.f32.mrf.mxu0
      %v469 = vadd.f32 %v265, %v468
      %470 = vmatmul.bf16.gmra.mxu0 %v318
      %v471 = vpop.f32.mrf.mxu0
      %v472 = vadd.f32 %v265, %v471
      %v473 = vpop.f32.mrf.mxu0
      %v474 = vadd.f32 %v265, %v473
      %475 = vmatmul.bf16.gmra.mxu0 %v321
      %v476 = vpop.f32.mrf.mxu0
      %v477 = vadd.f32 %v265, %v476
      %v478 = vpop.f32.mrf.mxu0
      %v479 = vadd.f32 %v265, %v478
      %480 = vmatmul.bf16.gmra.mxu0 %v324
      %v481 = vpop.f32.mrf.mxu0
      %v482 = vadd.f32 %v265, %v481
      %v483 = vpop.f32.mrf.mxu0
      %v484 = vadd.f32 %v265, %v483
      %485 = vdwg.mxu0
      %486 = vmatpush.bf16.msra.mxu0 0
      %487 = vmatpush.bf16.msra.mxu0 0
      %488 = vmatpush.bf16.msra.mxu0 0
      %489 = vmatpush.bf16.msra.mxu0 0
      %490 = vmatpush.bf16.msra.mxu0 0
      %491 = vmatpush.bf16.msra.mxu0 0
      %492 = vmatpush.bf16.msra.mxu0 %v337
      %493 = vmatpush.bf16.msra.mxu0 %v292
      %494 = vmatmul.bf16.gmra.mxu0 %v303
      %v495 = vpop.f32.mrf.mxu0
      %v496 = vadd.f32 %v266, %v495
      %v497 = vpop.f32.mrf.mxu0
      %v498 = vadd.f32 %v266, %v497
      %499 = vmatmul.bf16.gmra.mxu0 %v306
      %v500 = vpop.f32.mrf.mxu0
      %v501 = vadd.f32 %v266, %v500
      %v502 = vpop.f32.mrf.mxu0
      %v503 = vadd.f32 %v266, %v502
      %504 = vmatmul.bf16.gmra.mxu0 %v309
      %v505 = vpop.f32.mrf.mxu0
      %v506 = vadd.f32 %v266, %v505
      %v507 = vpop.f32.mrf.mxu0
      %v508 = vadd.f32 %v266, %v507
      %509 = vmatmul.bf16.gmra.mxu0 %v312
      %v510 = vpop.f32.mrf.mxu0
      %v511 = vadd.f32 %v266, %v510
      %v512 = vpop.f32.mrf.mxu0
      %v513 = vadd.f32 %v266, %v512
      %514 = vmatmul.bf16.gmra.mxu0 %v315
      %v515 = vpop.f32.mrf.mxu0
      %v516 = vadd.f32 %v266, %v515
      %v517 = vpop.f32.mrf.mxu0
      %v518 = vadd.f32 %v266, %v517
      %519 = vmatmul.bf16.gmra.mxu0 %v318
      %v520 = vpop.f32.mrf.mxu0
      %v521 = vadd.f32 %v266, %v520
      %v522 = vpop.f32.mrf.mxu0
      %v523 = vadd.f32 %v266, %v522
      %524 = vmatmul.bf16.gmra.mxu0 %v321
      %v525 = vpop.f32.mrf.mxu0
      %v526 = vadd.f32 %v266, %v525
      %v527 = vpop.f32.mrf.mxu0
      %v528 = vadd.f32 %v266, %v527
      %529 = vmatmul.bf16.gmra.mxu0 %v324
      %v530 = vpop.f32.mrf.mxu0
      %v531 = vadd.f32 %v266, %v530
      %v532 = vpop.f32.mrf.mxu0
      %v533 = vadd.f32 %v266, %v532
      %534 = vdwg.mxu0
      %v535 = vmax.f32 %v349, 0.0
      %v536 = vmax.f32 %v398, 0.0
      %v537 = vmax.f32 %v447, 0.0
      %v538 = vmax.f32 %v496, 0.0
      %v539 = vmax.f32 %v351, 0.0
      %v540 = vmax.f32 %v400, 0.0
      %v541 = vmax.f32 %v449, 0.0
      %v542 = vmax.f32 %v498, 0.0
      %v543 = vmax.f32 %v354, 0.0
      %v544 = vmax.f32 %v403, 0.0
      %v545 = vmax.f32 %v452, 0.0
      %v546 = vmax.f32 %v501, 0.0
      %v547 = vmax.f32 %v356, 0.0
      %v548 = vmax.f32 %v405, 0.0
      %v549 = vmax.f32 %v454, 0.0
      %v550 = vmax.f32 %v503, 0.0
      %v551 = vmax.f32 %v359, 0.0
      %v552 = vmax.f32 %v408, 0.0
      %v553 = vmax.f32 %v457, 0.0
      %v554 = vmax.f32 %v506, 0.0
      %v555 = vmax.f32 %v361, 0.0
      %v556 = vmax.f32 %v410, 0.0
      %v557 = vmax.f32 %v459, 0.0
      %v558 = vmax.f32 %v508, 0.0
      %v559 = vmax.f32 %v364, 0.0
      %v560 = vmax.f32 %v413, 0.0
      %v561 = vmax.f32 %v462, 0.0
      %v562 = vmax.f32 %v511, 0.0
      %v563 = vmax.f32 %v366, 0.0
      %v564 = vmax.f32 %v415, 0.0
      %v565 = vmax.f32 %v464, 0.0
      %v566 = vmax.f32 %v513, 0.0
      %v567 = vmax.f32 %v369, 0.0
      %v568 = vmax.f32 %v418, 0.0
      %v569 = vmax.f32 %v467, 0.0
      %v570 = vmax.f32 %v516, 0.0
      %v571 = vmax.f32 %v371, 0.0
      %v572 = vmax.f32 %v420, 0.0
      %v573 = vmax.f32 %v469, 0.0
      %v574 = vmax.f32 %v518, 0.0
      %v575 = vmax.f32 %v374, 0.0
      %v576 = vmax.f32 %v423, 0.0
      %v577 = vmax.f32 %v472, 0.0
      %v578 = vmax.f32 %v521, 0.0
      %v579 = vmax.f32 %v376, 0.0
      %v580 = vmax.f32 %v425, 0.0
      %v581 = vmax.f32 %v474, 0.0
      %v582 = vmax.f32 %v523, 0.0
      %v583 = vmax.f32 %v379, 0.0
      %v584 = vmax.f32 %v428, 0.0
      %v585 = vmax.f32 %v477, 0.0
      %v586 = vmax.f32 %v526, 0.0
      %v587 = vmax.f32 %v381, 0.0
      %v588 = vmax.f32 %v430, 0.0
      %v589 = vmax.f32 %v479, 0.0
      %v590 = vmax.f32 %v528, 0.0
      %v591 = vmax.f32 %v384, 0.0
      %v592 = vmax.f32 %v433, 0.0
      %v593 = vmax.f32 %v482, 0.0
      %v594 = vmax.f32 %v531, 0.0
      %v595 = vmax.f32 %v386, 0.0
      %v596 = vmax.f32 %v435, 0.0
      %v597 = vmax.f32 %v484, 0.0
      %v598 = vmax.f32 %v533, 0.0
      %v599 = vpack.c.bf16 %v539, %v535
      %v600 = vpack.c.bf16 %v540, %v536
      %v601 = vpack.c.bf16 %v541, %v537
      %v602 = vpack.c.bf16 %v542, %v538
      %v603 = vpack.c.bf16 %v547, %v543
      %v604 = vpack.c.bf16 %v548, %v544
      %v605 = vpack.c.bf16 %v549, %v545
      %v606 = vpack.c.bf16 %v550, %v546
      %v607 = vpack.c.bf16 %v555, %v551
      %v608 = vpack.c.bf16 %v556, %v552
      %v609 = vpack.c.bf16 %v557, %v553
      %v610 = vpack.c.bf16 %v558, %v554
      %v611 = vpack.c.bf16 %v563, %v559
      %v612 = vpack.c.bf16 %v564, %v560
      %v613 = vpack.c.bf16 %v565, %v561
      %v614 = vpack.c.bf16 %v566, %v562
      %v615 = vpack.c.bf16 %v571, %v567
      %v616 = vpack.c.bf16 %v572, %v568
      %v617 = vpack.c.bf16 %v573, %v569
      %v618 = vpack.c.bf16 %v574, %v570
      %v619 = vpack.c.bf16 %v579, %v575
      %v620 = vpack.c.bf16 %v580, %v576
      %v621 = vpack.c.bf16 %v581, %v577
      %v622 = vpack.c.bf16 %v582, %v578
      %v623 = vpack.c.bf16 %v587, %v583
      %v624 = vpack.c.bf16 %v588, %v584
      %v625 = vpack.c.bf16 %v589, %v585
      %v626 = vpack.c.bf16 %v590, %v586
      %v627 = vpack.c.bf16 %v595, %v591
      %v628 = vpack.c.bf16 %v596, %v592
      %v629 = vpack.c.bf16 %v597, %v593
      %v630 = vpack.c.bf16 %v598, %v594
      %v631 = vld [vmem:[%s3] sm:$0xff]
      %v632 = vld [vmem:[%s3 + $0x8] sm:$0xff]
      %v633 = vld [vmem:[%s3 + $0x10] sm:$0xff]
      %v634 = vld [vmem:[%s3 + $0x18] sm:$0xf]
      %v635 = vld [vmem:[%s3 + $0x1c] sm:$0xff]
      %v636 = vld [vmem:[%s3 + $0x24] sm:$0xff]
      %v637 = vld [vmem:[%s3 + $0x2c] sm:$0xff]
      %v638 = vld [vmem:[%s3 + $0x34] sm:$0xf]
      %v639 = vld [vmem:[%s3 + $0x38] sm:$0xff]
      %v640 = vld [vmem:[%s3 + $0x40] sm:$0xff]
      %v641 = vld [vmem:[%s3 + $0x48] sm:$0xff]
      %v642 = vld [vmem:[%s3 + $0x50] sm:$0xf]
      %v643 = vld [vmem:[%s3 + $0x54] sm:$0xff]
      %v644 = vld [vmem:[%s3 + $0x5c] sm:$0xff]
      %v645 = vld [vmem:[%s3 + $0x64] sm:$0xff]
      %v646 = vld [vmem:[%s3 + $0x6c] sm:$0xf]
      %v647 = vld [vmem:[%s3 + $0x70] sm:$0xff]
      %v648 = vld [vmem:[%s3 + $0x78] sm:$0xff]
      %v649 = vld [vmem:[%s3 + $0x80] sm:$0xff]
      %v650 = vld [vmem:[%s3 + $0x88] sm:$0xf]
      %v651 = vld [vmem:[%s3 + $0x8c] sm:$0xff]
      %v652 = vld [vmem:[%s3 + $0x94] sm:$0xff]
      %v653 = vld [vmem:[%s3 + $0x9c] sm:$0xff]
      %v654 = vld [vmem:[%s3 + $0xa4] sm:$0xf]
      %v655 = vld [vmem:[%s3 + $0xa8] sm:$0xff]
      %v656 = vld [vmem:[%s3 + $0xb0] sm:$0xff]
      %v657 = vld [vmem:[%s3 + $0xb8] sm:$0xff]
      %v658 = vld [vmem:[%s3 + $0xc0] sm:$0xf]
      %v659 = vld [vmem:[%s3 + $0xc4] sm:$0xff]
      %v660 = vld [vmem:[%s3 + $0xcc] sm:$0xff]
      %v661 = vld [vmem:[%s3 + $0xd4] sm:$0xff]
      %v662 = vld [vmem:[%s3 + $0xdc] sm:$0xf]
      %v663 = vld [vmem:[%s3 + $0xe0] sm:$0xff]
      %v664 = vld [vmem:[%s3 + $0xe8] sm:$0xff]
      %v665 = vld [vmem:[%s3 + $0xf0] sm:$0xff]
      %v666 = vld [vmem:[%s3 + $0xf8] sm:$0xf]
      %v667 = vld [vmem:[%s3 + $0xfc] sm:$0xff]
      %v668 = vld [vmem:[%s3 + $0x104] sm:$0xff]
      %v669 = vld [vmem:[%s3 + $0x10c] sm:$0xff]
      %v670 = vld [vmem:[%s3 + $0x114] sm:$0xf]
      %v671 = vld [vmem:[%s3 + $0x118] sm:$0xff]
      %v672 = vld [vmem:[%s3 + $0x120] sm:$0xff]
      %v673 = vld [vmem:[%s3 + $0x128] sm:$0xff]
      %v674 = vld [vmem:[%s3 + $0x130] sm:$0xf]
      %v675 = vld [vmem:[%s3 + $0x134] sm:$0xff]
      %v676 = vld [vmem:[%s3 + $0x13c] sm:$0xff]
      %v677 = vld [vmem:[%s3 + $0x144] sm:$0xff]
      %v678 = vld [vmem:[%s3 + $0x14c] sm:$0xf]
      %v679 = vld [vmem:[%s3 + $0x150] sm:$0xff]
      %v680 = vld [vmem:[%s3 + $0x158] sm:$0xff]
      %v681 = vld [vmem:[%s3 + $0x160] sm:$0xff]
      %v682 = vld [vmem:[%s3 + $0x168] sm:$0xf]
      %v683 = vld [vmem:[%s3 + $0x16c] sm:$0xff]
      %v684 = vld [vmem:[%s3 + $0x174] sm:$0xff]
      %v685 = vld [vmem:[%s3 + $0x17c] sm:$0xff]
      %v686 = vld [vmem:[%s3 + $0x184] sm:$0xf]
      %v687 = vld [vmem:[%s3 + $0x188] sm:$0xff]
      %v688 = vld [vmem:[%s3 + $0x190] sm:$0xff]
      %v689 = vld [vmem:[%s3 + $0x198] sm:$0xff]
      %v690 = vld [vmem:[%s3 + $0x1a0] sm:$0xf]
      %v691 = vld [vmem:[%s3 + $0x1a4] sm:$0xff]
      %v692 = vld [vmem:[%s3 + $0x1ac] sm:$0xff]
      %v693 = vld [vmem:[%s3 + $0x1b4] sm:$0xff]
      %v694 = vld [vmem:[%s3 + $0x1bc] sm:$0xf]
      %v695 = vld [vmem:[%s3 + $0x1c0] sm:$0xff]
      %v696 = vld [vmem:[%s3 + $0x1c8] sm:$0xff]
      %v697 = vld [vmem:[%s3 + $0x1d0] sm:$0xff]
      %v698 = vld [vmem:[%s3 + $0x1d8] sm:$0xf]
      %v699 = vld [vmem:[%s3 + $0x1dc] sm:$0xff]
      %v700 = vld [vmem:[%s3 + $0x1e4] sm:$0xff]
      %v701 = vld [vmem:[%s3 + $0x1ec] sm:$0xff]
      %v702 = vld [vmem:[%s3 + $0x1f4] sm:$0xf]
      %v703 = vld [vmem:[%s3 + $0x1f8] sm:$0xff]
      %v704 = vld [vmem:[%s3 + $0x200] sm:$0xff]
      %v705 = vld [vmem:[%s3 + $0x208] sm:$0xff]
      %v706 = vld [vmem:[%s3 + $0x210] sm:$0xf]
      %v707 = vld [vmem:[%s3 + $0x214] sm:$0xff]
      %v708 = vld [vmem:[%s3 + $0x21c] sm:$0xff]
      %v709 = vld [vmem:[%s3 + $0x224] sm:$0xff]
      %v710 = vld [vmem:[%s3 + $0x22c] sm:$0xf]
      %v711 = vld [vmem:[%s3 + $0x230] sm:$0xff]
      %v712 = vld [vmem:[%s3 + $0x238] sm:$0xff]
      %v713 = vld [vmem:[%s3 + $0x240] sm:$0xff]
      %v714 = vld [vmem:[%s3 + $0x248] sm:$0xf]
      %v715 = vld [vmem:[%s3 + $0x24c] sm:$0xff]
      %v716 = vld [vmem:[%s3 + $0x254] sm:$0xff]
      %v717 = vld [vmem:[%s3 + $0x25c] sm:$0xff]
      %v718 = vld [vmem:[%s3 + $0x264] sm:$0xf]
      %v719 = vld [vmem:[%s3 + $0x268] sm:$0xff]
      %v720 = vld [vmem:[%s3 + $0x270] sm:$0xff]
      %v721 = vld [vmem:[%s3 + $0x278] sm:$0xff]
      %v722 = vld [vmem:[%s3 + $0x280] sm:$0xf]
      %v723 = vld [vmem:[%s3 + $0x284] sm:$0xff]
      %v724 = vld [vmem:[%s3 + $0x28c] sm:$0xff]
      %v725 = vld [vmem:[%s3 + $0x294] sm:$0xff]
      %v726 = vld [vmem:[%s3 + $0x29c] sm:$0xf]
      %v727 = vld [vmem:[%s3 + $0x2a0] sm:$0xff]
      %v728 = vld [vmem:[%s3 + $0x2a8] sm:$0xff]
      %v729 = vld [vmem:[%s3 + $0x2b0] sm:$0xff]
      %v730 = vld [vmem:[%s3 + $0x2b8] sm:$0xf]
      %v731 = vld [vmem:[%s3 + $0x2bc] sm:$0xff]
      %v732 = vld [vmem:[%s3 + $0x2c4] sm:$0xff]
      %v733 = vld [vmem:[%s3 + $0x2cc] sm:$0xff]
      %v734 = vld [vmem:[%s3 + $0x2d4] sm:$0xf]
      %v735 = vld [vmem:[%s3 + $0x2d8] sm:$0xff]
      %v736 = vld [vmem:[%s3 + $0x2e0] sm:$0xff]
      %v737 = vld [vmem:[%s3 + $0x2e8] sm:$0xff]
      %v738 = vld [vmem:[%s3 + $0x2f0] sm:$0xf]
      %v739 = vld [vmem:[%s3 + $0x2f4] sm:$0xff]
      %v740 = vld [vmem:[%s3 + $0x2fc] sm:$0xff]
      %v741 = vld [vmem:[%s3 + $0x304] sm:$0xff]
      %v742 = vld [vmem:[%s3 + $0x30c] sm:$0xf]
      %v743 = vld [vmem:[%s3 + $0x310] sm:$0xff]
      %v744 = vld [vmem:[%s3 + $0x318] sm:$0xff]
      %v745 = vld [vmem:[%s3 + $0x320] sm:$0xff]
      %v746 = vld [vmem:[%s3 + $0x328] sm:$0xf]
      %v747 = vld [vmem:[%s3 + $0x32c] sm:$0xff]
      %v748 = vld [vmem:[%s3 + $0x334] sm:$0xff]
      %v749 = vld [vmem:[%s3 + $0x33c] sm:$0xff]
      %v750 = vld [vmem:[%s3 + $0x344] sm:$0xf]
      %v751 = vld [vmem:[%s3 + $0x348] sm:$0xff]
      %v752 = vld [vmem:[%s3 + $0x350] sm:$0xff]
      %v753 = vld [vmem:[%s3 + $0x358] sm:$0xff]
      %v754 = vld [vmem:[%s3 + $0x360] sm:$0xf]
      %v755 = vld [vmem:[%s3 + $0x364] sm:$0xff]
      %v756 = vld [vmem:[%s3 + $0x36c] sm:$0xff]
      %v757 = vld [vmem:[%s3 + $0x374] sm:$0xff]
      %v758 = vld [vmem:[%s3 + $0x37c] sm:$0xf]
      %v759 = vld [vmem:[%s3 + $0x380] sm:$0xff]
      %v760 = vld [vmem:[%s3 + $0x388] sm:$0xff]
      %v761 = vld [vmem:[%s3 + $0x390] sm:$0xff]
      %v762 = vld [vmem:[%s3 + $0x398] sm:$0xf]
      %v763 = vld [vmem:[%s3 + $0x39c] sm:$0xff]
      %v764 = vld [vmem:[%s3 + $0x3a4] sm:$0xff]
      %v765 = vld [vmem:[%s3 + $0x3ac] sm:$0xff]
      %v766 = vld [vmem:[%s3 + $0x3b4] sm:$0xf]
      %v767 = vld [vmem:[%s3 + $0x3b8] sm:$0xff]
      %v768 = vld [vmem:[%s3 + $0x3c0] sm:$0xff]
      %v769 = vld [vmem:[%s3 + $0x3c8] sm:$0xff]
      %v770 = vld [vmem:[%s3 + $0x3d0] sm:$0xf]
      %v771 = vld [vmem:[%s3 + $0x3d4] sm:$0xff]
      %v772 = vld [vmem:[%s3 + $0x3dc] sm:$0xff]
      %v773 = vld [vmem:[%s3 + $0x3e4] sm:$0xff]
      %v774 = vld [vmem:[%s3 + $0x3ec] sm:$0xf]
      %v775 = vld [vmem:[%s3 + $0x3f0] sm:$0xff]
      %v776 = vld [vmem:[%s3 + $0x3f8] sm:$0xff]
      %v777 = vld [vmem:[%s3 + $0x400] sm:$0xff]
      %v778 = vld [vmem:[%s3 + $0x408] sm:$0xf]
      %v779 = vld [vmem:[%s3 + $0x40c] sm:$0xff]
      %v780 = vld [vmem:[%s3 + $0x414] sm:$0xff]
      %v781 = vld [vmem:[%s3 + $0x41c] sm:$0xff]
      %v782 = vld [vmem:[%s3 + $0x424] sm:$0xf]
      %v783 = vld [vmem:[%s3 + $0x428] sm:$0xff]
      %v784 = vld [vmem:[%s3 + $0x430] sm:$0xff]
      %v785 = vld [vmem:[%s3 + $0x438] sm:$0xff]
      %v786 = vld [vmem:[%s3 + $0x440] sm:$0xf]
      %v787 = vld [vmem:[%s3 + $0x444] sm:$0xff]
      %v788 = vld [vmem:[%s3 + $0x44c] sm:$0xff]
      %v789 = vld [vmem:[%s3 + $0x454] sm:$0xff]
      %v790 = vld [vmem:[%s3 + $0x45c] sm:$0xf]
      %v791 = vld [vmem:[%s3 + $0x460] sm:$0xff]
      %v792 = vld [vmem:[%s3 + $0x468] sm:$0xff]
      %v793 = vld [vmem:[%s3 + $0x470] sm:$0xff]
      %v794 = vld [vmem:[%s3 + $0x478] sm:$0xf]
      %v795 = vld [vmem:[%s3 + $0x47c] sm:$0xff]
      %v796 = vld [vmem:[%s3 + $0x484] sm:$0xff]
      %v797 = vld [vmem:[%s3 + $0x48c] sm:$0xff]
      %v798 = vld [vmem:[%s3 + $0x494] sm:$0xf]
      %v799 = vld [vmem:[%s3 + $0x498] sm:$0xff]
      %v800 = vld [vmem:[%s3 + $0x4a0] sm:$0xff]
      %v801 = vld [vmem:[%s3 + $0x4a8] sm:$0xff]
      %v802 = vld [vmem:[%s3 + $0x4b0] sm:$0xf]
      %v803 = vld [vmem:[%s3 + $0x4b4] sm:$0xff]
      %v804 = vld [vmem:[%s3 + $0x4bc] sm:$0xff]
      %v805 = vld [vmem:[%s3 + $0x4c4] sm:$0xff]
      %v806 = vld [vmem:[%s3 + $0x4cc] sm:$0xf]
      %v807 = vld [vmem:[%s3 + $0x4d0] sm:$0xff]
      %v808 = vld [vmem:[%s3 + $0x4d8] sm:$0xff]
      %v809 = vld [vmem:[%s3 + $0x4e0] sm:$0xff]
      %v810 = vld [vmem:[%s3 + $0x4e8] sm:$0xf]
      %v811 = vld [vmem:[%s3 + $0x4ec] sm:$0xff]
      %v812 = vld [vmem:[%s3 + $0x4f4] sm:$0xff]
      %v813 = vld [vmem:[%s3 + $0x4fc] sm:$0xff]
      %v814 = vld [vmem:[%s3 + $0x504] sm:$0xf]
      %v815 = vld [vmem:[%s3 + $0x508] sm:$0xff]
      %v816 = vld [vmem:[%s3 + $0x510] sm:$0xff]
      %v817 = vld [vmem:[%s3 + $0x518] sm:$0xff]
      %v818 = vld [vmem:[%s3 + $0x520] sm:$0xf]
      %v819 = vld [vmem:[%s3 + $0x524] sm:$0xff]
      %v820 = vld [vmem:[%s3 + $0x52c] sm:$0xff]
      %v821 = vld [vmem:[%s3 + $0x534] sm:$0xff]
      %v822 = vld [vmem:[%s3 + $0x53c] sm:$0xf]
      %v823 = vld [vmem:[%s3 + $0x540] sm:$0xff]
      %v824 = vld [vmem:[%s3 + $0x548] sm:$0xff]
      %v825 = vld [vmem:[%s3 + $0x550] sm:$0xff]
      %v826 = vld [vmem:[%s3 + $0x558] sm:$0xf]
      %v827 = vld [vmem:[%s3 + $0x55c] sm:$0xff]
      %v828 = vld [vmem:[%s3 + $0x564] sm:$0xff]
      %v829 = vld [vmem:[%s3 + $0x56c] sm:$0xff]
      %v830 = vld [vmem:[%s3 + $0x574] sm:$0xf]
      %v831 = vld [vmem:[%s3 + $0x578] sm:$0xff]
      %v832 = vld [vmem:[%s3 + $0x580] sm:$0xff]
      %v833 = vld [vmem:[%s3 + $0x588] sm:$0xff]
      %v834 = vld [vmem:[%s3 + $0x590] sm:$0xf]
      %v835 = vld [vmem:[%s3 + $0x594] sm:$0xff]
      %v836 = vld [vmem:[%s3 + $0x59c] sm:$0xff]
      %v837 = vld [vmem:[%s3 + $0x5a4] sm:$0xff]
      %v838 = vld [vmem:[%s3 + $0x5ac] sm:$0xf]
      %v839 = vld [vmem:[%s3 + $0x5b0] sm:$0xff]
      %v840 = vld [vmem:[%s3 + $0x5b8] sm:$0xff]
      %v841 = vld [vmem:[%s3 + $0x5c0] sm:$0xff]
      %v842 = vld [vmem:[%s3 + $0x5c8] sm:$0xf]
      %v843 = vld [vmem:[%s3 + $0x5cc] sm:$0xff]
      %v844 = vld [vmem:[%s3 + $0x5d4] sm:$0xff]
      %v845 = vld [vmem:[%s3 + $0x5dc] sm:$0xff]
      %v846 = vld [vmem:[%s3 + $0x5e4] sm:$0xf]
      %v847 = vld [vmem:[%s3 + $0x5e8] sm:$0xff]
      %v848 = vld [vmem:[%s3 + $0x5f0] sm:$0xff]
      %v849 = vld [vmem:[%s3 + $0x5f8] sm:$0xff]
      %v850 = vld [vmem:[%s3 + $0x600] sm:$0xf]
      %v851 = vld [vmem:[%s3 + $0x604] sm:$0xff]
      %v852 = vld [vmem:[%s3 + $0x60c] sm:$0xff]
      %v853 = vld [vmem:[%s3 + $0x614] sm:$0xff]
      %v854 = vld [vmem:[%s3 + $0x61c] sm:$0xf]
      %v855 = vld [vmem:[%s3 + $0x620] sm:$0xff]
      %v856 = vld [vmem:[%s3 + $0x628] sm:$0xff]
      %v857 = vld [vmem:[%s3 + $0x630] sm:$0xff]
      %v858 = vld [vmem:[%s3 + $0x638] sm:$0xf]
      %v859 = vld [vmem:[%s3 + $0x63c] sm:$0xff]
      %v860 = vld [vmem:[%s3 + $0x644] sm:$0xff]
      %v861 = vld [vmem:[%s3 + $0x64c] sm:$0xff]
      %v862 = vld [vmem:[%s3 + $0x654] sm:$0xf]
      %v863 = vld [vmem:[%s3 + $0x658] sm:$0xff]
      %v864 = vld [vmem:[%s3 + $0x660] sm:$0xff]
      %v865 = vld [vmem:[%s3 + $0x668] sm:$0xff]
      %v866 = vld [vmem:[%s3 + $0x670] sm:$0xf]
      %v867 = vld [vmem:[%s3 + $0x674] sm:$0xff]
      %v868 = vld [vmem:[%s3 + $0x67c] sm:$0xff]
      %v869 = vld [vmem:[%s3 + $0x684] sm:$0xff]
      %v870 = vld [vmem:[%s3 + $0x68c] sm:$0xf]
      %v871 = vld [vmem:[%s3 + $0x690] sm:$0xff]
      %v872 = vld [vmem:[%s3 + $0x698] sm:$0xff]
      %v873 = vld [vmem:[%s3 + $0x6a0] sm:$0xff]
      %v874 = vld [vmem:[%s3 + $0x6a8] sm:$0xf]
      %v875 = vld [vmem:[%s3 + $0x6ac] sm:$0xff]
      %v876 = vld [vmem:[%s3 + $0x6b4] sm:$0xff]
      %v877 = vld [vmem:[%s3 + $0x6bc] sm:$0xff]
      %v878 = vld [vmem:[%s3 + $0x6c4] sm:$0xf]
      %v879 = vld [vmem:[%s3 + $0x6c8] sm:$0xff]
      %v880 = vld [vmem:[%s3 + $0x6d0] sm:$0xff]
      %v881 = vld [vmem:[%s3 + $0x6d8] sm:$0xff]
      %v882 = vld [vmem:[%s3 + $0x6e0] sm:$0xf]
      %v883 = vld [vmem:[%s3 + $0x6e4] sm:$0xff]
      %v884 = vld [vmem:[%s3 + $0x6ec] sm:$0xff]
      %v885 = vld [vmem:[%s3 + $0x6f4] sm:$0xff]
      %v886 = vld [vmem:[%s3 + $0x6fc] sm:$0xf]
      %v887 = vld [vmem:[%s4] sm:$0xff]
      %v889 = vperm.slane %v887, 0
      %v890 = vperm.slane %v887, 1
      %v891 = vperm.slane %v887, 2
      %v892 = vperm.slane %v887, 3
      %v893 = vperm.slane %v887, 4
      %v894 = vperm.slane %v887, 5
      %v895 = vperm.slane %v887, 6
      %v1159 = vunpack.c.l.b16 %v631
      %v1160 = vunpack.c.h.b16 %v631
      %v1161 = vunpack.c.l.b16 %v632
      %v1162 = vunpack.c.h.b16 %v632
      %v1163 = vunpack.c.l.b16 %v633
      %v1164 = vunpack.c.h.b16 %v633
      %v1165 = vunpack.c.l.b16 %v634
      %v1166 = vunpack.c.l.b16 %v635
      %v1167 = vunpack.c.h.b16 %v635
      %v1168 = vunpack.c.l.b16 %v636
      %v1169 = vunpack.c.h.b16 %v636
      %v1170 = vunpack.c.l.b16 %v637
      %v1171 = vunpack.c.h.b16 %v637
      %v1172 = vunpack.c.l.b16 %v638
      %v1173 = vunpack.c.l.b16 %v639
      %v1174 = vunpack.c.h.b16 %v639
      %v1175 = vunpack.c.l.b16 %v640
      %v1176 = vunpack.c.h.b16 %v640
      %v1177 = vunpack.c.l.b16 %v641
      %v1178 = vunpack.c.h.b16 %v641
      %v1179 = vunpack.c.l.b16 %v642
      %v1180 = vunpack.c.l.b16 %v643
      %v1181 = vunpack.c.h.b16 %v643
      %v1182 = vunpack.c.l.b16 %v644
      %v1183 = vunpack.c.h.b16 %v644
      %v1184 = vunpack.c.l.b16 %v645
      %v1185 = vunpack.c.h.b16 %v645
      %v1186 = vunpack.c.l.b16 %v646
      %v1187 = vunpack.c.l.b16 %v647
      %v1188 = vunpack.c.h.b16 %v647
      %v1189 = vunpack.c.l.b16 %v648
      %v1190 = vunpack.c.h.b16 %v648
      %v1191 = vunpack.c.l.b16 %v649
      %v1192 = vunpack.c.h.b16 %v649
      %v1193 = vunpack.c.l.b16 %v650
      %v1194 = vunpack.c.l.b16 %v651
      %v1195 = vunpack.c.h.b16 %v651
      %v1196 = vunpack.c.l.b16 %v652
      %v1197 = vunpack.c.h.b16 %v652
      %v1198 = vunpack.c.l.b16 %v653
      %v1199 = vunpack.c.h.b16 %v653
      %v1200 = vunpack.c.l.b16 %v654
      %v1201 = vunpack.c.l.b16 %v655
      %v1202 = vunpack.c.h.b16 %v655
      %v1203 = vunpack.c.l.b16 %v656
      %v1204 = vunpack.c.h.b16 %v656
      %v1205 = vunpack.c.l.b16 %v657
      %v1206 = vunpack.c.h.b16 %v657
      %v1207 = vunpack.c.l.b16 %v658
      %v1208 = vunpack.c.l.b16 %v659
      %v1209 = vunpack.c.h.b16 %v659
      %v1210 = vunpack.c.l.b16 %v660
      %v1211 = vunpack.c.h.b16 %v660
      %v1212 = vunpack.c.l.b16 %v661
      %v1213 = vunpack.c.h.b16 %v661
      %v1214 = vunpack.c.l.b16 %v662
      %v1215 = vunpack.c.l.b16 %v663
      %v1216 = vunpack.c.h.b16 %v663
      %v1217 = vunpack.c.l.b16 %v664
      %v1218 = vunpack.c.h.b16 %v664
      %v1219 = vunpack.c.l.b16 %v665
      %v1220 = vunpack.c.h.b16 %v665
      %v1221 = vunpack.c.l.b16 %v666
      %v1222 = vunpack.c.l.b16 %v667
      %v1223 = vunpack.c.h.b16 %v667
      %v1224 = vunpack.c.l.b16 %v668
      %v1225 = vunpack.c.h.b16 %v668
      %v1226 = vunpack.c.l.b16 %v669
      %v1227 = vunpack.c.h.b16 %v669
      %v1228 = vunpack.c.l.b16 %v670
      %v1229 = vunpack.c.l.b16 %v671
      %v1230 = vunpack.c.h.b16 %v671
      %v1231 = vunpack.c.l.b16 %v672
      %v1232 = vunpack.c.h.b16 %v672
      %v1233 = vunpack.c.l.b16 %v673
      %v1234 = vunpack.c.h.b16 %v673
      %v1235 = vunpack.c.l.b16 %v674
      %v1236 = vunpack.c.l.b16 %v675
      %v1237 = vunpack.c.h.b16 %v675
      %v1238 = vunpack.c.l.b16 %v676
      %v1239 = vunpack.c.h.b16 %v676
      %v1240 = vunpack.c.l.b16 %v677
      %v1241 = vunpack.c.h.b16 %v677
      %v1242 = vunpack.c.l.b16 %v678
      %v1243 = vunpack.c.l.b16 %v679
      %v1244 = vunpack.c.h.b16 %v679
      %v1245 = vunpack.c.l.b16 %v680
      %v1246 = vunpack.c.h.b16 %v680
      %v1247 = vunpack.c.l.b16 %v681
      %v1248 = vunpack.c.h.b16 %v681
      %v1249 = vunpack.c.l.b16 %v682
      %v1250 = vunpack.c.l.b16 %v683
      %v1251 = vunpack.c.h.b16 %v683
      %v1252 = vunpack.c.l.b16 %v684
      %v1253 = vunpack.c.h.b16 %v684
      %v1254 = vunpack.c.l.b16 %v685
      %v1255 = vunpack.c.h.b16 %v685
      %v1256 = vunpack.c.l.b16 %v686
      %v1257 = vunpack.c.l.b16 %v687
      %v1258 = vunpack.c.h.b16 %v687
      %v1259 = vunpack.c.l.b16 %v688
      %v1260 = vunpack.c.h.b16 %v688
      %v1261 = vunpack.c.l.b16 %v689
      %v1262 = vunpack.c.h.b16 %v689
      %v1263 = vunpack.c.l.b16 %v690
      %v1264 = vunpack.c.l.b16 %v691
      %v1265 = vunpack.c.h.b16 %v691
      %v1266 = vunpack.c.l.b16 %v692
      %v1267 = vunpack.c.h.b16 %v692
      %v1268 = vunpack.c.l.b16 %v693
      %v1269 = vunpack.c.h.b16 %v693
      %v1270 = vunpack.c.l.b16 %v694
      %v1271 = vunpack.c.l.b16 %v695
      %v1272 = vunpack.c.h.b16 %v695
      %v1273 = vunpack.c.l.b16 %v696
      %v1274 = vunpack.c.h.b16 %v696
      %v1275 = vunpack.c.l.b16 %v697
      %v1276 = vunpack.c.h.b16 %v697
      %v1277 = vunpack.c.l.b16 %v698
      %v1278 = vunpack.c.l.b16 %v699
      %v1279 = vunpack.c.h.b16 %v699
      %v1280 = vunpack.c.l.b16 %v700
      %v1281 = vunpack.c.h.b16 %v700
      %v1282 = vunpack.c.l.b16 %v701
      %v1283 = vunpack.c.h.b16 %v701
      %v1284 = vunpack.c.l.b16 %v702
      %v1285 = vunpack.c.l.b16 %v703
      %v1286 = vunpack.c.h.b16 %v703
      %v1287 = vunpack.c.l.b16 %v704
      %v1288 = vunpack.c.h.b16 %v704
      %v1289 = vunpack.c.l.b16 %v705
      %v1290 = vunpack.c.h.b16 %v705
      %v1291 = vunpack.c.l.b16 %v706
      %v1292 = vunpack.c.l.b16 %v707
      %v1293 = vunpack.c.h.b16 %v707
      %v1294 = vunpack.c.l.b16 %v708
      %v1295 = vunpack.c.h.b16 %v708
      %v1296 = vunpack.c.l.b16 %v709
      %v1297 = vunpack.c.h.b16 %v709
      %v1298 = vunpack.c.l.b16 %v710
      %v1299 = vunpack.c.l.b16 %v711
      %v1300 = vunpack.c.h.b16 %v711
      %v1301 = vunpack.c.l.b16 %v712
      %v1302 = vunpack.c.h.b16 %v712
      %v1303 = vunpack.c.l.b16 %v713
      %v1304 = vunpack.c.h.b16 %v713
      %v1305 = vunpack.c.l.b16 %v714
      %v1306 = vunpack.c.l.b16 %v715
      %v1307 = vunpack.c.h.b16 %v715
      %v1308 = vunpack.c.l.b16 %v716
      %v1309 = vunpack.c.h.b16 %v716
      %v1310 = vunpack.c.l.b16 %v717
      %v1311 = vunpack.c.h.b16 %v717
      %v1312 = vunpack.c.l.b16 %v718
      %v1313 = vunpack.c.l.b16 %v719
      %v1314 = vunpack.c.h.b16 %v719
      %v1315 = vunpack.c.l.b16 %v720
      %v1316 = vunpack.c.h.b16 %v720
      %v1317 = vunpack.c.l.b16 %v721
      %v1318 = vunpack.c.h.b16 %v721
      %v1319 = vunpack.c.l.b16 %v722
      %v1320 = vunpack.c.l.b16 %v723
      %v1321 = vunpack.c.h.b16 %v723
      %v1322 = vunpack.c.l.b16 %v724
      %v1323 = vunpack.c.h.b16 %v724
      %v1324 = vunpack.c.l.b16 %v725
      %v1325 = vunpack.c.h.b16 %v725
      %v1326 = vunpack.c.l.b16 %v726
      %v1327 = vunpack.c.l.b16 %v727
      %v1328 = vunpack.c.h.b16 %v727
      %v1329 = vunpack.c.l.b16 %v728
      %v1330 = vunpack.c.h.b16 %v728
      %v1331 = vunpack.c.l.b16 %v729
      %v1332 = vunpack.c.h.b16 %v729
      %v1333 = vunpack.c.l.b16 %v730
      %v1334 = vunpack.c.l.b16 %v731
      %v1335 = vunpack.c.h.b16 %v731
      %v1336 = vunpack.c.l.b16 %v732
      %v1337 = vunpack.c.h.b16 %v732
      %v1338 = vunpack.c.l.b16 %v733
      %v1339 = vunpack.c.h.b16 %v733
      %v1340 = vunpack.c.l.b16 %v734
      %v1341 = vunpack.c.l.b16 %v735
      %v1342 = vunpack.c.h.b16 %v735
      %v1343 = vunpack.c.l.b16 %v736
      %v1344 = vunpack.c.h.b16 %v736
      %v1345 = vunpack.c.l.b16 %v737
      %v1346 = vunpack.c.h.b16 %v737
      %v1347 = vunpack.c.l.b16 %v738
      %v1348 = vunpack.c.l.b16 %v739
      %v1349 = vunpack.c.h.b16 %v739
      %v1350 = vunpack.c.l.b16 %v740
      %v1351 = vunpack.c.h.b16 %v740
      %v1352 = vunpack.c.l.b16 %v741
      %v1353 = vunpack.c.h.b16 %v741
      %v1354 = vunpack.c.l.b16 %v742
      %v1355 = vunpack.c.l.b16 %v743
      %v1356 = vunpack.c.h.b16 %v743
      %v1357 = vunpack.c.l.b16 %v744
      %v1358 = vunpack.c.h.b16 %v744
      %v1359 = vunpack.c.l.b16 %v745
      %v1360 = vunpack.c.h.b16 %v745
      %v1361 = vunpack.c.l.b16 %v746
      %v1362 = vunpack.c.l.b16 %v747
      %v1363 = vunpack.c.h.b16 %v747
      %v1364 = vunpack.c.l.b16 %v748
      %v1365 = vunpack.c.h.b16 %v748
      %v1366 = vunpack.c.l.b16 %v749
      %v1367 = vunpack.c.h.b16 %v749
      %v1368 = vunpack.c.l.b16 %v750
      %v1369 = vunpack.c.l.b16 %v751
      %v1370 = vunpack.c.h.b16 %v751
      %v1371 = vunpack.c.l.b16 %v752
      %v1372 = vunpack.c.h.b16 %v752
      %v1373 = vunpack.c.l.b16 %v753
      %v1374 = vunpack.c.h.b16 %v753
      %v1375 = vunpack.c.l.b16 %v754
      %v1376 = vunpack.c.l.b16 %v755
      %v1377 = vunpack.c.h.b16 %v755
      %v1378 = vunpack.c.l.b16 %v756
      %v1379 = vunpack.c.h.b16 %v756
      %v1380 = vunpack.c.l.b16 %v757
      %v1381 = vunpack.c.h.b16 %v757
      %v1382 = vunpack.c.l.b16 %v758
      %v1383 = vunpack.c.l.b16 %v759
      %v1384 = vunpack.c.h.b16 %v759
      %v1385 = vunpack.c.l.b16 %v760
      %v1386 = vunpack.c.h.b16 %v760
      %v1387 = vunpack.c.l.b16 %v761
      %v1388 = vunpack.c.h.b16 %v761
      %v1389 = vunpack.c.l.b16 %v762
      %v1390 = vunpack.c.l.b16 %v763
      %v1391 = vunpack.c.h.b16 %v763
      %v1392 = vunpack.c.l.b16 %v764
      %v1393 = vunpack.c.h.b16 %v764
      %v1394 = vunpack.c.l.b16 %v765
      %v1395 = vunpack.c.h.b16 %v765
      %v1396 = vunpack.c.l.b16 %v766
      %v1397 = vunpack.c.l.b16 %v767
      %v1398 = vunpack.c.h.b16 %v767
      %v1399 = vunpack.c.l.b16 %v768
      %v1400 = vunpack.c.h.b16 %v768
      %v1401 = vunpack.c.l.b16 %v769
      %v1402 = vunpack.c.h.b16 %v769
      %v1403 = vunpack.c.l.b16 %v770
      %v1404 = vunpack.c.l.b16 %v771
      %v1405 = vunpack.c.h.b16 %v771
      %v1406 = vunpack.c.l.b16 %v772
      %v1407 = vunpack.c.h.b16 %v772
      %v1408 = vunpack.c.l.b16 %v773
      %v1409 = vunpack.c.h.b16 %v773
      %v1410 = vunpack.c.l.b16 %v774
      %v1411 = vunpack.c.l.b16 %v775
      %v1412 = vunpack.c.h.b16 %v775
      %v1413 = vunpack.c.l.b16 %v776
      %v1414 = vunpack.c.h.b16 %v776
      %v1415 = vunpack.c.l.b16 %v777
      %v1416 = vunpack.c.h.b16 %v777
      %v1417 = vunpack.c.l.b16 %v778
      %v1418 = vunpack.c.l.b16 %v779
      %v1419 = vunpack.c.h.b16 %v779
      %v1420 = vunpack.c.l.b16 %v780
      %v1421 = vunpack.c.h.b16 %v780
      %v1422 = vunpack.c.l.b16 %v781
      %v1423 = vunpack.c.h.b16 %v781
      %v1424 = vunpack.c.l.b16 %v782
      %v1425 = vunpack.c.l.b16 %v783
      %v1426 = vunpack.c.h.b16 %v783
      %v1427 = vunpack.c.l.b16 %v784
      %v1428 = vunpack.c.h.b16 %v784
      %v1429 = vunpack.c.l.b16 %v785
      %v1430 = vunpack.c.h.b16 %v785
      %v1431 = vunpack.c.l.b16 %v786
      %v1432 = vunpack.c.l.b16 %v787
      %v1433 = vunpack.c.h.b16 %v787
      %v1434 = vunpack.c.l.b16 %v788
      %v1435 = vunpack.c.h.b16 %v788
      %v1436 = vunpack.c.l.b16 %v789
      %v1437 = vunpack.c.h.b16 %v789
      %v1438 = vunpack.c.l.b16 %v790
      %v1439 = vunpack.c.l.b16 %v791
      %v1440 = vunpack.c.h.b16 %v791
      %v1441 = vunpack.c.l.b16 %v792
      %v1442 = vunpack.c.h.b16 %v792
      %v1443 = vunpack.c.l.b16 %v793
      %v1444 = vunpack.c.h.b16 %v793
      %v1445 = vunpack.c.l.b16 %v794
      %v1446 = vunpack.c.l.b16 %v795
      %v1447 = vunpack.c.h.b16 %v795
      %v1448 = vunpack.c.l.b16 %v796
      %v1449 = vunpack.c.h.b16 %v796
      %v1450 = vunpack.c.l.b16 %v797
      %v1451 = vunpack.c.h.b16 %v797
      %v1452 = vunpack.c.l.b16 %v798
      %v1453 = vunpack.c.l.b16 %v799
      %v1454 = vunpack.c.h.b16 %v799
      %v1455 = vunpack.c.l.b16 %v800
      %v1456 = vunpack.c.h.b16 %v800
      %v1457 = vunpack.c.l.b16 %v801
      %v1458 = vunpack.c.h.b16 %v801
      %v1459 = vunpack.c.l.b16 %v802
      %v1460 = vunpack.c.l.b16 %v803
      %v1461 = vunpack.c.h.b16 %v803
      %v1462 = vunpack.c.l.b16 %v804
      %v1463 = vunpack.c.h.b16 %v804
      %v1464 = vunpack.c.l.b16 %v805
      %v1465 = vunpack.c.h.b16 %v805
      %v1466 = vunpack.c.l.b16 %v806
      %v1467 = vunpack.c.l.b16 %v807
      %v1468 = vunpack.c.h.b16 %v807
      %v1469 = vunpack.c.l.b16 %v808
      %v1470 = vunpack.c.h.b16 %v808
      %v1471 = vunpack.c.l.b16 %v809
      %v1472 = vunpack.c.h.b16 %v809
      %v1473 = vunpack.c.l.b16 %v810
      %v1474 = vunpack.c.l.b16 %v811
      %v1475 = vunpack.c.h.b16 %v811
      %v1476 = vunpack.c.l.b16 %v812
      %v1477 = vunpack.c.h.b16 %v812
      %v1478 = vunpack.c.l.b16 %v813
      %v1479 = vunpack.c.h.b16 %v813
      %v1480 = vunpack.c.l.b16 %v814
      %v1481 = vunpack.c.l.b16 %v815
      %v1482 = vunpack.c.h.b16 %v815
      %v1483 = vunpack.c.l.b16 %v816
      %v1484 = vunpack.c.h.b16 %v816
      %v1485 = vunpack.c.l.b16 %v817
      %v1486 = vunpack.c.h.b16 %v817
      %v1487 = vunpack.c.l.b16 %v818
      %v1488 = vunpack.c.l.b16 %v819
      %v1489 = vunpack.c.h.b16 %v819
      %v1490 = vunpack.c.l.b16 %v820
      %v1491 = vunpack.c.h.b16 %v820
      %v1492 = vunpack.c.l.b16 %v821
      %v1493 = vunpack.c.h.b16 %v821
      %v1494 = vunpack.c.l.b16 %v822
      %v1495 = vunpack.c.l.b16 %v823
      %v1496 = vunpack.c.h.b16 %v823
      %v1497 = vunpack.c.l.b16 %v824
      %v1498 = vunpack.c.h.b16 %v824
      %v1499 = vunpack.c.l.b16 %v825
      %v1500 = vunpack.c.h.b16 %v825
      %v1501 = vunpack.c.l.b16 %v826
      %v1502 = vunpack.c.l.b16 %v827
      %v1503 = vunpack.c.h.b16 %v827
      %v1504 = vunpack.c.l.b16 %v828
      %v1505 = vunpack.c.h.b16 %v828
      %v1506 = vunpack.c.l.b16 %v829
      %v1507 = vunpack.c.h.b16 %v829
      %v1508 = vunpack.c.l.b16 %v830
      %v1509 = vunpack.c.l.b16 %v831
      %v1510 = vunpack.c.h.b16 %v831
      %v1511 = vunpack.c.l.b16 %v832
      %v1512 = vunpack.c.h.b16 %v832
      %v1513 = vunpack.c.l.b16 %v833
      %v1514 = vunpack.c.h.b16 %v833
      %v1515 = vunpack.c.l.b16 %v834
      %v1516 = vunpack.c.l.b16 %v835
      %v1517 = vunpack.c.h.b16 %v835
      %v1518 = vunpack.c.l.b16 %v836
      %v1519 = vunpack.c.h.b16 %v836
      %v1520 = vunpack.c.l.b16 %v837
      %v1521 = vunpack.c.h.b16 %v837
      %v1522 = vunpack.c.l.b16 %v838
      %v1523 = vunpack.c.l.b16 %v839
      %v1524 = vunpack.c.h.b16 %v839
      %v1525 = vunpack.c.l.b16 %v840
      %v1526 = vunpack.c.h.b16 %v840
      %v1527 = vunpack.c.l.b16 %v841
      %v1528 = vunpack.c.h.b16 %v841
      %v1529 = vunpack.c.l.b16 %v842
      %v1530 = vunpack.c.l.b16 %v843
      %v1531 = vunpack.c.h.b16 %v843
      %v1532 = vunpack.c.l.b16 %v844
      %v1533 = vunpack.c.h.b16 %v844
      %v1534 = vunpack.c.l.b16 %v845
      %v1535 = vunpack.c.h.b16 %v845
      %v1536 = vunpack.c.l.b16 %v846
      %v1537 = vunpack.c.l.b16 %v847
      %v1538 = vunpack.c.h.b16 %v847
      %v1539 = vunpack.c.l.b16 %v848
      %v1540 = vunpack.c.h.b16 %v848
      %v1541 = vunpack.c.l.b16 %v849
      %v1542 = vunpack.c.h.b16 %v849
      %v1543 = vunpack.c.l.b16 %v850
      %v1544 = vunpack.c.l.b16 %v851
      %v1545 = vunpack.c.h.b16 %v851
      %v1546 = vunpack.c.l.b16 %v852
      %v1547 = vunpack.c.h.b16 %v852
      %v1548 = vunpack.c.l.b16 %v853
      %v1549 = vunpack.c.h.b16 %v853
      %v1550 = vunpack.c.l.b16 %v854
      %v1551 = vunpack.c.l.b16 %v855
      %v1552 = vunpack.c.h.b16 %v855
      %v1553 = vunpack.c.l.b16 %v856
      %v1554 = vunpack.c.h.b16 %v856
      %v1555 = vunpack.c.l.b16 %v857
      %v1556 = vunpack.c.h.b16 %v857
      %v1557 = vunpack.c.l.b16 %v858
      %v1558 = vunpack.c.l.b16 %v859
      %v1559 = vunpack.c.h.b16 %v859
      %v1560 = vunpack.c.l.b16 %v860
      %v1561 = vunpack.c.h.b16 %v860
      %v1562 = vunpack.c.l.b16 %v861
      %v1563 = vunpack.c.h.b16 %v861
      %v1564 = vunpack.c.l.b16 %v862
      %v1565 = vunpack.c.l.b16 %v863
      %v1566 = vunpack.c.h.b16 %v863
      %v1567 = vunpack.c.l.b16 %v864
      %v1568 = vunpack.c.h.b16 %v864
      %v1569 = vunpack.c.l.b16 %v865
      %v1570 = vunpack.c.h.b16 %v865
      %v1571 = vunpack.c.l.b16 %v866
      %v1572 = vunpack.c.l.b16 %v867
      %v1573 = vunpack.c.h.b16 %v867
      %v1574 = vunpack.c.l.b16 %v868
      %v1575 = vunpack.c.h.b16 %v868
      %v1576 = vunpack.c.l.b16 %v869
      %v1577 = vunpack.c.h.b16 %v869
      %v1578 = vunpack.c.l.b16 %v870
      %v1579 = vunpack.c.l.b16 %v871
      %v1580 = vunpack.c.h.b16 %v871
      %v1581 = vunpack.c.l.b16 %v872
      %v1582 = vunpack.c.h.b16 %v872
      %v1583 = vunpack.c.l.b16 %v873
      %v1584 = vunpack.c.h.b16 %v873
      %v1585 = vunpack.c.l.b16 %v874
      %v1586 = vunpack.c.l.b16 %v875
      %v1587 = vunpack.c.h.b16 %v875
      %v1588 = vunpack.c.l.b16 %v876
      %v1589 = vunpack.c.h.b16 %v876
      %v1590 = vunpack.c.l.b16 %v877
      %v1591 = vunpack.c.h.b16 %v877
      %v1592 = vunpack.c.l.b16 %v878
      %v1593 = vunpack.c.l.b16 %v879
      %v1594 = vunpack.c.h.b16 %v879
      %v1595 = vunpack.c.l.b16 %v880
      %v1596 = vunpack.c.h.b16 %v880
      %v1597 = vunpack.c.l.b16 %v881
      %v1598 = vunpack.c.h.b16 %v881
      %v1599 = vunpack.c.l.b16 %v882
      %v1600 = vunpack.c.l.b16 %v883
      %v1601 = vunpack.c.h.b16 %v883
      %v1602 = vunpack.c.l.b16 %v884
      %v1603 = vunpack.c.h.b16 %v884
      %v1604 = vunpack.c.l.b16 %v885
      %v1605 = vunpack.c.h.b16 %v885
      %v1606 = vunpack.c.l.b16 %v886
      %v1607 = vpack.c.b16 %v1166, %v1159
      %v1608 = vpack.c.b16 %v1167, %v1160
      %v1609 = vpack.c.b16 %v1168, %v1161
      %v1610 = vpack.c.b16 %v1169, %v1162
      %v1611 = vpack.c.b16 %v1170, %v1163
      %v1612 = vpack.c.b16 %v1171, %v1164
      %v1613 = vpack.c.b16 %v1172, %v1165
      %v1614 = vpack.c.b16 %v1180, %v1173
      %v1615 = vpack.c.b16 %v1181, %v1174
      %v1616 = vpack.c.b16 %v1182, %v1175
      %v1617 = vpack.c.b16 %v1183, %v1176
      %v1618 = vpack.c.b16 %v1184, %v1177
      %v1619 = vpack.c.b16 %v1185, %v1178
      %v1620 = vpack.c.b16 %v1186, %v1179
      %v1621 = vpack.c.b16 %v1194, %v1187
      %v1622 = vpack.c.b16 %v1195, %v1188
      %v1623 = vpack.c.b16 %v1196, %v1189
      %v1624 = vpack.c.b16 %v1197, %v1190
      %v1625 = vpack.c.b16 %v1198, %v1191
      %v1626 = vpack.c.b16 %v1199, %v1192
      %v1627 = vpack.c.b16 %v1200, %v1193
      %v1628 = vpack.c.b16 %v1208, %v1201
      %v1629 = vpack.c.b16 %v1209, %v1202
      %v1630 = vpack.c.b16 %v1210, %v1203
      %v1631 = vpack.c.b16 %v1211, %v1204
      %v1632 = vpack.c.b16 %v1212, %v1205
      %v1633 = vpack.c.b16 %v1213, %v1206
      %v1634 = vpack.c.b16 %v1214, %v1207
      %v1635 = vpack.c.b16 %v1222, %v1215
      %v1636 = vpack.c.b16 %v1223, %v1216
      %v1637 = vpack.c.b16 %v1224, %v1217
      %v1638 = vpack.c.b16 %v1225, %v1218
      %v1639 = vpack.c.b16 %v1226, %v1219
      %v1640 = vpack.c.b16 %v1227, %v1220
      %v1641 = vpack.c.b16 %v1228, %v1221
      %v1642 = vpack.c.b16 %v1236, %v1229
      %v1643 = vpack.c.b16 %v1237, %v1230
      %v1644 = vpack.c.b16 %v1238, %v1231
      %v1645 = vpack.c.b16 %v1239, %v1232
      %v1646 = vpack.c.b16 %v1240, %v1233
      %v1647 = vpack.c.b16 %v1241, %v1234
      %v1648 = vpack.c.b16 %v1242, %v1235
      %v1649 = vpack.c.b16 %v1250, %v1243
      %v1650 = vpack.c.b16 %v1251, %v1244
      %v1651 = vpack.c.b16 %v1252, %v1245
      %v1652 = vpack.c.b16 %v1253, %v1246
      %v1653 = vpack.c.b16 %v1254, %v1247
      %v1654 = vpack.c.b16 %v1255, %v1248
      %v1655 = vpack.c.b16 %v1256, %v1249
      %v1656 = vpack.c.b16 %v1264, %v1257
      %v1657 = vpack.c.b16 %v1265, %v1258
      %v1658 = vpack.c.b16 %v1266, %v1259
      %v1659 = vpack.c.b16 %v1267, %v1260
      %v1660 = vpack.c.b16 %v1268, %v1261
      %v1661 = vpack.c.b16 %v1269, %v1262
      %v1662 = vpack.c.b16 %v1270, %v1263
      %v1663 = vpack.c.b16 %v1278, %v1271
      %v1664 = vpack.c.b16 %v1279, %v1272
      %v1665 = vpack.c.b16 %v1280, %v1273
      %v1666 = vpack.c.b16 %v1281, %v1274
      %v1667 = vpack.c.b16 %v1282, %v1275
      %v1668 = vpack.c.b16 %v1283, %v1276
      %v1669 = vpack.c.b16 %v1284, %v1277
      %v1670 = vpack.c.b16 %v1292, %v1285
      %v1671 = vpack.c.b16 %v1293, %v1286
      %v1672 = vpack.c.b16 %v1294, %v1287
      %v1673 = vpack.c.b16 %v1295, %v1288
      %v1674 = vpack.c.b16 %v1296, %v1289
      %v1675 = vpack.c.b16 %v1297, %v1290
      %v1676 = vpack.c.b16 %v1298, %v1291
      %v1677 = vpack.c.b16 %v1306, %v1299
      %v1678 = vpack.c.b16 %v1307, %v1300
      %v1679 = vpack.c.b16 %v1308, %v1301
      %v1680 = vpack.c.b16 %v1309, %v1302
      %v1681 = vpack.c.b16 %v1310, %v1303
      %v1682 = vpack.c.b16 %v1311, %v1304
      %v1683 = vpack.c.b16 %v1312, %v1305
      %v1684 = vpack.c.b16 %v1320, %v1313
      %v1685 = vpack.c.b16 %v1321, %v1314
      %v1686 = vpack.c.b16 %v1322, %v1315
      %v1687 = vpack.c.b16 %v1323, %v1316
      %v1688 = vpack.c.b16 %v1324, %v1317
      %v1689 = vpack.c.b16 %v1325, %v1318
      %v1690 = vpack.c.b16 %v1326, %v1319
      %v1691 = vpack.c.b16 %v1334, %v1327
      %v1692 = vpack.c.b16 %v1335, %v1328
      %v1693 = vpack.c.b16 %v1336, %v1329
      %v1694 = vpack.c.b16 %v1337, %v1330
      %v1695 = vpack.c.b16 %v1338, %v1331
      %v1696 = vpack.c.b16 %v1339, %v1332
      %v1697 = vpack.c.b16 %v1340, %v1333
      %v1698 = vpack.c.b16 %v1348, %v1341
      %v1699 = vpack.c.b16 %v1349, %v1342
      %v1700 = vpack.c.b16 %v1350, %v1343
      %v1701 = vpack.c.b16 %v1351, %v1344
      %v1702 = vpack.c.b16 %v1352, %v1345
      %v1703 = vpack.c.b16 %v1353, %v1346
      %v1704 = vpack.c.b16 %v1354, %v1347
      %v1705 = vpack.c.b16 %v1362, %v1355
      %v1706 = vpack.c.b16 %v1363, %v1356
      %v1707 = vpack.c.b16 %v1364, %v1357
      %v1708 = vpack.c.b16 %v1365, %v1358
      %v1709 = vpack.c.b16 %v1366, %v1359
      %v1710 = vpack.c.b16 %v1367, %v1360
      %v1711 = vpack.c.b16 %v1368, %v1361
      %v1712 = vpack.c.b16 %v1376, %v1369
      %v1713 = vpack.c.b16 %v1377, %v1370
      %v1714 = vpack.c.b16 %v1378, %v1371
      %v1715 = vpack.c.b16 %v1379, %v1372
      %v1716 = vpack.c.b16 %v1380, %v1373
      %v1717 = vpack.c.b16 %v1381, %v1374
      %v1718 = vpack.c.b16 %v1382, %v1375
      %v1719 = vpack.c.b16 %v1390, %v1383
      %v1720 = vpack.c.b16 %v1391, %v1384
      %v1721 = vpack.c.b16 %v1392, %v1385
      %v1722 = vpack.c.b16 %v1393, %v1386
      %v1723 = vpack.c.b16 %v1394, %v1387
      %v1724 = vpack.c.b16 %v1395, %v1388
      %v1725 = vpack.c.b16 %v1396, %v1389
      %v1726 = vpack.c.b16 %v1404, %v1397
      %v1727 = vpack.c.b16 %v1405, %v1398
      %v1728 = vpack.c.b16 %v1406, %v1399
      %v1729 = vpack.c.b16 %v1407, %v1400
      %v1730 = vpack.c.b16 %v1408, %v1401
      %v1731 = vpack.c.b16 %v1409, %v1402
      %v1732 = vpack.c.b16 %v1410, %v1403
      %v1733 = vpack.c.b16 %v1418, %v1411
      %v1734 = vpack.c.b16 %v1419, %v1412
      %v1735 = vpack.c.b16 %v1420, %v1413
      %v1736 = vpack.c.b16 %v1421, %v1414
      %v1737 = vpack.c.b16 %v1422, %v1415
      %v1738 = vpack.c.b16 %v1423, %v1416
      %v1739 = vpack.c.b16 %v1424, %v1417
      %v1740 = vpack.c.b16 %v1432, %v1425
      %v1741 = vpack.c.b16 %v1433, %v1426
      %v1742 = vpack.c.b16 %v1434, %v1427
      %v1743 = vpack.c.b16 %v1435, %v1428
      %v1744 = vpack.c.b16 %v1436, %v1429
      %v1745 = vpack.c.b16 %v1437, %v1430
      %v1746 = vpack.c.b16 %v1438, %v1431
      %v1747 = vpack.c.b16 %v1446, %v1439
      %v1748 = vpack.c.b16 %v1447, %v1440
      %v1749 = vpack.c.b16 %v1448, %v1441
      %v1750 = vpack.c.b16 %v1449, %v1442
      %v1751 = vpack.c.b16 %v1450, %v1443
      %v1752 = vpack.c.b16 %v1451, %v1444
      %v1753 = vpack.c.b16 %v1452, %v1445
      %v1754 = vpack.c.b16 %v1460, %v1453
      %v1755 = vpack.c.b16 %v1461, %v1454
      %v1756 = vpack.c.b16 %v1462, %v1455
      %v1757 = vpack.c.b16 %v1463, %v1456
      %v1758 = vpack.c.b16 %v1464, %v1457
      %v1759 = vpack.c.b16 %v1465, %v1458
      %v1760 = vpack.c.b16 %v1466, %v1459
      %v1761 = vpack.c.b16 %v1474, %v1467
      %v1762 = vpack.c.b16 %v1475, %v1468
      %v1763 = vpack.c.b16 %v1476, %v1469
      %v1764 = vpack.c.b16 %v1477, %v1470
      %v1765 = vpack.c.b16 %v1478, %v1471
      %v1766 = vpack.c.b16 %v1479, %v1472
      %v1767 = vpack.c.b16 %v1480, %v1473
      %v1768 = vpack.c.b16 %v1488, %v1481
      %v1769 = vpack.c.b16 %v1489, %v1482
      %v1770 = vpack.c.b16 %v1490, %v1483
      %v1771 = vpack.c.b16 %v1491, %v1484
      %v1772 = vpack.c.b16 %v1492, %v1485
      %v1773 = vpack.c.b16 %v1493, %v1486
      %v1774 = vpack.c.b16 %v1494, %v1487
      %v1775 = vpack.c.b16 %v1502, %v1495
      %v1776 = vpack.c.b16 %v1503, %v1496
      %v1777 = vpack.c.b16 %v1504, %v1497
      %v1778 = vpack.c.b16 %v1505, %v1498
      %v1779 = vpack.c.b16 %v1506, %v1499
      %v1780 = vpack.c.b16 %v1507, %v1500
      %v1781 = vpack.c.b16 %v1508, %v1501
      %v1782 = vpack.c.b16 %v1516, %v1509
      %v1783 = vpack.c.b16 %v1517, %v1510
      %v1784 = vpack.c.b16 %v1518, %v1511
      %v1785 = vpack.c.b16 %v1519, %v1512
      %v1786 = vpack.c.b16 %v1520, %v1513
      %v1787 = vpack.c.b16 %v1521, %v1514
      %v1788 = vpack.c.b16 %v1522, %v1515
      %v1789 = vpack.c.b16 %v1530, %v1523
      %v1790 = vpack.c.b16 %v1531, %v1524
      %v1791 = vpack.c.b16 %v1532, %v1525
      %v1792 = vpack.c.b16 %v1533, %v1526
      %v1793 = vpack.c.b16 %v1534, %v1527
      %v1794 = vpack.c.b16 %v1535, %v1528
      %v1795 = vpack.c.b16 %v1536, %v1529
      %v1796 = vpack.c.b16 %v1544, %v1537
      %v1797 = vpack.c.b16 %v1545, %v1538
      %v1798 = vpack.c.b16 %v1546, %v1539
      %v1799 = vpack.c.b16 %v1547, %v1540
      %v1800 = vpack.c.b16 %v1548, %v1541
      %v1801 = vpack.c.b16 %v1549, %v1542
      %v1802 = vpack.c.b16 %v1550, %v1543
      %v1803 = vpack.c.b16 %v1558, %v1551
      %v1804 = vpack.c.b16 %v1559, %v1552
      %v1805 = vpack.c.b16 %v1560, %v1553
      %v1806 = vpack.c.b16 %v1561, %v1554
      %v1807 = vpack.c.b16 %v1562, %v1555
      %v1808 = vpack.c.b16 %v1563, %v1556
      %v1809 = vpack.c.b16 %v1564, %v1557
      %v1810 = vpack.c.b16 %v1572, %v1565
      %v1811 = vpack.c.b16 %v1573, %v1566
      %v1812 = vpack.c.b16 %v1574, %v1567
      %v1813 = vpack.c.b16 %v1575, %v1568
      %v1814 = vpack.c.b16 %v1576, %v1569
      %v1815 = vpack.c.b16 %v1577, %v1570
      %v1816 = vpack.c.b16 %v1578, %v1571
      %v1817 = vpack.c.b16 %v1586, %v1579
      %v1818 = vpack.c.b16 %v1587, %v1580
      %v1819 = vpack.c.b16 %v1588, %v1581
      %v1820 = vpack.c.b16 %v1589, %v1582
      %v1821 = vpack.c.b16 %v1590, %v1583
      %v1822 = vpack.c.b16 %v1591, %v1584
      %v1823 = vpack.c.b16 %v1592, %v1585
      %v1824 = vpack.c.b16 %v1600, %v1593
      %v1825 = vpack.c.b16 %v1601, %v1594
      %v1826 = vpack.c.b16 %v1602, %v1595
      %v1827 = vpack.c.b16 %v1603, %v1596
      %v1828 = vpack.c.b16 %v1604, %v1597
      %v1829 = vpack.c.b16 %v1605, %v1598
      %v1830 = vpack.c.b16 %v1606, %v1599
      %2055 = vmatpush.bf16.msra.mxu0 %v1656
      %2056 = vmatpush.bf16.msra.mxu0 %v1649
      %2057 = vmatpush.bf16.msra.mxu0 %v1642
      %2058 = vmatpush.bf16.msra.mxu0 %v1635
      %2059 = vmatpush.bf16.msra.mxu0 %v1628
      %2060 = vmatpush.bf16.msra.mxu0 %v1621
      %2061 = vmatpush.bf16.msra.mxu0 %v1614
      %2062 = vmatpush.bf16.msra.mxu0 %v1607
      %2063 = vmatmul.bf16.gmra.mxu0 %v599
      %v2064 = vpop.f32.mrf.mxu0
      %v2065 = vadd.f32 %v889, %v2064
      %v2066 = vpop.f32.mrf.mxu0
      %v2067 = vadd.f32 %v889, %v2066
      %2068 = vmatmul.bf16.gmra.mxu0 %v603
      %v2069 = vpop.f32.mrf.mxu0
      %v2070 = vadd.f32 %v889, %v2069
      %v2071 = vpop.f32.mrf.mxu0
      %v2072 = vadd.f32 %v889, %v2071
      %2073 = vmatmul.bf16.gmra.mxu0 %v607
      %v2074 = vpop.f32.mrf.mxu0
      %v2075 = vadd.f32 %v889, %v2074
      %v2076 = vpop.f32.mrf.mxu0
      %v2077 = vadd.f32 %v889, %v2076
      %2078 = vmatmul.bf16.gmra.mxu0 %v611
      %v2079 = vpop.f32.mrf.mxu0
      %v2080 = vadd.f32 %v889, %v2079
      %v2081 = vpop.f32.mrf.mxu0
      %v2082 = vadd.f32 %v889, %v2081
      %2083 = vmatmul.bf16.gmra.mxu0 %v615
      %v2084 = vpop.f32.mrf.mxu0
      %v2085 = vadd.f32 %v889, %v2084
      %v2086 = vpop.f32.mrf.mxu0
      %v2087 = vadd.f32 %v889, %v2086
      %2088 = vmatmul.bf16.gmra.mxu0 %v619
      %v2089 = vpop.f32.mrf.mxu0
      %v2090 = vadd.f32 %v889, %v2089
      %v2091 = vpop.f32.mrf.mxu0
      %v2092 = vadd.f32 %v889, %v2091
      %2093 = vmatmul.bf16.gmra.mxu0 %v623
      %v2094 = vpop.f32.mrf.mxu0
      %v2095 = vadd.f32 %v889, %v2094
      %v2096 = vpop.f32.mrf.mxu0
      %v2097 = vadd.f32 %v889, %v2096
      %2098 = vmatmul.bf16.gmra.mxu0 %v627
      %v2099 = vpop.f32.mrf.mxu0
      %v2100 = vadd.f32 %v889, %v2099
      %v2101 = vpop.f32.mrf.mxu0
      %v2102 = vadd.f32 %v889, %v2101
      %2103 = vdwg.mxu0
      %2104 = vmatpush.bf16.msra.mxu0 %v1712
      %2105 = vmatpush.bf16.msra.mxu0 %v1705
      %2106 = vmatpush.bf16.msra.mxu0 %v1698
      %2107 = vmatpush.bf16.msra.mxu0 %v1691
      %2108 = vmatpush.bf16.msra.mxu0 %v1684
      %2109 = vmatpush.bf16.msra.mxu0 %v1677
      %2110 = vmatpush.bf16.msra.mxu0 %v1670
      %2111 = vmatpush.bf16.msra.mxu0 %v1663
      %2112 = vmatmul.bf16.gmra.mxu0 %v600
      %v2113 = vpop.f32.mrf.mxu0
      %v2114 = vadd.f32 %v2065, %v2113
      %v2115 = vpop.f32.mrf.mxu0
      %v2116 = vadd.f32 %v2067, %v2115
      %2117 = vmatmul.bf16.gmra.mxu0 %v604
      %v2118 = vpop.f32.mrf.mxu0
      %v2119 = vadd.f32 %v2070, %v2118
      %v2120 = vpop.f32.mrf.mxu0
      %v2121 = vadd.f32 %v2072, %v2120
      %2122 = vmatmul.bf16.gmra.mxu0 %v608
      %v2123 = vpop.f32.mrf.mxu0
      %v2124 = vadd.f32 %v2075, %v2123
      %v2125 = vpop.f32.mrf.mxu0
      %v2126 = vadd.f32 %v2077, %v2125
      %2127 = vmatmul.bf16.gmra.mxu0 %v612
      %v2128 = vpop.f32.mrf.mxu0
      %v2129 = vadd.f32 %v2080, %v2128
      %v2130 = vpop.f32.mrf.mxu0
      %v2131 = vadd.f32 %v2082, %v2130
      %2132 = vmatmul.bf16.gmra.mxu0 %v616
      %v2133 = vpop.f32.mrf.mxu0
      %v2134 = vadd.f32 %v2085, %v2133
      %v2135 = vpop.f32.mrf.mxu0
      %v2136 = vadd.f32 %v2087, %v2135
      %2137 = vmatmul.bf16.gmra.mxu0 %v620
      %v2138 = vpop.f32.mrf.mxu0
      %v2139 = vadd.f32 %v2090, %v2138
      %v2140 = vpop.f32.mrf.mxu0
      %v2141 = vadd.f32 %v2092, %v2140
      %2142 = vmatmul.bf16.gmra.mxu0 %v624
      %v2143 = vpop.f32.mrf.mxu0
      %v2144 = vadd.f32 %v2095, %v2143
      %v2145 = vpop.f32.mrf.mxu0
      %v2146 = vadd.f32 %v2097, %v2145
      %2147 = vmatmul.bf16.gmra.mxu0 %v628
      %v2148 = vpop.f32.mrf.mxu0
      %v2149 = vadd.f32 %v2100, %v2148
      %v2150 = vpop.f32.mrf.mxu0
      %v2151 = vadd.f32 %v2102, %v2150
      %2152 = vdwg.mxu0
      %2153 = vmatpush.bf16.msra.mxu0 %v1768
      %2154 = vmatpush.bf16.msra.mxu0 %v1761
      %2155 = vmatpush.bf16.msra.mxu0 %v1754
      %2156 = vmatpush.bf16.msra.mxu0 %v1747
      %2157 = vmatpush.bf16.msra.mxu0 %v1740
      %2158 = vmatpush.bf16.msra.mxu0 %v1733
      %2159 = vmatpush.bf16.msra.mxu0 %v1726
      %2160 = vmatpush.bf16.msra.mxu0 %v1719
      %2161 = vmatmul.bf16.gmra.mxu0 %v601
      %v2162 = vpop.f32.mrf.mxu0
      %v2163 = vadd.f32 %v2114, %v2162
      %v2164 = vpop.f32.mrf.mxu0
      %v2165 = vadd.f32 %v2116, %v2164
      %2166 = vmatmul.bf16.gmra.mxu0 %v605
      %v2167 = vpop.f32.mrf.mxu0
      %v2168 = vadd.f32 %v2119, %v2167
      %v2169 = vpop.f32.mrf.mxu0
      %v2170 = vadd.f32 %v2121, %v2169
      %2171 = vmatmul.bf16.gmra.mxu0 %v609
      %v2172 = vpop.f32.mrf.mxu0
      %v2173 = vadd.f32 %v2124, %v2172
      %v2174 = vpop.f32.mrf.mxu0
      %v2175 = vadd.f32 %v2126, %v2174
      %2176 = vmatmul.bf16.gmra.mxu0 %v613
      %v2177 = vpop.f32.mrf.mxu0
      %v2178 = vadd.f32 %v2129, %v2177
      %v2179 = vpop.f32.mrf.mxu0
      %v2180 = vadd.f32 %v2131, %v2179
      %2181 = vmatmul.bf16.gmra.mxu0 %v617
      %v2182 = vpop.f32.mrf.mxu0
      %v2183 = vadd.f32 %v2134, %v2182
      %v2184 = vpop.f32.mrf.mxu0
      %v2185 = vadd.f32 %v2136, %v2184
      %2186 = vmatmul.bf16.gmra.mxu0 %v621
      %v2187 = vpop.f32.mrf.mxu0
      %v2188 = vadd.f32 %v2139, %v2187
      %v2189 = vpop.f32.mrf.mxu0
      %v2190 = vadd.f32 %v2141, %v2189
      %2191 = vmatmul.bf16.gmra.mxu0 %v625
      %v2192 = vpop.f32.mrf.mxu0
      %v2193 = vadd.f32 %v2144, %v2192
      %v2194 = vpop.f32.mrf.mxu0
      %v2195 = vadd.f32 %v2146, %v2194
      %2196 = vmatmul.bf16.gmra.mxu0 %v629
      %v2197 = vpop.f32.mrf.mxu0
      %v2198 = vadd.f32 %v2149, %v2197
      %v2199 = vpop.f32.mrf.mxu0
      %v2200 = vadd.f32 %v2151, %v2199
      %2201 = vdwg.mxu0
      %2202 = vmatpush.bf16.msra.mxu0 %v1824
      %2203 = vmatpush.bf16.msra.mxu0 %v1817
      %2204 = vmatpush.bf16.msra.mxu0 %v1810
      %2205 = vmatpush.bf16.msra.mxu0 %v1803
      %2206 = vmatpush.bf16.msra.mxu0 %v1796
      %2207 = vmatpush.bf16.msra.mxu0 %v1789
      %2208 = vmatpush.bf16.msra.mxu0 %v1782
      %2209 = vmatpush.bf16.msra.mxu0 %v1775
      %2210 = vmatmul.bf16.gmra.mxu0 %v602
      %v2211 = vpop.f32.mrf.mxu0
      %v2212 = vadd.f32 %v2163, %v2211
      %v2213 = vpop.f32.mrf.mxu0
      %v2214 = vadd.f32 %v2165, %v2213
      %2215 = vmatmul.bf16.gmra.mxu0 %v606
      %v2216 = vpop.f32.mrf.mxu0
      %v2217 = vadd.f32 %v2168, %v2216
      %v2218 = vpop.f32.mrf.mxu0
      %v2219 = vadd.f32 %v2170, %v2218
      %2220 = vmatmul.bf16.gmra.mxu0 %v610
      %v2221 = vpop.f32.mrf.mxu0
      %v2222 = vadd.f32 %v2173, %v2221
      %v2223 = vpop.f32.mrf.mxu0
      %v2224 = vadd.f32 %v2175, %v2223
      %2225 = vmatmul.bf16.gmra.mxu0 %v614
      %v2226 = vpop.f32.mrf.mxu0
      %v2227 = vadd.f32 %v2178, %v2226
      %v2228 = vpop.f32.mrf.mxu0
      %v2229 = vadd.f32 %v2180, %v2228
      %2230 = vmatmul.bf16.gmra.mxu0 %v618
      %v2231 = vpop.f32.mrf.mxu0
      %v2232 = vadd.f32 %v2183, %v2231
      %v2233 = vpop.f32.mrf.mxu0
      %v2234 = vadd.f32 %v2185, %v2233
      %2235 = vmatmul.bf16.gmra.mxu0 %v622
      %v2236 = vpop.f32.mrf.mxu0
      %v2237 = vadd.f32 %v2188, %v2236
      %v2238 = vpop.f32.mrf.mxu0
      %v2239 = vadd.f32 %v2190, %v2238
      %2240 = vmatmul.bf16.gmra.mxu0 %v626
      %v2241 = vpop.f32.mrf.mxu0
      %v2242 = vadd.f32 %v2193, %v2241
      %v2243 = vpop.f32.mrf.mxu0
      %v2244 = vadd.f32 %v2195, %v2243
      %2245 = vmatmul.bf16.gmra.mxu0 %v630
      %v2246 = vpop.f32.mrf.mxu0
      %v2247 = vadd.f32 %v2198, %v2246
      %v2248 = vpop.f32.mrf.mxu0
      %v2249 = vadd.f32 %v2200, %v2248
      %2250 = vdwg.mxu0
      %2251 = vmatpush.bf16.msra.mxu0 %v1657
      %2252 = vmatpush.bf16.msra.mxu0 %v1650
      %2253 = vmatpush.bf16.msra.mxu0 %v1643
      %2254 = vmatpush.bf16.msra.mxu0 %v1636
      %2255 = vmatpush.bf16.msra.mxu0 %v1629
      %2256 = vmatpush.bf16.msra.mxu0 %v1622
      %2257 = vmatpush.bf16.msra.mxu0 %v1615
      %2258 = vmatpush.bf16.msra.mxu0 %v1608
      %2259 = vmatmul.bf16.gmra.mxu0 %v599
      %v2260 = vpop.f32.mrf.mxu0
      %v2261 = vadd.f32 %v890, %v2260
      %v2262 = vpop.f32.mrf.mxu0
      %v2263 = vadd.f32 %v890, %v2262
      %2264 = vmatmul.bf16.gmra.mxu0 %v603
      %v2265 = vpop.f32.mrf.mxu0
      %v2266 = vadd.f32 %v890, %v2265
      %v2267 = vpop.f32.mrf.mxu0
      %v2268 = vadd.f32 %v890, %v2267
      %2269 = vmatmul.bf16.gmra.mxu0 %v607
      %v2270 = vpop.f32.mrf.mxu0
      %v2271 = vadd.f32 %v890, %v2270
      %v2272 = vpop.f32.mrf.mxu0
      %v2273 = vadd.f32 %v890, %v2272
      %2274 = vmatmul.bf16.gmra.mxu0 %v611
      %v2275 = vpop.f32.mrf.mxu0
      %v2276 = vadd.f32 %v890, %v2275
      %v2277 = vpop.f32.mrf.mxu0
      %v2278 = vadd.f32 %v890, %v2277
      %2279 = vmatmul.bf16.gmra.mxu0 %v615
      %v2280 = vpop.f32.mrf.mxu0
      %v2281 = vadd.f32 %v890, %v2280
      %v2282 = vpop.f32.mrf.mxu0
      %v2283 = vadd.f32 %v890, %v2282
      %2284 = vmatmul.bf16.gmra.mxu0 %v619
      %v2285 = vpop.f32.mrf.mxu0
      %v2286 = vadd.f32 %v890, %v2285
      %v2287 = vpop.f32.mrf.mxu0
      %v2288 = vadd.f32 %v890, %v2287
      %2289 = vmatmul.bf16.gmra.mxu0 %v623
      %v2290 = vpop.f32.mrf.mxu0
      %v2291 = vadd.f32 %v890, %v2290
      %v2292 = vpop.f32.mrf.mxu0
      %v2293 = vadd.f32 %v890, %v2292
      %2294 = vmatmul.bf16.gmra.mxu0 %v627
      %v2295 = vpop.f32.mrf.mxu0
      %v2296 = vadd.f32 %v890, %v2295
      %v2297 = vpop.f32.mrf.mxu0
      %v2298 = vadd.f32 %v890, %v2297
      %2299 = vdwg.mxu0
      %2300 = vmatpush.bf16.msra.mxu0 %v1713
      %2301 = vmatpush.bf16.msra.mxu0 %v1706
      %2302 = vmatpush.bf16.msra.mxu0 %v1699
      %2303 = vmatpush.bf16.msra.mxu0 %v1692
      %2304 = vmatpush.bf16.msra.mxu0 %v1685
      %2305 = vmatpush.bf16.msra.mxu0 %v1678
      %2306 = vmatpush.bf16.msra.mxu0 %v1671
      %2307 = vmatpush.bf16.msra.mxu0 %v1664
      %2308 = vmatmul.bf16.gmra.mxu0 %v600
      %v2309 = vpop.f32.mrf.mxu0
      %v2310 = vadd.f32 %v2261, %v2309
      %v2311 = vpop.f32.mrf.mxu0
      %v2312 = vadd.f32 %v2263, %v2311
      %2313 = vmatmul.bf16.gmra.mxu0 %v604
      %v2314 = vpop.f32.mrf.mxu0
      %v2315 = vadd.f32 %v2266, %v2314
      %v2316 = vpop.f32.mrf.mxu0
      %v2317 = vadd.f32 %v2268, %v2316
      %2318 = vmatmul.bf16.gmra.mxu0 %v608
      %v2319 = vpop.f32.mrf.mxu0
      %v2320 = vadd.f32 %v2271, %v2319
      %v2321 = vpop.f32.mrf.mxu0
      %v2322 = vadd.f32 %v2273, %v2321
      %2323 = vmatmul.bf16.gmra.mxu0 %v612
      %v2324 = vpop.f32.mrf.mxu0
      %v2325 = vadd.f32 %v2276, %v2324
      %v2326 = vpop.f32.mrf.mxu0
      %v2327 = vadd.f32 %v2278, %v2326
      %2328 = vmatmul.bf16.gmra.mxu0 %v616
      %v2329 = vpop.f32.mrf.mxu0
      %v2330 = vadd.f32 %v2281, %v2329
      %v2331 = vpop.f32.mrf.mxu0
      %v2332 = vadd.f32 %v2283, %v2331
      %2333 = vmatmul.bf16.gmra.mxu0 %v620
      %v2334 = vpop.f32.mrf.mxu0
      %v2335 = vadd.f32 %v2286, %v2334
      %v2336 = vpop.f32.mrf.mxu0
      %v2337 = vadd.f32 %v2288, %v2336
      %2338 = vmatmul.bf16.gmra.mxu0 %v624
      %v2339 = vpop.f32.mrf.mxu0
      %v2340 = vadd.f32 %v2291, %v2339
      %v2341 = vpop.f32.mrf.mxu0
      %v2342 = vadd.f32 %v2293, %v2341
      %2343 = vmatmul.bf16.gmra.mxu0 %v628
      %v2344 = vpop.f32.mrf.mxu0
      %v2345 = vadd.f32 %v2296, %v2344
      %v2346 = vpop.f32.mrf.mxu0
      %v2347 = vadd.f32 %v2298, %v2346
      %2348 = vdwg.mxu0
      %2349 = vmatpush.bf16.msra.mxu0 %v1769
      %2350 = vmatpush.bf16.msra.mxu0 %v1762
      %2351 = vmatpush.bf16.msra.mxu0 %v1755
      %2352 = vmatpush.bf16.msra.mxu0 %v1748
      %2353 = vmatpush.bf16.msra.mxu0 %v1741
      %2354 = vmatpush.bf16.msra.mxu0 %v1734
      %2355 = vmatpush.bf16.msra.mxu0 %v1727
      %2356 = vmatpush.bf16.msra.mxu0 %v1720
      %2357 = vmatmul.bf16.gmra.mxu0 %v601
      %v2358 = vpop.f32.mrf.mxu0
      %v2359 = vadd.f32 %v2310, %v2358
      %v2360 = vpop.f32.mrf.mxu0
      %v2361 = vadd.f32 %v2312, %v2360
      %2362 = vmatmul.bf16.gmra.mxu0 %v605
      %v2363 = vpop.f32.mrf.mxu0
      %v2364 = vadd.f32 %v2315, %v2363
      %v2365 = vpop.f32.mrf.mxu0
      %v2366 = vadd.f32 %v2317, %v2365
      %2367 = vmatmul.bf16.gmra.mxu0 %v609
      %v2368 = vpop.f32.mrf.mxu0
      %v2369 = vadd.f32 %v2320, %v2368
      %v2370 = vpop.f32.mrf.mxu0
      %v2371 = vadd.f32 %v2322, %v2370
      %2372 = vmatmul.bf16.gmra.mxu0 %v613
      %v2373 = vpop.f32.mrf.mxu0
      %v2374 = vadd.f32 %v2325, %v2373
      %v2375 = vpop.f32.mrf.mxu0
      %v2376 = vadd.f32 %v2327, %v2375
      %2377 = vmatmul.bf16.gmra.mxu0 %v617
      %v2378 = vpop.f32.mrf.mxu0
      %v2379 = vadd.f32 %v2330, %v2378
      %v2380 = vpop.f32.mrf.mxu0
      %v2381 = vadd.f32 %v2332, %v2380
      %2382 = vmatmul.bf16.gmra.mxu0 %v621
      %v2383 = vpop.f32.mrf.mxu0
      %v2384 = vadd.f32 %v2335, %v2383
      %v2385 = vpop.f32.mrf.mxu0
      %v2386 = vadd.f32 %v2337, %v2385
      %2387 = vmatmul.bf16.gmra.mxu0 %v625
      %v2388 = vpop.f32.mrf.mxu0
      %v2389 = vadd.f32 %v2340, %v2388
      %v2390 = vpop.f32.mrf.mxu0
      %v2391 = vadd.f32 %v2342, %v2390
      %2392 = vmatmul.bf16.gmra.mxu0 %v629
      %v2393 = vpop.f32.mrf.mxu0
      %v2394 = vadd.f32 %v2345, %v2393
      %v2395 = vpop.f32.mrf.mxu0
      %v2396 = vadd.f32 %v2347, %v2395
      %2397 = vdwg.mxu0
      %2398 = vmatpush.bf16.msra.mxu0 %v1825
      %2399 = vmatpush.bf16.msra.mxu0 %v1818
      %2400 = vmatpush.bf16.msra.mxu0 %v1811
      %2401 = vmatpush.bf16.msra.mxu0 %v1804
      %2402 = vmatpush.bf16.msra.mxu0 %v1797
      %2403 = vmatpush.bf16.msra.mxu0 %v1790
      %2404 = vmatpush.bf16.msra.mxu0 %v1783
      %2405 = vmatpush.bf16.msra.mxu0 %v1776
      %2406 = vmatmul.bf16.gmra.mxu0 %v602
      %v2407 = vpop.f32.mrf.mxu0
      %v2408 = vadd.f32 %v2359, %v2407
      %v2409 = vpop.f32.mrf.mxu0
      %v2410 = vadd.f32 %v2361, %v2409
      %2411 = vmatmul.bf16.gmra.mxu0 %v606
      %v2412 = vpop.f32.mrf.mxu0
      %v2413 = vadd.f32 %v2364, %v2412
      %v2414 = vpop.f32.mrf.mxu0
      %v2415 = vadd.f32 %v2366, %v2414
      %2416 = vmatmul.bf16.gmra.mxu0 %v610
      %v2417 = vpop.f32.mrf.mxu0
      %v2418 = vadd.f32 %v2369, %v2417
      %v2419 = vpop.f32.mrf.mxu0
      %v2420 = vadd.f32 %v2371, %v2419
      %2421 = vmatmul.bf16.gmra.mxu0 %v614
      %v2422 = vpop.f32.mrf.mxu0
      %v2423 = vadd.f32 %v2374, %v2422
      %v2424 = vpop.f32.mrf.mxu0
      %v2425 = vadd.f32 %v2376, %v2424
      %2426 = vmatmul.bf16.gmra.mxu0 %v618
      %v2427 = vpop.f32.mrf.mxu0
      %v2428 = vadd.f32 %v2379, %v2427
      %v2429 = vpop.f32.mrf.mxu0
      %v2430 = vadd.f32 %v2381, %v2429
      %2431 = vmatmul.bf16.gmra.mxu0 %v622
      %v2432 = vpop.f32.mrf.mxu0
      %v2433 = vadd.f32 %v2384, %v2432
      %v2434 = vpop.f32.mrf.mxu0
      %v2435 = vadd.f32 %v2386, %v2434
      %2436 = vmatmul.bf16.gmra.mxu0 %v626
      %v2437 = vpop.f32.mrf.mxu0
      %v2438 = vadd.f32 %v2389, %v2437
      %v2439 = vpop.f32.mrf.mxu0
      %v2440 = vadd.f32 %v2391, %v2439
      %2441 = vmatmul.bf16.gmra.mxu0 %v630
      %v2442 = vpop.f32.mrf.mxu0
      %v2443 = vadd.f32 %v2394, %v2442
      %v2444 = vpop.f32.mrf.mxu0
      %v2445 = vadd.f32 %v2396, %v2444
      %2446 = vdwg.mxu0
      %2447 = vmatpush.bf16.msra.mxu0 %v1658
      %2448 = vmatpush.bf16.msra.mxu0 %v1651
      %2449 = vmatpush.bf16.msra.mxu0 %v1644
      %2450 = vmatpush.bf16.msra.mxu0 %v1637
      %2451 = vmatpush.bf16.msra.mxu0 %v1630
      %2452 = vmatpush.bf16.msra.mxu0 %v1623
      %2453 = vmatpush.bf16.msra.mxu0 %v1616
      %2454 = vmatpush.bf16.msra.mxu0 %v1609
      %2455 = vmatmul.bf16.gmra.mxu0 %v599
      %v2456 = vpop.f32.mrf.mxu0
      %v2457 = vadd.f32 %v891, %v2456
      %v2458 = vpop.f32.mrf.mxu0
      %v2459 = vadd.f32 %v891, %v2458
      %2460 = vmatmul.bf16.gmra.mxu0 %v603
      %v2461 = vpop.f32.mrf.mxu0
      %v2462 = vadd.f32 %v891, %v2461
      %v2463 = vpop.f32.mrf.mxu0
      %v2464 = vadd.f32 %v891, %v2463
      %2465 = vmatmul.bf16.gmra.mxu0 %v607
      %v2466 = vpop.f32.mrf.mxu0
      %v2467 = vadd.f32 %v891, %v2466
      %v2468 = vpop.f32.mrf.mxu0
      %v2469 = vadd.f32 %v891, %v2468
      %2470 = vmatmul.bf16.gmra.mxu0 %v611
      %v2471 = vpop.f32.mrf.mxu0
      %v2472 = vadd.f32 %v891, %v2471
      %v2473 = vpop.f32.mrf.mxu0
      %v2474 = vadd.f32 %v891, %v2473
      %2475 = vmatmul.bf16.gmra.mxu0 %v615
      %v2476 = vpop.f32.mrf.mxu0
      %v2477 = vadd.f32 %v891, %v2476
      %v2478 = vpop.f32.mrf.mxu0
      %v2479 = vadd.f32 %v891, %v2478
      %2480 = vmatmul.bf16.gmra.mxu0 %v619
      %v2481 = vpop.f32.mrf.mxu0
      %v2482 = vadd.f32 %v891, %v2481
      %v2483 = vpop.f32.mrf.mxu0
      %v2484 = vadd.f32 %v891, %v2483
      %2485 = vmatmul.bf16.gmra.mxu0 %v623
      %v2486 = vpop.f32.mrf.mxu0
      %v2487 = vadd.f32 %v891, %v2486
      %v2488 = vpop.f32.mrf.mxu0
      %v2489 = vadd.f32 %v891, %v2488
      %2490 = vmatmul.bf16.gmra.mxu0 %v627
      %v2491 = vpop.f32.mrf.mxu0
      %v2492 = vadd.f32 %v891, %v2491
      %v2493 = vpop.f32.mrf.mxu0
      %v2494 = vadd.f32 %v891, %v2493
      %2495 = vdwg.mxu0
      %2496 = vmatpush.bf16.msra.mxu0 %v1714
      %2497 = vmatpush.bf16.msra.mxu0 %v1707
      %2498 = vmatpush.bf16.msra.mxu0 %v1700
      %2499 = vmatpush.bf16.msra.mxu0 %v1693
      %2500 = vmatpush.bf16.msra.mxu0 %v1686
      %2501 = vmatpush.bf16.msra.mxu0 %v1679
      %2502 = vmatpush.bf16.msra.mxu0 %v1672
      %2503 = vmatpush.bf16.msra.mxu0 %v1665
      %2504 = vmatmul.bf16.gmra.mxu0 %v600
      %v2505 = vpop.f32.mrf.mxu0
      %v2506 = vadd.f32 %v2457, %v2505
      %v2507 = vpop.f32.mrf.mxu0
      %v2508 = vadd.f32 %v2459, %v2507
      %2509 = vmatmul.bf16.gmra.mxu0 %v604
      %v2510 = vpop.f32.mrf.mxu0
      %v2511 = vadd.f32 %v2462, %v2510
      %v2512 = vpop.f32.mrf.mxu0
      %v2513 = vadd.f32 %v2464, %v2512
      %2514 = vmatmul.bf16.gmra.mxu0 %v608
      %v2515 = vpop.f32.mrf.mxu0
      %v2516 = vadd.f32 %v2467, %v2515
      %v2517 = vpop.f32.mrf.mxu0
      %v2518 = vadd.f32 %v2469, %v2517
      %2519 = vmatmul.bf16.gmra.mxu0 %v612
      %v2520 = vpop.f32.mrf.mxu0
      %v2521 = vadd.f32 %v2472, %v2520
      %v2522 = vpop.f32.mrf.mxu0
      %v2523 = vadd.f32 %v2474, %v2522
      %2524 = vmatmul.bf16.gmra.mxu0 %v616
      %v2525 = vpop.f32.mrf.mxu0
      %v2526 = vadd.f32 %v2477, %v2525
      %v2527 = vpop.f32.mrf.mxu0
      %v2528 = vadd.f32 %v2479, %v2527
      %2529 = vmatmul.bf16.gmra.mxu0 %v620
      %v2530 = vpop.f32.mrf.mxu0
      %v2531 = vadd.f32 %v2482, %v2530
      %v2532 = vpop.f32.mrf.mxu0
      %v2533 = vadd.f32 %v2484, %v2532
      %2534 = vmatmul.bf16.gmra.mxu0 %v624
      %v2535 = vpop.f32.mrf.mxu0
      %v2536 = vadd.f32 %v2487, %v2535
      %v2537 = vpop.f32.mrf.mxu0
      %v2538 = vadd.f32 %v2489, %v2537
      %2539 = vmatmul.bf16.gmra.mxu0 %v628
      %v2540 = vpop.f32.mrf.mxu0
      %v2541 = vadd.f32 %v2492, %v2540
      %v2542 = vpop.f32.mrf.mxu0
      %v2543 = vadd.f32 %v2494, %v2542
      %2544 = vdwg.mxu0
      %2545 = vmatpush.bf16.msra.mxu0 %v1770
      %2546 = vmatpush.bf16.msra.mxu0 %v1763
      %2547 = vmatpush.bf16.msra.mxu0 %v1756
      %2548 = vmatpush.bf16.msra.mxu0 %v1749
      %2549 = vmatpush.bf16.msra.mxu0 %v1742
      %2550 = vmatpush.bf16.msra.mxu0 %v1735
      %2551 = vmatpush.bf16.msra.mxu0 %v1728
      %2552 = vmatpush.bf16.msra.mxu0 %v1721
      %2553 = vmatmul.bf16.gmra.mxu0 %v601
      %v2554 = vpop.f32.mrf.mxu0
      %v2555 = vadd.f32 %v2506, %v2554
      %v2556 = vpop.f32.mrf.mxu0
      %v2557 = vadd.f32 %v2508, %v2556
      %2558 = vmatmul.bf16.gmra.mxu0 %v605
      %v2559 = vpop.f32.mrf.mxu0
      %v2560 = vadd.f32 %v2511, %v2559
      %v2561 = vpop.f32.mrf.mxu0
      %v2562 = vadd.f32 %v2513, %v2561
      %2563 = vmatmul.bf16.gmra.mxu0 %v609
      %v2564 = vpop.f32.mrf.mxu0
      %v2565 = vadd.f32 %v2516, %v2564
      %v2566 = vpop.f32.mrf.mxu0
      %v2567 = vadd.f32 %v2518, %v2566
      %2568 = vmatmul.bf16.gmra.mxu0 %v613
      %v2569 = vpop.f32.mrf.mxu0
      %v2570 = vadd.f32 %v2521, %v2569
      %v2571 = vpop.f32.mrf.mxu0
      %v2572 = vadd.f32 %v2523, %v2571
      %2573 = vmatmul.bf16.gmra.mxu0 %v617
      %v2574 = vpop.f32.mrf.mxu0
      %v2575 = vadd.f32 %v2526, %v2574
      %v2576 = vpop.f32.mrf.mxu0
      %v2577 = vadd.f32 %v2528, %v2576
      %2578 = vmatmul.bf16.gmra.mxu0 %v621
      %v2579 = vpop.f32.mrf.mxu0
      %v2580 = vadd.f32 %v2531, %v2579
      %v2581 = vpop.f32.mrf.mxu0
      %v2582 = vadd.f32 %v2533, %v2581
      %2583 = vmatmul.bf16.gmra.mxu0 %v625
      %v2584 = vpop.f32.mrf.mxu0
      %v2585 = vadd.f32 %v2536, %v2584
      %v2586 = vpop.f32.mrf.mxu0
      %v2587 = vadd.f32 %v2538, %v2586
      %2588 = vmatmul.bf16.gmra.mxu0 %v629
      %v2589 = vpop.f32.mrf.mxu0
      %v2590 = vadd.f32 %v2541, %v2589
      %v2591 = vpop.f32.mrf.mxu0
      %v2592 = vadd.f32 %v2543, %v2591
      %2593 = vdwg.mxu0
      %2594 = vmatpush.bf16.msra.mxu0 %v1826
      %2595 = vmatpush.bf16.msra.mxu0 %v1819
      %2596 = vmatpush.bf16.msra.mxu0 %v1812
      %2597 = vmatpush.bf16.msra.mxu0 %v1805
      %2598 = vmatpush.bf16.msra.mxu0 %v1798
      %2599 = vmatpush.bf16.msra.mxu0 %v1791
      %2600 = vmatpush.bf16.msra.mxu0 %v1784
      %2601 = vmatpush.bf16.msra.mxu0 %v1777
      %2602 = vmatmul.bf16.gmra.mxu0 %v602
      %v2603 = vpop.f32.mrf.mxu0
      %v2604 = vadd.f32 %v2555, %v2603
      %v2605 = vpop.f32.mrf.mxu0
      %v2606 = vadd.f32 %v2557, %v2605
      %2607 = vmatmul.bf16.gmra.mxu0 %v606
      %v2608 = vpop.f32.mrf.mxu0
      %v2609 = vadd.f32 %v2560, %v2608
      %v2610 = vpop.f32.mrf.mxu0
      %v2611 = vadd.f32 %v2562, %v2610
      %2612 = vmatmul.bf16.gmra.mxu0 %v610
      %v2613 = vpop.f32.mrf.mxu0
      %v2614 = vadd.f32 %v2565, %v2613
      %v2615 = vpop.f32.mrf.mxu0
      %v2616 = vadd.f32 %v2567, %v2615
      %2617 = vmatmul.bf16.gmra.mxu0 %v614
      %v2618 = vpop.f32.mrf.mxu0
      %v2619 = vadd.f32 %v2570, %v2618
      %v2620 = vpop.f32.mrf.mxu0
      %v2621 = vadd.f32 %v2572, %v2620
      %2622 = vmatmul.bf16.gmra.mxu0 %v618
      %v2623 = vpop.f32.mrf.mxu0
      %v2624 = vadd.f32 %v2575, %v2623
      %v2625 = vpop.f32.mrf.mxu0
      %v2626 = vadd.f32 %v2577, %v2625
      %2627 = vmatmul.bf16.gmra.mxu0 %v622
      %v2628 = vpop.f32.mrf.mxu0
      %v2629 = vadd.f32 %v2580, %v2628
      %v2630 = vpop.f32.mrf.mxu0
      %v2631 = vadd.f32 %v2582, %v2630
      %2632 = vmatmul.bf16.gmra.mxu0 %v626
      %v2633 = vpop.f32.mrf.mxu0
      %v2634 = vadd.f32 %v2585, %v2633
      %v2635 = vpop.f32.mrf.mxu0
      %v2636 = vadd.f32 %v2587, %v2635
      %2637 = vmatmul.bf16.gmra.mxu0 %v630
      %v2638 = vpop.f32.mrf.mxu0
      %v2639 = vadd.f32 %v2590, %v2638
      %v2640 = vpop.f32.mrf.mxu0
      %v2641 = vadd.f32 %v2592, %v2640
      %2642 = vdwg.mxu0
      %2643 = vmatpush.bf16.msra.mxu0 %v1659
      %2644 = vmatpush.bf16.msra.mxu0 %v1652
      %2645 = vmatpush.bf16.msra.mxu0 %v1645
      %2646 = vmatpush.bf16.msra.mxu0 %v1638
      %2647 = vmatpush.bf16.msra.mxu0 %v1631
      %2648 = vmatpush.bf16.msra.mxu0 %v1624
      %2649 = vmatpush.bf16.msra.mxu0 %v1617
      %2650 = vmatpush.bf16.msra.mxu0 %v1610
      %2651 = vmatmul.bf16.gmra.mxu0 %v599
      %v2652 = vpop.f32.mrf.mxu0
      %v2653 = vadd.f32 %v892, %v2652
      %v2654 = vpop.f32.mrf.mxu0
      %v2655 = vadd.f32 %v892, %v2654
      %2656 = vmatmul.bf16.gmra.mxu0 %v603
      %v2657 = vpop.f32.mrf.mxu0
      %v2658 = vadd.f32 %v892, %v2657
      %v2659 = vpop.f32.mrf.mxu0
      %v2660 = vadd.f32 %v892, %v2659
      %2661 = vmatmul.bf16.gmra.mxu0 %v607
      %v2662 = vpop.f32.mrf.mxu0
      %v2663 = vadd.f32 %v892, %v2662
      %v2664 = vpop.f32.mrf.mxu0
      %v2665 = vadd.f32 %v892, %v2664
      %2666 = vmatmul.bf16.gmra.mxu0 %v611
      %v2667 = vpop.f32.mrf.mxu0
      %v2668 = vadd.f32 %v892, %v2667
      %v2669 = vpop.f32.mrf.mxu0
      %v2670 = vadd.f32 %v892, %v2669
      %2671 = vmatmul.bf16.gmra.mxu0 %v615
      %v2672 = vpop.f32.mrf.mxu0
      %v2673 = vadd.f32 %v892, %v2672
      %v2674 = vpop.f32.mrf.mxu0
      %v2675 = vadd.f32 %v892, %v2674
      %2676 = vmatmul.bf16.gmra.mxu0 %v619
      %v2677 = vpop.f32.mrf.mxu0
      %v2678 = vadd.f32 %v892, %v2677
      %v2679 = vpop.f32.mrf.mxu0
      %v2680 = vadd.f32 %v892, %v2679
      %2681 = vmatmul.bf16.gmra.mxu0 %v623
      %v2682 = vpop.f32.mrf.mxu0
      %v2683 = vadd.f32 %v892, %v2682
      %v2684 = vpop.f32.mrf.mxu0
      %v2685 = vadd.f32 %v892, %v2684
      %2686 = vmatmul.bf16.gmra.mxu0 %v627
      %v2687 = vpop.f32.mrf.mxu0
      %v2688 = vadd.f32 %v892, %v2687
      %v2689 = vpop.f32.mrf.mxu0
      %v2690 = vadd.f32 %v892, %v2689
      %2691 = vdwg.mxu0
      %2692 = vmatpush.bf16.msra.mxu0 %v1715
      %2693 = vmatpush.bf16.msra.mxu0 %v1708
      %2694 = vmatpush.bf16.msra.mxu0 %v1701
      %2695 = vmatpush.bf16.msra.mxu0 %v1694
      %2696 = vmatpush.bf16.msra.mxu0 %v1687
      %2697 = vmatpush.bf16.msra.mxu0 %v1680
      %2698 = vmatpush.bf16.msra.mxu0 %v1673
      %2699 = vmatpush.bf16.msra.mxu0 %v1666
      %2700 = vmatmul.bf16.gmra.mxu0 %v600
      %v2701 = vpop.f32.mrf.mxu0
      %v2702 = vadd.f32 %v2653, %v2701
      %v2703 = vpop.f32.mrf.mxu0
      %v2704 = vadd.f32 %v2655, %v2703
      %2705 = vmatmul.bf16.gmra.mxu0 %v604
      %v2706 = vpop.f32.mrf.mxu0
      %v2707 = vadd.f32 %v2658, %v2706
      %v2708 = vpop.f32.mrf.mxu0
      %v2709 = vadd.f32 %v2660, %v2708
      %2710 = vmatmul.bf16.gmra.mxu0 %v608
      %v2711 = vpop.f32.mrf.mxu0
      %v2712 = vadd.f32 %v2663, %v2711
      %v2713 = vpop.f32.mrf.mxu0
      %v2714 = vadd.f32 %v2665, %v2713
      %2715 = vmatmul.bf16.gmra.mxu0 %v612
      %v2716 = vpop.f32.mrf.mxu0
      %v2717 = vadd.f32 %v2668, %v2716
      %v2718 = vpop.f32.mrf.mxu0
      %v2719 = vadd.f32 %v2670, %v2718
      %2720 = vmatmul.bf16.gmra.mxu0 %v616
      %v2721 = vpop.f32.mrf.mxu0
      %v2722 = vadd.f32 %v2673, %v2721
      %v2723 = vpop.f32.mrf.mxu0
      %v2724 = vadd.f32 %v2675, %v2723
      %2725 = vmatmul.bf16.gmra.mxu0 %v620
      %v2726 = vpop.f32.mrf.mxu0
      %v2727 = vadd.f32 %v2678, %v2726
      %v2728 = vpop.f32.mrf.mxu0
      %v2729 = vadd.f32 %v2680, %v2728
      %2730 = vmatmul.bf16.gmra.mxu0 %v624
      %v2731 = vpop.f32.mrf.mxu0
      %v2732 = vadd.f32 %v2683, %v2731
      %v2733 = vpop.f32.mrf.mxu0
      %v2734 = vadd.f32 %v2685, %v2733
      %2735 = vmatmul.bf16.gmra.mxu0 %v628
      %v2736 = vpop.f32.mrf.mxu0
      %v2737 = vadd.f32 %v2688, %v2736
      %v2738 = vpop.f32.mrf.mxu0
      %v2739 = vadd.f32 %v2690, %v2738
      %2740 = vdwg.mxu0
      %2741 = vmatpush.bf16.msra.mxu0 %v1771
      %2742 = vmatpush.bf16.msra.mxu0 %v1764
      %2743 = vmatpush.bf16.msra.mxu0 %v1757
      %2744 = vmatpush.bf16.msra.mxu0 %v1750
      %2745 = vmatpush.bf16.msra.mxu0 %v1743
      %2746 = vmatpush.bf16.msra.mxu0 %v1736
      %2747 = vmatpush.bf16.msra.mxu0 %v1729
      %2748 = vmatpush.bf16.msra.mxu0 %v1722
      %2749 = vmatmul.bf16.gmra.mxu0 %v601
      %v2750 = vpop.f32.mrf.mxu0
      %v2751 = vadd.f32 %v2702, %v2750
      %v2752 = vpop.f32.mrf.mxu0
      %v2753 = vadd.f32 %v2704, %v2752
      %2754 = vmatmul.bf16.gmra.mxu0 %v605
      %v2755 = vpop.f32.mrf.mxu0
      %v2756 = vadd.f32 %v2707, %v2755
      %v2757 = vpop.f32.mrf.mxu0
      %v2758 = vadd.f32 %v2709, %v2757
      %2759 = vmatmul.bf16.gmra.mxu0 %v609
      %v2760 = vpop.f32.mrf.mxu0
      %v2761 = vadd.f32 %v2712, %v2760
      %v2762 = vpop.f32.mrf.mxu0
      %v2763 = vadd.f32 %v2714, %v2762
      %2764 = vmatmul.bf16.gmra.mxu0 %v613
      %v2765 = vpop.f32.mrf.mxu0
      %v2766 = vadd.f32 %v2717, %v2765
      %v2767 = vpop.f32.mrf.mxu0
      %v2768 = vadd.f32 %v2719, %v2767
      %2769 = vmatmul.bf16.gmra.mxu0 %v617
      %v2770 = vpop.f32.mrf.mxu0
      %v2771 = vadd.f32 %v2722, %v2770
      %v2772 = vpop.f32.mrf.mxu0
      %v2773 = vadd.f32 %v2724, %v2772
      %2774 = vmatmul.bf16.gmra.mxu0 %v621
      %v2775 = vpop.f32.mrf.mxu0
      %v2776 = vadd.f32 %v2727, %v2775
      %v2777 = vpop.f32.mrf.mxu0
      %v2778 = vadd.f32 %v2729, %v2777
      %2779 = vmatmul.bf16.gmra.mxu0 %v625
      %v2780 = vpop.f32.mrf.mxu0
      %v2781 = vadd.f32 %v2732, %v2780
      %v2782 = vpop.f32.mrf.mxu0
      %v2783 = vadd.f32 %v2734, %v2782
      %2784 = vmatmul.bf16.gmra.mxu0 %v629
      %v2785 = vpop.f32.mrf.mxu0
      %v2786 = vadd.f32 %v2737, %v2785
      %v2787 = vpop.f32.mrf.mxu0
      %v2788 = vadd.f32 %v2739, %v2787
      %2789 = vdwg.mxu0
      %2790 = vmatpush.bf16.msra.mxu0 %v1827
      %2791 = vmatpush.bf16.msra.mxu0 %v1820
      %2792 = vmatpush.bf16.msra.mxu0 %v1813
      %2793 = vmatpush.bf16.msra.mxu0 %v1806
      %2794 = vmatpush.bf16.msra.mxu0 %v1799
      %2795 = vmatpush.bf16.msra.mxu0 %v1792
      %2796 = vmatpush.bf16.msra.mxu0 %v1785
      %2797 = vmatpush.bf16.msra.mxu0 %v1778
      %2798 = vmatmul.bf16.gmra.mxu0 %v602
      %v2799 = vpop.f32.mrf.mxu0
      %v2800 = vadd.f32 %v2751, %v2799
      %v2801 = vpop.f32.mrf.mxu0
      %v2802 = vadd.f32 %v2753, %v2801
      %2803 = vmatmul.bf16.gmra.mxu0 %v606
      %v2804 = vpop.f32.mrf.mxu0
      %v2805 = vadd.f32 %v2756, %v2804
      %v2806 = vpop.f32.mrf.mxu0
      %v2807 = vadd.f32 %v2758, %v2806
      %2808 = vmatmul.bf16.gmra.mxu0 %v610
      %v2809 = vpop.f32.mrf.mxu0
      %v2810 = vadd.f32 %v2761, %v2809
      %v2811 = vpop.f32.mrf.mxu0
      %v2812 = vadd.f32 %v2763, %v2811
      %2813 = vmatmul.bf16.gmra.mxu0 %v614
      %v2814 = vpop.f32.mrf.mxu0
      %v2815 = vadd.f32 %v2766, %v2814
      %v2816 = vpop.f32.mrf.mxu0
      %v2817 = vadd.f32 %v2768, %v2816
      %2818 = vmatmul.bf16.gmra.mxu0 %v618
      %v2819 = vpop.f32.mrf.mxu0
      %v2820 = vadd.f32 %v2771, %v2819
      %v2821 = vpop.f32.mrf.mxu0
      %v2822 = vadd.f32 %v2773, %v2821
      %2823 = vmatmul.bf16.gmra.mxu0 %v622
      %v2824 = vpop.f32.mrf.mxu0
      %v2825 = vadd.f32 %v2776, %v2824
      %v2826 = vpop.f32.mrf.mxu0
      %v2827 = vadd.f32 %v2778, %v2826
      %2828 = vmatmul.bf16.gmra.mxu0 %v626
      %v2829 = vpop.f32.mrf.mxu0
      %v2830 = vadd.f32 %v2781, %v2829
      %v2831 = vpop.f32.mrf.mxu0
      %v2832 = vadd.f32 %v2783, %v2831
      %2833 = vmatmul.bf16.gmra.mxu0 %v630
      %v2834 = vpop.f32.mrf.mxu0
      %v2835 = vadd.f32 %v2786, %v2834
      %v2836 = vpop.f32.mrf.mxu0
      %v2837 = vadd.f32 %v2788, %v2836
      %2838 = vdwg.mxu0
      %2839 = vmatpush.bf16.msra.mxu0 %v1660
      %2840 = vmatpush.bf16.msra.mxu0 %v1653
      %2841 = vmatpush.bf16.msra.mxu0 %v1646
      %2842 = vmatpush.bf16.msra.mxu0 %v1639
      %2843 = vmatpush.bf16.msra.mxu0 %v1632
      %2844 = vmatpush.bf16.msra.mxu0 %v1625
      %2845 = vmatpush.bf16.msra.mxu0 %v1618
      %2846 = vmatpush.bf16.msra.mxu0 %v1611
      %2847 = vmatmul.bf16.gmra.mxu0 %v599
      %v2848 = vpop.f32.mrf.mxu0
      %v2849 = vadd.f32 %v893, %v2848
      %v2850 = vpop.f32.mrf.mxu0
      %v2851 = vadd.f32 %v893, %v2850
      %2852 = vmatmul.bf16.gmra.mxu0 %v603
      %v2853 = vpop.f32.mrf.mxu0
      %v2854 = vadd.f32 %v893, %v2853
      %v2855 = vpop.f32.mrf.mxu0
      %v2856 = vadd.f32 %v893, %v2855
      %2857 = vmatmul.bf16.gmra.mxu0 %v607
      %v2858 = vpop.f32.mrf.mxu0
      %v2859 = vadd.f32 %v893, %v2858
      %v2860 = vpop.f32.mrf.mxu0
      %v2861 = vadd.f32 %v893, %v2860
      %2862 = vmatmul.bf16.gmra.mxu0 %v611
      %v2863 = vpop.f32.mrf.mxu0
      %v2864 = vadd.f32 %v893, %v2863
      %v2865 = vpop.f32.mrf.mxu0
      %v2866 = vadd.f32 %v893, %v2865
      %2867 = vmatmul.bf16.gmra.mxu0 %v615
      %v2868 = vpop.f32.mrf.mxu0
      %v2869 = vadd.f32 %v893, %v2868
      %v2870 = vpop.f32.mrf.mxu0
      %v2871 = vadd.f32 %v893, %v2870
      %2872 = vmatmul.bf16.gmra.mxu0 %v619
      %v2873 = vpop.f32.mrf.mxu0
      %v2874 = vadd.f32 %v893, %v2873
      %v2875 = vpop.f32.mrf.mxu0
      %v2876 = vadd.f32 %v893, %v2875
      %2877 = vmatmul.bf16.gmra.mxu0 %v623
      %v2878 = vpop.f32.mrf.mxu0
      %v2879 = vadd.f32 %v893, %v2878
      %v2880 = vpop.f32.mrf.mxu0
      %v2881 = vadd.f32 %v893, %v2880
      %2882 = vmatmul.bf16.gmra.mxu0 %v627
      %v2883 = vpop.f32.mrf.mxu0
      %v2884 = vadd.f32 %v893, %v2883
      %v2885 = vpop.f32.mrf.mxu0
      %v2886 = vadd.f32 %v893, %v2885
      %2887 = vdwg.mxu0
      %2888 = vmatpush.bf16.msra.mxu0 %v1716
      %2889 = vmatpush.bf16.msra.mxu0 %v1709
      %2890 = vmatpush.bf16.msra.mxu0 %v1702
      %2891 = vmatpush.bf16.msra.mxu0 %v1695
      %2892 = vmatpush.bf16.msra.mxu0 %v1688
      %2893 = vmatpush.bf16.msra.mxu0 %v1681
      %2894 = vmatpush.bf16.msra.mxu0 %v1674
      %2895 = vmatpush.bf16.msra.mxu0 %v1667
      %2896 = vmatmul.bf16.gmra.mxu0 %v600
      %v2897 = vpop.f32.mrf.mxu0
      %v2898 = vadd.f32 %v2849, %v2897
      %v2899 = vpop.f32.mrf.mxu0
      %v2900 = vadd.f32 %v2851, %v2899
      %2901 = vmatmul.bf16.gmra.mxu0 %v604
      %v2902 = vpop.f32.mrf.mxu0
      %v2903 = vadd.f32 %v2854, %v2902
      %v2904 = vpop.f32.mrf.mxu0
      %v2905 = vadd.f32 %v2856, %v2904
      %2906 = vmatmul.bf16.gmra.mxu0 %v608
      %v2907 = vpop.f32.mrf.mxu0
      %v2908 = vadd.f32 %v2859, %v2907
      %v2909 = vpop.f32.mrf.mxu0
      %v2910 = vadd.f32 %v2861, %v2909
      %2911 = vmatmul.bf16.gmra.mxu0 %v612
      %v2912 = vpop.f32.mrf.mxu0
      %v2913 = vadd.f32 %v2864, %v2912
      %v2914 = vpop.f32.mrf.mxu0
      %v2915 = vadd.f32 %v2866, %v2914
      %2916 = vmatmul.bf16.gmra.mxu0 %v616
      %v2917 = vpop.f32.mrf.mxu0
      %v2918 = vadd.f32 %v2869, %v2917
      %v2919 = vpop.f32.mrf.mxu0
      %v2920 = vadd.f32 %v2871, %v2919
      %2921 = vmatmul.bf16.gmra.mxu0 %v620
      %v2922 = vpop.f32.mrf.mxu0
      %v2923 = vadd.f32 %v2874, %v2922
      %v2924 = vpop.f32.mrf.mxu0
      %v2925 = vadd.f32 %v2876, %v2924
      %2926 = vmatmul.bf16.gmra.mxu0 %v624
      %v2927 = vpop.f32.mrf.mxu0
      %v2928 = vadd.f32 %v2879, %v2927
      %v2929 = vpop.f32.mrf.mxu0
      %v2930 = vadd.f32 %v2881, %v2929
      %2931 = vmatmul.bf16.gmra.mxu0 %v628
      %v2932 = vpop.f32.mrf.mxu0
      %v2933 = vadd.f32 %v2884, %v2932
      %v2934 = vpop.f32.mrf.mxu0
      %v2935 = vadd.f32 %v2886, %v2934
      %2936 = vdwg.mxu0
      %2937 = vmatpush.bf16.msra.mxu0 %v1772
      %2938 = vmatpush.bf16.msra.mxu0 %v1765
      %2939 = vmatpush.bf16.msra.mxu0 %v1758
      %2940 = vmatpush.bf16.msra.mxu0 %v1751
      %2941 = vmatpush.bf16.msra.mxu0 %v1744
      %2942 = vmatpush.bf16.msra.mxu0 %v1737
      %2943 = vmatpush.bf16.msra.mxu0 %v1730
      %2944 = vmatpush.bf16.msra.mxu0 %v1723
      %2945 = vmatmul.bf16.gmra.mxu0 %v601
      %v2946 = vpop.f32.mrf.mxu0
      %v2947 = vadd.f32 %v2898, %v2946
      %v2948 = vpop.f32.mrf.mxu0
      %v2949 = vadd.f32 %v2900, %v2948
      %2950 = vmatmul.bf16.gmra.mxu0 %v605
      %v2951 = vpop.f32.mrf.mxu0
      %v2952 = vadd.f32 %v2903, %v2951
      %v2953 = vpop.f32.mrf.mxu0
      %v2954 = vadd.f32 %v2905, %v2953
      %2955 = vmatmul.bf16.gmra.mxu0 %v609
      %v2956 = vpop.f32.mrf.mxu0
      %v2957 = vadd.f32 %v2908, %v2956
      %v2958 = vpop.f32.mrf.mxu0
      %v2959 = vadd.f32 %v2910, %v2958
      %2960 = vmatmul.bf16.gmra.mxu0 %v613
      %v2961 = vpop.f32.mrf.mxu0
      %v2962 = vadd.f32 %v2913, %v2961
      %v2963 = vpop.f32.mrf.mxu0
      %v2964 = vadd.f32 %v2915, %v2963
      %2965 = vmatmul.bf16.gmra.mxu0 %v617
      %v2966 = vpop.f32.mrf.mxu0
      %v2967 = vadd.f32 %v2918, %v2966
      %v2968 = vpop.f32.mrf.mxu0
      %v2969 = vadd.f32 %v2920, %v2968
      %2970 = vmatmul.bf16.gmra.mxu0 %v621
      %v2971 = vpop.f32.mrf.mxu0
      %v2972 = vadd.f32 %v2923, %v2971
      %v2973 = vpop.f32.mrf.mxu0
      %v2974 = vadd.f32 %v2925, %v2973
      %2975 = vmatmul.bf16.gmra.mxu0 %v625
      %v2976 = vpop.f32.mrf.mxu0
      %v2977 = vadd.f32 %v2928, %v2976
      %v2978 = vpop.f32.mrf.mxu0
      %v2979 = vadd.f32 %v2930, %v2978
      %2980 = vmatmul.bf16.gmra.mxu0 %v629
      %v2981 = vpop.f32.mrf.mxu0
      %v2982 = vadd.f32 %v2933, %v2981
      %v2983 = vpop.f32.mrf.mxu0
      %v2984 = vadd.f32 %v2935, %v2983
      %2985 = vdwg.mxu0
      %2986 = vmatpush.bf16.msra.mxu0 %v1828
      %2987 = vmatpush.bf16.msra.mxu0 %v1821
      %2988 = vmatpush.bf16.msra.mxu0 %v1814
      %2989 = vmatpush.bf16.msra.mxu0 %v1807
      %2990 = vmatpush.bf16.msra.mxu0 %v1800
      %2991 = vmatpush.bf16.msra.mxu0 %v1793
      %2992 = vmatpush.bf16.msra.mxu0 %v1786
      %2993 = vmatpush.bf16.msra.mxu0 %v1779
      %2994 = vmatmul.bf16.gmra.mxu0 %v602
      %v2995 = vpop.f32.mrf.mxu0
      %v2996 = vadd.f32 %v2947, %v2995
      %v2997 = vpop.f32.mrf.mxu0
      %v2998 = vadd.f32 %v2949, %v2997
      %2999 = vmatmul.bf16.gmra.mxu0 %v606
      %v3000 = vpop.f32.mrf.mxu0
      %v3001 = vadd.f32 %v2952, %v3000
      %v3002 = vpop.f32.mrf.mxu0
      %v3003 = vadd.f32 %v2954, %v3002
      %3004 = vmatmul.bf16.gmra.mxu0 %v610
      %v3005 = vpop.f32.mrf.mxu0
      %v3006 = vadd.f32 %v2957, %v3005
      %v3007 = vpop.f32.mrf.mxu0
      %v3008 = vadd.f32 %v2959, %v3007
      %3009 = vmatmul.bf16.gmra.mxu0 %v614
      %v3010 = vpop.f32.mrf.mxu0
      %v3011 = vadd.f32 %v2962, %v3010
      %v3012 = vpop.f32.mrf.mxu0
      %v3013 = vadd.f32 %v2964, %v3012
      %3014 = vmatmul.bf16.gmra.mxu0 %v618
      %v3015 = vpop.f32.mrf.mxu0
      %v3016 = vadd.f32 %v2967, %v3015
      %v3017 = vpop.f32.mrf.mxu0
      %v3018 = vadd.f32 %v2969, %v3017
      %3019 = vmatmul.bf16.gmra.mxu0 %v622
      %v3020 = vpop.f32.mrf.mxu0
      %v3021 = vadd.f32 %v2972, %v3020
      %v3022 = vpop.f32.mrf.mxu0
      %v3023 = vadd.f32 %v2974, %v3022
      %3024 = vmatmul.bf16.gmra.mxu0 %v626
      %v3025 = vpop.f32.mrf.mxu0
      %v3026 = vadd.f32 %v2977, %v3025
      %v3027 = vpop.f32.mrf.mxu0
      %v3028 = vadd.f32 %v2979, %v3027
      %3029 = vmatmul.bf16.gmra.mxu0 %v630
      %v3030 = vpop.f32.mrf.mxu0
      %v3031 = vadd.f32 %v2982, %v3030
      %v3032 = vpop.f32.mrf.mxu0
      %v3033 = vadd.f32 %v2984, %v3032
      %3034 = vdwg.mxu0
      %3035 = vmatpush.bf16.msra.mxu0 %v1661
      %3036 = vmatpush.bf16.msra.mxu0 %v1654
      %3037 = vmatpush.bf16.msra.mxu0 %v1647
      %3038 = vmatpush.bf16.msra.mxu0 %v1640
      %3039 = vmatpush.bf16.msra.mxu0 %v1633
      %3040 = vmatpush.bf16.msra.mxu0 %v1626
      %3041 = vmatpush.bf16.msra.mxu0 %v1619
      %3042 = vmatpush.bf16.msra.mxu0 %v1612
      %3043 = vmatmul.bf16.gmra.mxu0 %v599
      %v3044 = vpop.f32.mrf.mxu0
      %v3045 = vadd.f32 %v894, %v3044
      %v3046 = vpop.f32.mrf.mxu0
      %v3047 = vadd.f32 %v894, %v3046
      %3048 = vmatmul.bf16.gmra.mxu0 %v603
      %v3049 = vpop.f32.mrf.mxu0
      %v3050 = vadd.f32 %v894, %v3049
      %v3051 = vpop.f32.mrf.mxu0
      %v3052 = vadd.f32 %v894, %v3051
      %3053 = vmatmul.bf16.gmra.mxu0 %v607
      %v3054 = vpop.f32.mrf.mxu0
      %v3055 = vadd.f32 %v894, %v3054
      %v3056 = vpop.f32.mrf.mxu0
      %v3057 = vadd.f32 %v894, %v3056
      %3058 = vmatmul.bf16.gmra.mxu0 %v611
      %v3059 = vpop.f32.mrf.mxu0
      %v3060 = vadd.f32 %v894, %v3059
      %v3061 = vpop.f32.mrf.mxu0
      %v3062 = vadd.f32 %v894, %v3061
      %3063 = vmatmul.bf16.gmra.mxu0 %v615
      %v3064 = vpop.f32.mrf.mxu0
      %v3065 = vadd.f32 %v894, %v3064
      %v3066 = vpop.f32.mrf.mxu0
      %v3067 = vadd.f32 %v894, %v3066
      %3068 = vmatmul.bf16.gmra.mxu0 %v619
      %v3069 = vpop.f32.mrf.mxu0
      %v3070 = vadd.f32 %v894, %v3069
      %v3071 = vpop.f32.mrf.mxu0
      %v3072 = vadd.f32 %v894, %v3071
      %3073 = vmatmul.bf16.gmra.mxu0 %v623
      %v3074 = vpop.f32.mrf.mxu0
      %v3075 = vadd.f32 %v894, %v3074
      %v3076 = vpop.f32.mrf.mxu0
      %v3077 = vadd.f32 %v894, %v3076
      %3078 = vmatmul.bf16.gmra.mxu0 %v627
      %v3079 = vpop.f32.mrf.mxu0
      %v3080 = vadd.f32 %v894, %v3079
      %v3081 = vpop.f32.mrf.mxu0
      %v3082 = vadd.f32 %v894, %v3081
      %3083 = vdwg.mxu0
      %3084 = vmatpush.bf16.msra.mxu0 %v1717
      %3085 = vmatpush.bf16.msra.mxu0 %v1710
      %3086 = vmatpush.bf16.msra.mxu0 %v1703
      %3087 = vmatpush.bf16.msra.mxu0 %v1696
      %3088 = vmatpush.bf16.msra.mxu0 %v1689
      %3089 = vmatpush.bf16.msra.mxu0 %v1682
      %3090 = vmatpush.bf16.msra.mxu0 %v1675
      %3091 = vmatpush.bf16.msra.mxu0 %v1668
      %3092 = vmatmul.bf16.gmra.mxu0 %v600
      %v3093 = vpop.f32.mrf.mxu0
      %v3094 = vadd.f32 %v3045, %v3093
      %v3095 = vpop.f32.mrf.mxu0
      %v3096 = vadd.f32 %v3047, %v3095
      %3097 = vmatmul.bf16.gmra.mxu0 %v604
      %v3098 = vpop.f32.mrf.mxu0
      %v3099 = vadd.f32 %v3050, %v3098
      %v3100 = vpop.f32.mrf.mxu0
      %v3101 = vadd.f32 %v3052, %v3100
      %3102 = vmatmul.bf16.gmra.mxu0 %v608
      %v3103 = vpop.f32.mrf.mxu0
      %v3104 = vadd.f32 %v3055, %v3103
      %v3105 = vpop.f32.mrf.mxu0
      %v3106 = vadd.f32 %v3057, %v3105
      %3107 = vmatmul.bf16.gmra.mxu0 %v612
      %v3108 = vpop.f32.mrf.mxu0
      %v3109 = vadd.f32 %v3060, %v3108
      %v3110 = vpop.f32.mrf.mxu0
      %v3111 = vadd.f32 %v3062, %v3110
      %3112 = vmatmul.bf16.gmra.mxu0 %v616
      %v3113 = vpop.f32.mrf.mxu0
      %v3114 = vadd.f32 %v3065, %v3113
      %v3115 = vpop.f32.mrf.mxu0
      %v3116 = vadd.f32 %v3067, %v3115
      %3117 = vmatmul.bf16.gmra.mxu0 %v620
      %v3118 = vpop.f32.mrf.mxu0
      %v3119 = vadd.f32 %v3070, %v3118
      %v3120 = vpop.f32.mrf.mxu0
      %v3121 = vadd.f32 %v3072, %v3120
      %3122 = vmatmul.bf16.gmra.mxu0 %v624
      %v3123 = vpop.f32.mrf.mxu0
      %v3124 = vadd.f32 %v3075, %v3123
      %v3125 = vpop.f32.mrf.mxu0
      %v3126 = vadd.f32 %v3077, %v3125
      %3127 = vmatmul.bf16.gmra.mxu0 %v628
      %v3128 = vpop.f32.mrf.mxu0
      %v3129 = vadd.f32 %v3080, %v3128
      %v3130 = vpop.f32.mrf.mxu0
      %v3131 = vadd.f32 %v3082, %v3130
      %3132 = vdwg.mxu0
      %3133 = vmatpush.bf16.msra.mxu0 %v1773
      %3134 = vmatpush.bf16.msra.mxu0 %v1766
      %3135 = vmatpush.bf16.msra.mxu0 %v1759
      %3136 = vmatpush.bf16.msra.mxu0 %v1752
      %3137 = vmatpush.bf16.msra.mxu0 %v1745
      %3138 = vmatpush.bf16.msra.mxu0 %v1738
      %3139 = vmatpush.bf16.msra.mxu0 %v1731
      %3140 = vmatpush.bf16.msra.mxu0 %v1724
      %3141 = vmatmul.bf16.gmra.mxu0 %v601
      %v3142 = vpop.f32.mrf.mxu0
      %v3143 = vadd.f32 %v3094, %v3142
      %v3144 = vpop.f32.mrf.mxu0
      %v3145 = vadd.f32 %v3096, %v3144
      %3146 = vmatmul.bf16.gmra.mxu0 %v605
      %v3147 = vpop.f32.mrf.mxu0
      %v3148 = vadd.f32 %v3099, %v3147
      %v3149 = vpop.f32.mrf.mxu0
      %v3150 = vadd.f32 %v3101, %v3149
      %3151 = vmatmul.bf16.gmra.mxu0 %v609
      %v3152 = vpop.f32.mrf.mxu0
      %v3153 = vadd.f32 %v3104, %v3152
      %v3154 = vpop.f32.mrf.mxu0
      %v3155 = vadd.f32 %v3106, %v3154
      %3156 = vmatmul.bf16.gmra.mxu0 %v613
      %v3157 = vpop.f32.mrf.mxu0
      %v3158 = vadd.f32 %v3109, %v3157
      %v3159 = vpop.f32.mrf.mxu0
      %v3160 = vadd.f32 %v3111, %v3159
      %3161 = vmatmul.bf16.gmra.mxu0 %v617
      %v3162 = vpop.f32.mrf.mxu0
      %v3163 = vadd.f32 %v3114, %v3162
      %v3164 = vpop.f32.mrf.mxu0
      %v3165 = vadd.f32 %v3116, %v3164
      %3166 = vmatmul.bf16.gmra.mxu0 %v621
      %v3167 = vpop.f32.mrf.mxu0
      %v3168 = vadd.f32 %v3119, %v3167
      %v3169 = vpop.f32.mrf.mxu0
      %v3170 = vadd.f32 %v3121, %v3169
      %3171 = vmatmul.bf16.gmra.mxu0 %v625
      %v3172 = vpop.f32.mrf.mxu0
      %v3173 = vadd.f32 %v3124, %v3172
      %v3174 = vpop.f32.mrf.mxu0
      %v3175 = vadd.f32 %v3126, %v3174
      %3176 = vmatmul.bf16.gmra.mxu0 %v629
      %v3177 = vpop.f32.mrf.mxu0
      %v3178 = vadd.f32 %v3129, %v3177
      %v3179 = vpop.f32.mrf.mxu0
      %v3180 = vadd.f32 %v3131, %v3179
      %3181 = vdwg.mxu0
      %3182 = vmatpush.bf16.msra.mxu0 %v1829
      %3183 = vmatpush.bf16.msra.mxu0 %v1822
      %3184 = vmatpush.bf16.msra.mxu0 %v1815
      %3185 = vmatpush.bf16.msra.mxu0 %v1808
      %3186 = vmatpush.bf16.msra.mxu0 %v1801
      %3187 = vmatpush.bf16.msra.mxu0 %v1794
      %3188 = vmatpush.bf16.msra.mxu0 %v1787
      %3189 = vmatpush.bf16.msra.mxu0 %v1780
      %3190 = vmatmul.bf16.gmra.mxu0 %v602
      %v3191 = vpop.f32.mrf.mxu0
      %v3192 = vadd.f32 %v3143, %v3191
      %v3193 = vpop.f32.mrf.mxu0
      %v3194 = vadd.f32 %v3145, %v3193
      %3195 = vmatmul.bf16.gmra.mxu0 %v606
      %v3196 = vpop.f32.mrf.mxu0
      %v3197 = vadd.f32 %v3148, %v3196
      %v3198 = vpop.f32.mrf.mxu0
      %v3199 = vadd.f32 %v3150, %v3198
      %3200 = vmatmul.bf16.gmra.mxu0 %v610
      %v3201 = vpop.f32.mrf.mxu0
      %v3202 = vadd.f32 %v3153, %v3201
      %v3203 = vpop.f32.mrf.mxu0
      %v3204 = vadd.f32 %v3155, %v3203
      %3205 = vmatmul.bf16.gmra.mxu0 %v614
      %v3206 = vpop.f32.mrf.mxu0
      %v3207 = vadd.f32 %v3158, %v3206
      %v3208 = vpop.f32.mrf.mxu0
      %v3209 = vadd.f32 %v3160, %v3208
      %3210 = vmatmul.bf16.gmra.mxu0 %v618
      %v3211 = vpop.f32.mrf.mxu0
      %v3212 = vadd.f32 %v3163, %v3211
      %v3213 = vpop.f32.mrf.mxu0
      %v3214 = vadd.f32 %v3165, %v3213
      %3215 = vmatmul.bf16.gmra.mxu0 %v622
      %v3216 = vpop.f32.mrf.mxu0
      %v3217 = vadd.f32 %v3168, %v3216
      %v3218 = vpop.f32.mrf.mxu0
      %v3219 = vadd.f32 %v3170, %v3218
      %3220 = vmatmul.bf16.gmra.mxu0 %v626
      %v3221 = vpop.f32.mrf.mxu0
      %v3222 = vadd.f32 %v3173, %v3221
      %v3223 = vpop.f32.mrf.mxu0
      %v3224 = vadd.f32 %v3175, %v3223
      %3225 = vmatmul.bf16.gmra.mxu0 %v630
      %v3226 = vpop.f32.mrf.mxu0
      %v3227 = vadd.f32 %v3178, %v3226
      %v3228 = vpop.f32.mrf.mxu0
      %v3229 = vadd.f32 %v3180, %v3228
      %3230 = vdwg.mxu0
      %3231 = vmatpush.bf16.msra.mxu0 %v1662
      %3232 = vmatpush.bf16.msra.mxu0 %v1655
      %3233 = vmatpush.bf16.msra.mxu0 %v1648
      %3234 = vmatpush.bf16.msra.mxu0 %v1641
      %3235 = vmatpush.bf16.msra.mxu0 %v1634
      %3236 = vmatpush.bf16.msra.mxu0 %v1627
      %3237 = vmatpush.bf16.msra.mxu0 %v1620
      %3238 = vmatpush.bf16.msra.mxu0 %v1613
      %3239 = vmatmul.bf16.gmra.mxu0 %v599
      %v3240 = vpop.f32.mrf.mxu0
      %v3241 = vadd.f32 %v895, %v3240
      %v3242 = vpop.f32.mrf.mxu0
      %v3243 = vadd.f32 %v895, %v3242
      %3244 = vmatmul.bf16.gmra.mxu0 %v603
      %v3245 = vpop.f32.mrf.mxu0
      %v3246 = vadd.f32 %v895, %v3245
      %v3247 = vpop.f32.mrf.mxu0
      %v3248 = vadd.f32 %v895, %v3247
      %3249 = vmatmul.bf16.gmra.mxu0 %v607
      %v3250 = vpop.f32.mrf.mxu0
      %v3251 = vadd.f32 %v895, %v3250
      %v3252 = vpop.f32.mrf.mxu0
      %v3253 = vadd.f32 %v895, %v3252
      %3254 = vmatmul.bf16.gmra.mxu0 %v611
      %v3255 = vpop.f32.mrf.mxu0
      %v3256 = vadd.f32 %v895, %v3255
      %v3257 = vpop.f32.mrf.mxu0
      %v3258 = vadd.f32 %v895, %v3257
      %3259 = vmatmul.bf16.gmra.mxu0 %v615
      %v3260 = vpop.f32.mrf.mxu0
      %v3261 = vadd.f32 %v895, %v3260
      %v3262 = vpop.f32.mrf.mxu0
      %v3263 = vadd.f32 %v895, %v3262
      %3264 = vmatmul.bf16.gmra.mxu0 %v619
      %v3265 = vpop.f32.mrf.mxu0
      %v3266 = vadd.f32 %v895, %v3265
      %v3267 = vpop.f32.mrf.mxu0
      %v3268 = vadd.f32 %v895, %v3267
      %3269 = vmatmul.bf16.gmra.mxu0 %v623
      %v3270 = vpop.f32.mrf.mxu0
      %v3271 = vadd.f32 %v895, %v3270
      %v3272 = vpop.f32.mrf.mxu0
      %v3273 = vadd.f32 %v895, %v3272
      %3274 = vmatmul.bf16.gmra.mxu0 %v627
      %v3275 = vpop.f32.mrf.mxu0
      %v3276 = vadd.f32 %v895, %v3275
      %v3277 = vpop.f32.mrf.mxu0
      %v3278 = vadd.f32 %v895, %v3277
      %3279 = vdwg.mxu0
      %3280 = vmatpush.bf16.msra.mxu0 %v1718
      %3281 = vmatpush.bf16.msra.mxu0 %v1711
      %3282 = vmatpush.bf16.msra.mxu0 %v1704
      %3283 = vmatpush.bf16.msra.mxu0 %v1697
      %3284 = vmatpush.bf16.msra.mxu0 %v1690
      %3285 = vmatpush.bf16.msra.mxu0 %v1683
      %3286 = vmatpush.bf16.msra.mxu0 %v1676
      %3287 = vmatpush.bf16.msra.mxu0 %v1669
      %3288 = vmatmul.bf16.gmra.mxu0 %v600
      %v3289 = vpop.f32.mrf.mxu0
      %v3290 = vadd.f32 %v3241, %v3289
      %v3291 = vpop.f32.mrf.mxu0
      %v3292 = vadd.f32 %v3243, %v3291
      %3293 = vmatmul.bf16.gmra.mxu0 %v604
      %v3294 = vpop.f32.mrf.mxu0
      %v3295 = vadd.f32 %v3246, %v3294
      %v3296 = vpop.f32.mrf.mxu0
      %v3297 = vadd.f32 %v3248, %v3296
      %3298 = vmatmul.bf16.gmra.mxu0 %v608
      %v3299 = vpop.f32.mrf.mxu0
      %v3300 = vadd.f32 %v3251, %v3299
      %v3301 = vpop.f32.mrf.mxu0
      %v3302 = vadd.f32 %v3253, %v3301
      %3303 = vmatmul.bf16.gmra.mxu0 %v612
      %v3304 = vpop.f32.mrf.mxu0
      %v3305 = vadd.f32 %v3256, %v3304
      %v3306 = vpop.f32.mrf.mxu0
      %v3307 = vadd.f32 %v3258, %v3306
      %3308 = vmatmul.bf16.gmra.mxu0 %v616
      %v3309 = vpop.f32.mrf.mxu0
      %v3310 = vadd.f32 %v3261, %v3309
      %v3311 = vpop.f32.mrf.mxu0
      %v3312 = vadd.f32 %v3263, %v3311
      %3313 = vmatmul.bf16.gmra.mxu0 %v620
      %v3314 = vpop.f32.mrf.mxu0
      %v3315 = vadd.f32 %v3266, %v3314
      %v3316 = vpop.f32.mrf.mxu0
      %v3317 = vadd.f32 %v3268, %v3316
      %3318 = vmatmul.bf16.gmra.mxu0 %v624
      %v3319 = vpop.f32.mrf.mxu0
      %v3320 = vadd.f32 %v3271, %v3319
      %v3321 = vpop.f32.mrf.mxu0
      %v3322 = vadd.f32 %v3273, %v3321
      %3323 = vmatmul.bf16.gmra.mxu0 %v628
      %v3324 = vpop.f32.mrf.mxu0
      %v3325 = vadd.f32 %v3276, %v3324
      %v3326 = vpop.f32.mrf.mxu0
      %v3327 = vadd.f32 %v3278, %v3326
      %3328 = vdwg.mxu0
      %3329 = vmatpush.bf16.msra.mxu0 %v1774
      %3330 = vmatpush.bf16.msra.mxu0 %v1767
      %3331 = vmatpush.bf16.msra.mxu0 %v1760
      %3332 = vmatpush.bf16.msra.mxu0 %v1753
      %3333 = vmatpush.bf16.msra.mxu0 %v1746
      %3334 = vmatpush.bf16.msra.mxu0 %v1739
      %3335 = vmatpush.bf16.msra.mxu0 %v1732
      %3336 = vmatpush.bf16.msra.mxu0 %v1725
      %3337 = vmatmul.bf16.gmra.mxu0 %v601
      %v3338 = vpop.f32.mrf.mxu0
      %v3339 = vadd.f32 %v3290, %v3338
      %v3340 = vpop.f32.mrf.mxu0
      %v3341 = vadd.f32 %v3292, %v3340
      %3342 = vmatmul.bf16.gmra.mxu0 %v605
      %v3343 = vpop.f32.mrf.mxu0
      %v3344 = vadd.f32 %v3295, %v3343
      %v3345 = vpop.f32.mrf.mxu0
      %v3346 = vadd.f32 %v3297, %v3345
      %3347 = vmatmul.bf16.gmra.mxu0 %v609
      %v3348 = vpop.f32.mrf.mxu0
      %v3349 = vadd.f32 %v3300, %v3348
      %v3350 = vpop.f32.mrf.mxu0
      %v3351 = vadd.f32 %v3302, %v3350
      %3352 = vmatmul.bf16.gmra.mxu0 %v613
      %v3353 = vpop.f32.mrf.mxu0
      %v3354 = vadd.f32 %v3305, %v3353
      %v3355 = vpop.f32.mrf.mxu0
      %v3356 = vadd.f32 %v3307, %v3355
      %3357 = vmatmul.bf16.gmra.mxu0 %v617
      %v3358 = vpop.f32.mrf.mxu0
      %v3359 = vadd.f32 %v3310, %v3358
      %v3360 = vpop.f32.mrf.mxu0
      %v3361 = vadd.f32 %v3312, %v3360
      %3362 = vmatmul.bf16.gmra.mxu0 %v621
      %v3363 = vpop.f32.mrf.mxu0
      %v3364 = vadd.f32 %v3315, %v3363
      %v3365 = vpop.f32.mrf.mxu0
      %v3366 = vadd.f32 %v3317, %v3365
      %3367 = vmatmul.bf16.gmra.mxu0 %v625
      %v3368 = vpop.f32.mrf.mxu0
      %v3369 = vadd.f32 %v3320, %v3368
      %v3370 = vpop.f32.mrf.mxu0
      %v3371 = vadd.f32 %v3322, %v3370
      %3372 = vmatmul.bf16.gmra.mxu0 %v629
      %v3373 = vpop.f32.mrf.mxu0
      %v3374 = vadd.f32 %v3325, %v3373
      %v3375 = vpop.f32.mrf.mxu0
      %v3376 = vadd.f32 %v3327, %v3375
      %3377 = vdwg.mxu0
      %3378 = vmatpush.bf16.msra.mxu0 %v1830
      %3379 = vmatpush.bf16.msra.mxu0 %v1823
      %3380 = vmatpush.bf16.msra.mxu0 %v1816
      %3381 = vmatpush.bf16.msra.mxu0 %v1809
      %3382 = vmatpush.bf16.msra.mxu0 %v1802
      %3383 = vmatpush.bf16.msra.mxu0 %v1795
      %3384 = vmatpush.bf16.msra.mxu0 %v1788
      %3385 = vmatpush.bf16.msra.mxu0 %v1781
      %3386 = vmatmul.bf16.gmra.mxu0 %v602
      %v3387 = vpop.f32.mrf.mxu0
      %v3388 = vadd.f32 %v3339, %v3387
      %v3389 = vpop.f32.mrf.mxu0
      %v3390 = vadd.f32 %v3341, %v3389
      %3391 = vmatmul.bf16.gmra.mxu0 %v606
      %v3392 = vpop.f32.mrf.mxu0
      %v3393 = vadd.f32 %v3344, %v3392
      %v3394 = vpop.f32.mrf.mxu0
      %v3395 = vadd.f32 %v3346, %v3394
      %3396 = vmatmul.bf16.gmra.mxu0 %v610
      %v3397 = vpop.f32.mrf.mxu0
      %v3398 = vadd.f32 %v3349, %v3397
      %v3399 = vpop.f32.mrf.mxu0
      %v3400 = vadd.f32 %v3351, %v3399
      %3401 = vmatmul.bf16.gmra.mxu0 %v614
      %v3402 = vpop.f32.mrf.mxu0
      %v3403 = vadd.f32 %v3354, %v3402
      %v3404 = vpop.f32.mrf.mxu0
      %v3405 = vadd.f32 %v3356, %v3404
      %3406 = vmatmul.bf16.gmra.mxu0 %v618
      %v3407 = vpop.f32.mrf.mxu0
      %v3408 = vadd.f32 %v3359, %v3407
      %v3409 = vpop.f32.mrf.mxu0
      %v3410 = vadd.f32 %v3361, %v3409
      %3411 = vmatmul.bf16.gmra.mxu0 %v622
      %v3412 = vpop.f32.mrf.mxu0
      %v3413 = vadd.f32 %v3364, %v3412
      %v3414 = vpop.f32.mrf.mxu0
      %v3415 = vadd.f32 %v3366, %v3414
      %3416 = vmatmul.bf16.gmra.mxu0 %v626
      %v3417 = vpop.f32.mrf.mxu0
      %v3418 = vadd.f32 %v3369, %v3417
      %v3419 = vpop.f32.mrf.mxu0
      %v3420 = vadd.f32 %v3371, %v3419
      %3421 = vmatmul.bf16.gmra.mxu0 %v630
      %v3422 = vpop.f32.mrf.mxu0
      %v3423 = vadd.f32 %v3374, %v3422
      %v3424 = vpop.f32.mrf.mxu0
      %v3425 = vadd.f32 %v3376, %v3424
      %3426 = vdwg.mxu0
      %v3427 = vxor.u32 %v2212, 2147483648
      %v3428 = vxor.u32 %v2408, 2147483648
      %v3429 = vxor.u32 %v2604, 2147483648
      %v3430 = vxor.u32 %v2800, 2147483648
      %v3431 = vxor.u32 %v2996, 2147483648
      %v3432 = vxor.u32 %v3192, 2147483648
      %v3433 = vxor.u32 %v3388, 2147483648
      %v3434 = vxor.u32 %v2214, 2147483648
      %v3435 = vxor.u32 %v2410, 2147483648
      %v3436 = vxor.u32 %v2606, 2147483648
      %v3437 = vxor.u32 %v2802, 2147483648
      %v3438 = vxor.u32 %v2998, 2147483648
      %v3439 = vxor.u32 %v3194, 2147483648
      %v3440 = vxor.u32 %v3390, 2147483648
      %v3441 = vxor.u32 %v2217, 2147483648
      %v3442 = vxor.u32 %v2413, 2147483648
      %v3443 = vxor.u32 %v2609, 2147483648
      %v3444 = vxor.u32 %v2805, 2147483648
      %v3445 = vxor.u32 %v3001, 2147483648
      %v3446 = vxor.u32 %v3197, 2147483648
      %v3447 = vxor.u32 %v3393, 2147483648
      %v3448 = vxor.u32 %v2219, 2147483648
      %v3449 = vxor.u32 %v2415, 2147483648
      %v3450 = vxor.u32 %v2611, 2147483648
      %v3451 = vxor.u32 %v2807, 2147483648
      %v3452 = vxor.u32 %v3003, 2147483648
      %v3453 = vxor.u32 %v3199, 2147483648
      %v3454 = vxor.u32 %v3395, 2147483648
      %v3455 = vxor.u32 %v2222, 2147483648
      %v3456 = vxor.u32 %v2418, 2147483648
      %v3457 = vxor.u32 %v2614, 2147483648
      %v3458 = vxor.u32 %v2810, 2147483648
      %v3459 = vxor.u32 %v3006, 2147483648
      %v3460 = vxor.u32 %v3202, 2147483648
      %v3461 = vxor.u32 %v3398, 2147483648
      %v3462 = vxor.u32 %v2224, 2147483648
      %v3463 = vxor.u32 %v2420, 2147483648
      %v3464 = vxor.u32 %v2616, 2147483648
      %v3465 = vxor.u32 %v2812, 2147483648
      %v3466 = vxor.u32 %v3008, 2147483648
      %v3467 = vxor.u32 %v3204, 2147483648
      %v3468 = vxor.u32 %v3400, 2147483648
      %v3469 = vxor.u32 %v2227, 2147483648
      %v3470 = vxor.u32 %v2423, 2147483648
      %v3471 = vxor.u32 %v2619, 2147483648
      %v3472 = vxor.u32 %v2815, 2147483648
      %v3473 = vxor.u32 %v3011, 2147483648
      %v3474 = vxor.u32 %v3207, 2147483648
      %v3475 = vxor.u32 %v3403, 2147483648
      %v3476 = vxor.u32 %v2229, 2147483648
      %v3477 = vxor.u32 %v2425, 2147483648
      %v3478 = vxor.u32 %v2621, 2147483648
      %v3479 = vxor.u32 %v2817, 2147483648
      %v3480 = vxor.u32 %v3013, 2147483648
      %v3481 = vxor.u32 %v3209, 2147483648
      %v3482 = vxor.u32 %v3405, 2147483648
      %v3483 = vxor.u32 %v2232, 2147483648
      %v3484 = vxor.u32 %v2428, 2147483648
      %v3485 = vxor.u32 %v2624, 2147483648
      %v3486 = vxor.u32 %v2820, 2147483648
      %v3487 = vxor.u32 %v3016, 2147483648
      %v3488 = vxor.u32 %v3212, 2147483648
      %v3489 = vxor.u32 %v3408, 2147483648
      %v3490 = vxor.u32 %v2234, 2147483648
      %v3491 = vxor.u32 %v2430, 2147483648
      %v3492 = vxor.u32 %v2626, 2147483648
      %v3493 = vxor.u32 %v2822, 2147483648
      %v3494 = vxor.u32 %v3018, 2147483648
      %v3495 = vxor.u32 %v3214, 2147483648
      %v3496 = vxor.u32 %v3410, 2147483648
      %v3497 = vxor.u32 %v2237, 2147483648
      %v3498 = vxor.u32 %v2433, 2147483648
      %v3499 = vxor.u32 %v2629, 2147483648
      %v3500 = vxor.u32 %v2825, 2147483648
      %v3501 = vxor.u32 %v3021, 2147483648
      %v3502 = vxor.u32 %v3217, 2147483648
      %v3503 = vxor.u32 %v3413, 2147483648
      %v3504 = vxor.u32 %v2239, 2147483648
      %v3505 = vxor.u32 %v2435, 2147483648
      %v3506 = vxor.u32 %v2631, 2147483648
      %v3507 = vxor.u32 %v2827, 2147483648
      %v3508 = vxor.u32 %v3023, 2147483648
      %v3509 = vxor.u32 %v3219, 2147483648
      %v3510 = vxor.u32 %v3415, 2147483648
      %v3511 = vxor.u32 %v2242, 2147483648
      %v3512 = vxor.u32 %v2438, 2147483648
      %v3513 = vxor.u32 %v2634, 2147483648
      %v3514 = vxor.u32 %v2830, 2147483648
      %v3515 = vxor.u32 %v3026, 2147483648
      %v3516 = vxor.u32 %v3222, 2147483648
      %v3517 = vxor.u32 %v3418, 2147483648
      %v3518 = vxor.u32 %v2244, 2147483648
      %v3519 = vxor.u32 %v2440, 2147483648
      %v3520 = vxor.u32 %v2636, 2147483648
      %v3521 = vxor.u32 %v2832, 2147483648
      %v3522 = vxor.u32 %v3028, 2147483648
      %v3523 = vxor.u32 %v3224, 2147483648
      %v3524 = vxor.u32 %v3420, 2147483648
      %v3525 = vxor.u32 %v2247, 2147483648
      %v3526 = vxor.u32 %v2443, 2147483648
      %v3527 = vxor.u32 %v2639, 2147483648
      %v3528 = vxor.u32 %v2835, 2147483648
      %v3529 = vxor.u32 %v3031, 2147483648
      %v3530 = vxor.u32 %v3227, 2147483648
      %v3531 = vxor.u32 %v3423, 2147483648
      %v3532 = vxor.u32 %v2249, 2147483648
      %v3533 = vxor.u32 %v2445, 2147483648
      %v3534 = vxor.u32 %v2641, 2147483648
      %v3535 = vxor.u32 %v2837, 2147483648
      %v3536 = vxor.u32 %v3033, 2147483648
      %v3537 = vxor.u32 %v3229, 2147483648
      %v3538 = vxor.u32 %v3425, 2147483648
      %v3539 = vmul.f32 %v3427, 1.442695
      %v3540 = vpow.pop %v3539
      %v3541 = vmul.f32 %v3428, 1.442695
      %v3542 = vpow.pop %v3541
      %v3543 = vmul.f32 %v3429, 1.442695
      %v3544 = vpow.pop %v3543
      %v3545 = vmul.f32 %v3430, 1.442695
      %v3546 = vpow.pop %v3545
      %v3547 = vmul.f32 %v3431, 1.442695
      %v3548 = vpow.pop %v3547
      %v3549 = vmul.f32 %v3432, 1.442695
      %v3550 = vpow.pop %v3549
      %v3551 = vmul.f32 %v3433, 1.442695
      %v3552 = vpow.pop %v3551
      %v3553 = vmul.f32 %v3434, 1.442695
      %v3554 = vpow.pop %v3553
      %v3555 = vmul.f32 %v3435, 1.442695
      %v3556 = vpow.pop %v3555
      %v3557 = vmul.f32 %v3436, 1.442695
      %v3558 = vpow.pop %v3557
      %v3559 = vmul.f32 %v3437, 1.442695
      %v3560 = vpow.pop %v3559
      %v3561 = vmul.f32 %v3438, 1.442695
      %v3562 = vpow.pop %v3561
      %v3563 = vmul.f32 %v3439, 1.442695
      %v3564 = vpow.pop %v3563
      %v3565 = vmul.f32 %v3440, 1.442695
      %v3566 = vpow.pop %v3565
      %v3567 = vmul.f32 %v3441, 1.442695
      %v3568 = vpow.pop %v3567
      %v3569 = vmul.f32 %v3442, 1.442695
      %v3570 = vpow.pop %v3569
      %v3571 = vmul.f32 %v3443, 1.442695
      %v3572 = vpow.pop %v3571
      %v3573 = vmul.f32 %v3444, 1.442695
      %v3574 = vpow.pop %v3573
      %v3575 = vmul.f32 %v3445, 1.442695
      %v3576 = vpow.pop %v3575
      %v3577 = vmul.f32 %v3446, 1.442695
      %v3578 = vpow.pop %v3577
      %v3579 = vmul.f32 %v3447, 1.442695
      %v3580 = vpow.pop %v3579
      %v3581 = vmul.f32 %v3448, 1.442695
      %v3582 = vpow.pop %v3581
      %v3583 = vmul.f32 %v3449, 1.442695
      %v3584 = vpow.pop %v3583
      %v3585 = vmul.f32 %v3450, 1.442695
      %v3586 = vpow.pop %v3585
      %v3587 = vmul.f32 %v3451, 1.442695
      %v3588 = vpow.pop %v3587
      %v3589 = vmul.f32 %v3452, 1.442695
      %v3590 = vpow.pop %v3589
      %v3591 = vmul.f32 %v3453, 1.442695
      %v3592 = vpow.pop %v3591
      %v3593 = vmul.f32 %v3454, 1.442695
      %v3594 = vpow.pop %v3593
      %v3595 = vmul.f32 %v3455, 1.442695
      %v3596 = vpow.pop %v3595
      %v3597 = vmul.f32 %v3456, 1.442695
      %v3598 = vpow.pop %v3597
      %v3599 = vmul.f32 %v3457, 1.442695
      %v3600 = vpow.pop %v3599
      %v3601 = vmul.f32 %v3458, 1.442695
      %v3602 = vpow.pop %v3601
      %v3603 = vmul.f32 %v3459, 1.442695
      %v3604 = vpow.pop %v3603
      %v3605 = vmul.f32 %v3460, 1.442695
      %v3606 = vpow.pop %v3605
      %v3607 = vmul.f32 %v3461, 1.442695
      %v3608 = vpow.pop %v3607
      %v3609 = vmul.f32 %v3462, 1.442695
      %v3610 = vpow.pop %v3609
      %v3611 = vmul.f32 %v3463, 1.442695
      %v3612 = vpow.pop %v3611
      %v3613 = vmul.f32 %v3464, 1.442695
      %v3614 = vpow.pop %v3613
      %v3615 = vmul.f32 %v3465, 1.442695
      %v3616 = vpow.pop %v3615
      %v3617 = vmul.f32 %v3466, 1.442695
      %v3618 = vpow.pop %v3617
      %v3619 = vmul.f32 %v3467, 1.442695
      %v3620 = vpow.pop %v3619
      %v3621 = vmul.f32 %v3468, 1.442695
      %v3622 = vpow.pop %v3621
      %v3623 = vmul.f32 %v3469, 1.442695
      %v3624 = vpow.pop %v3623
      %v3625 = vmul.f32 %v3470, 1.442695
      %v3626 = vpow.pop %v3625
      %v3627 = vmul.f32 %v3471, 1.442695
      %v3628 = vpow.pop %v3627
      %v3629 = vmul.f32 %v3472, 1.442695
      %v3630 = vpow.pop %v3629
      %v3631 = vmul.f32 %v3473, 1.442695
      %v3632 = vpow.pop %v3631
      %v3633 = vmul.f32 %v3474, 1.442695
      %v3634 = vpow.pop %v3633
      %v3635 = vmul.f32 %v3475, 1.442695
      %v3636 = vpow.pop %v3635
      %v3637 = vmul.f32 %v3476, 1.442695
      %v3638 = vpow.pop %v3637
      %v3639 = vmul.f32 %v3477, 1.442695
      %v3640 = vpow.pop %v3639
      %v3641 = vmul.f32 %v3478, 1.442695
      %v3642 = vpow.pop %v3641
      %v3643 = vmul.f32 %v3479, 1.442695
      %v3644 = vpow.pop %v3643
      %v3645 = vmul.f32 %v3480, 1.442695
      %v3646 = vpow.pop %v3645
      %v3647 = vmul.f32 %v3481, 1.442695
      %v3648 = vpow.pop %v3647
      %v3649 = vmul.f32 %v3482, 1.442695
      %v3650 = vpow.pop %v3649
      %v3651 = vmul.f32 %v3483, 1.442695
      %v3652 = vpow.pop %v3651
      %v3653 = vmul.f32 %v3484, 1.442695
      %v3654 = vpow.pop %v3653
      %v3655 = vmul.f32 %v3485, 1.442695
      %v3656 = vpow.pop %v3655
      %v3657 = vmul.f32 %v3486, 1.442695
      %v3658 = vpow.pop %v3657
      %v3659 = vmul.f32 %v3487, 1.442695
      %v3660 = vpow.pop %v3659
      %v3661 = vmul.f32 %v3488, 1.442695
      %v3662 = vpow.pop %v3661
      %v3663 = vmul.f32 %v3489, 1.442695
      %v3664 = vpow.pop %v3663
      %v3665 = vmul.f32 %v3490, 1.442695
      %v3666 = vpow.pop %v3665
      %v3667 = vmul.f32 %v3491, 1.442695
      %v3668 = vpow.pop %v3667
      %v3669 = vmul.f32 %v3492, 1.442695
      %v3670 = vpow.pop %v3669
      %v3671 = vmul.f32 %v3493, 1.442695
      %v3672 = vpow.pop %v3671
      %v3673 = vmul.f32 %v3494, 1.442695
      %v3674 = vpow.pop %v3673
      %v3675 = vmul.f32 %v3495, 1.442695
      %v3676 = vpow.pop %v3675
      %v3677 = vmul.f32 %v3496, 1.442695
      %v3678 = vpow.pop %v3677
      %v3679 = vmul.f32 %v3497, 1.442695
      %v3680 = vpow.pop %v3679
      %v3681 = vmul.f32 %v3498, 1.442695
      %v3682 = vpow.pop %v3681
      %v3683 = vmul.f32 %v3499, 1.442695
      %v3684 = vpow.pop %v3683
      %v3685 = vmul.f32 %v3500, 1.442695
      %v3686 = vpow.pop %v3685
      %v3687 = vmul.f32 %v3501, 1.442695
      %v3688 = vpow.pop %v3687
      %v3689 = vmul.f32 %v3502, 1.442695
      %v3690 = vpow.pop %v3689
      %v3691 = vmul.f32 %v3503, 1.442695
      %v3692 = vpow.pop %v3691
      %v3693 = vmul.f32 %v3504, 1.442695
      %v3694 = vpow.pop %v3693
      %v3695 = vmul.f32 %v3505, 1.442695
      %v3696 = vpow.pop %v3695
      %v3697 = vmul.f32 %v3506, 1.442695
      %v3698 = vpow.pop %v3697
      %v3699 = vmul.f32 %v3507, 1.442695
      %v3700 = vpow.pop %v3699
      %v3701 = vmul.f32 %v3508, 1.442695
      %v3702 = vpow.pop %v3701
      %v3703 = vmul.f32 %v3509, 1.442695
      %v3704 = vpow.pop %v3703
      %v3705 = vmul.f32 %v3510, 1.442695
      %v3706 = vpow.pop %v3705
      %v3707 = vmul.f32 %v3511, 1.442695
      %v3708 = vpow.pop %v3707
      %v3709 = vmul.f32 %v3512, 1.442695
      %v3710 = vpow.pop %v3709
      %v3711 = vmul.f32 %v3513, 1.442695
      %v3712 = vpow.pop %v3711
      %v3713 = vmul.f32 %v3514, 1.442695
      %v3714 = vpow.pop %v3713
      %v3715 = vmul.f32 %v3515, 1.442695
      %v3716 = vpow.pop %v3715
      %v3717 = vmul.f32 %v3516, 1.442695
      %v3718 = vpow.pop %v3717
      %v3719 = vmul.f32 %v3517, 1.442695
      %v3720 = vpow.pop %v3719
      %v3721 = vmul.f32 %v3518, 1.442695
      %v3722 = vpow.pop %v3721
      %v3723 = vmul.f32 %v3519, 1.442695
      %v3724 = vpow.pop %v3723
      %v3725 = vmul.f32 %v3520, 1.442695
      %v3726 = vpow.pop %v3725
      %v3727 = vmul.f32 %v3521, 1.442695
      %v3728 = vpow.pop %v3727
      %v3729 = vmul.f32 %v3522, 1.442695
      %v3730 = vpow.pop %v3729
      %v3731 = vmul.f32 %v3523, 1.442695
      %v3732 = vpow.pop %v3731
      %v3733 = vmul.f32 %v3524, 1.442695
      %v3734 = vpow.pop %v3733
      %v3735 = vmul.f32 %v3525, 1.442695
      %v3736 = vpow.pop %v3735
      %v3737 = vmul.f32 %v3526, 1.442695
      %v3738 = vpow.pop %v3737
      %v3739 = vmul.f32 %v3527, 1.442695
      %v3740 = vpow.pop %v3739
      %v3741 = vmul.f32 %v3528, 1.442695
      %v3742 = vpow.pop %v3741
      %v3743 = vmul.f32 %v3529, 1.442695
      %v3744 = vpow.pop %v3743
      %v3745 = vmul.f32 %v3530, 1.442695
      %v3746 = vpow.pop %v3745
      %v3747 = vmul.f32 %v3531, 1.442695
      %v3748 = vpow.pop %v3747
      %v3749 = vmul.f32 %v3532, 1.442695
      %v3750 = vpow.pop %v3749
      %v3751 = vmul.f32 %v3533, 1.442695
      %v3752 = vpow.pop %v3751
      %v3753 = vmul.f32 %v3534, 1.442695
      %v3754 = vpow.pop %v3753
      %v3755 = vmul.f32 %v3535, 1.442695
      %v3756 = vpow.pop %v3755
      %v3757 = vmul.f32 %v3536, 1.442695
      %v3758 = vpow.pop %v3757
      %v3759 = vmul.f32 %v3537, 1.442695
      %v3760 = vpow.pop %v3759
      %v3761 = vmul.f32 %v3538, 1.442695
      %v3762 = vpow.pop %v3761
      %v3763 = vadd.f32 %v3540, 1.0
      %v3764 = vadd.f32 %v3542, 1.0
      %v3765 = vadd.f32 %v3544, 1.0
      %v3766 = vadd.f32 %v3546, 1.0
      %v3767 = vadd.f32 %v3548, 1.0
      %v3768 = vadd.f32 %v3550, 1.0
      %v3769 = vadd.f32 %v3552, 1.0
      %v3770 = vadd.f32 %v3554, 1.0
      %v3771 = vadd.f32 %v3556, 1.0
      %v3772 = vadd.f32 %v3558, 1.0
      %v3773 = vadd.f32 %v3560, 1.0
      %v3774 = vadd.f32 %v3562, 1.0
      %v3775 = vadd.f32 %v3564, 1.0
      %v3776 = vadd.f32 %v3566, 1.0
      %v3777 = vadd.f32 %v3568, 1.0
      %v3778 = vadd.f32 %v3570, 1.0
      %v3779 = vadd.f32 %v3572, 1.0
      %v3780 = vadd.f32 %v3574, 1.0
      %v3781 = vadd.f32 %v3576, 1.0
      %v3782 = vadd.f32 %v3578, 1.0
      %v3783 = vadd.f32 %v3580, 1.0
      %v3784 = vadd.f32 %v3582, 1.0
      %v3785 = vadd.f32 %v3584, 1.0
      %v3786 = vadd.f32 %v3586, 1.0
      %v3787 = vadd.f32 %v3588, 1.0
      %v3788 = vadd.f32 %v3590, 1.0
      %v3789 = vadd.f32 %v3592, 1.0
      %v3790 = vadd.f32 %v3594, 1.0
      %v3791 = vadd.f32 %v3596, 1.0
      %v3792 = vadd.f32 %v3598, 1.0
      %v3793 = vadd.f32 %v3600, 1.0
      %v3794 = vadd.f32 %v3602, 1.0
      %v3795 = vadd.f32 %v3604, 1.0
      %v3796 = vadd.f32 %v3606, 1.0
      %v3797 = vadd.f32 %v3608, 1.0
      %v3798 = vadd.f32 %v3610, 1.0
      %v3799 = vadd.f32 %v3612, 1.0
      %v3800 = vadd.f32 %v3614, 1.0
      %v3801 = vadd.f32 %v3616, 1.0
      %v3802 = vadd.f32 %v3618, 1.0
      %v3803 = vadd.f32 %v3620, 1.0
      %v3804 = vadd.f32 %v3622, 1.0
      %v3805 = vadd.f32 %v3624, 1.0
      %v3806 = vadd.f32 %v3626, 1.0
      %v3807 = vadd.f32 %v3628, 1.0
      %v3808 = vadd.f32 %v3630, 1.0
      %v3809 = vadd.f32 %v3632, 1.0
      %v3810 = vadd.f32 %v3634, 1.0
      %v3811 = vadd.f32 %v3636, 1.0
      %v3812 = vadd.f32 %v3638, 1.0
      %v3813 = vadd.f32 %v3640, 1.0
      %v3814 = vadd.f32 %v3642, 1.0
      %v3815 = vadd.f32 %v3644, 1.0
      %v3816 = vadd.f32 %v3646, 1.0
      %v3817 = vadd.f32 %v3648, 1.0
      %v3818 = vadd.f32 %v3650, 1.0
      %v3819 = vadd.f32 %v3652, 1.0
      %v3820 = vadd.f32 %v3654, 1.0
      %v3821 = vadd.f32 %v3656, 1.0
      %v3822 = vadd.f32 %v3658, 1.0
      %v3823 = vadd.f32 %v3660, 1.0
      %v3824 = vadd.f32 %v3662, 1.0
      %v3825 = vadd.f32 %v3664, 1.0
      %v3826 = vadd.f32 %v3666, 1.0
      %v3827 = vadd.f32 %v3668, 1.0
      %v3828 = vadd.f32 %v3670, 1.0
      %v3829 = vadd.f32 %v3672, 1.0
      %v3830 = vadd.f32 %v3674, 1.0
      %v3831 = vadd.f32 %v3676, 1.0
      %v3832 = vadd.f32 %v3678, 1.0
      %v3833 = vadd.f32 %v3680, 1.0
      %v3834 = vadd.f32 %v3682, 1.0
      %v3835 = vadd.f32 %v3684, 1.0
      %v3836 = vadd.f32 %v3686, 1.0
      %v3837 = vadd.f32 %v3688, 1.0
      %v3838 = vadd.f32 %v3690, 1.0
      %v3839 = vadd.f32 %v3692, 1.0
      %v3840 = vadd.f32 %v3694, 1.0
      %v3841 = vadd.f32 %v3696, 1.0
      %v3842 = vadd.f32 %v3698, 1.0
      %v3843 = vadd.f32 %v3700, 1.0
      %v3844 = vadd.f32 %v3702, 1.0
      %v3845 = vadd.f32 %v3704, 1.0
      %v3846 = vadd.f32 %v3706, 1.0
      %v3847 = vadd.f32 %v3708, 1.0
      %v3848 = vadd.f32 %v3710, 1.0
      %v3849 = vadd.f32 %v3712, 1.0
      %v3850 = vadd.f32 %v3714, 1.0
      %v3851 = vadd.f32 %v3716, 1.0
      %v3852 = vadd.f32 %v3718, 1.0
      %v3853 = vadd.f32 %v3720, 1.0
      %v3854 = vadd.f32 %v3722, 1.0
      %v3855 = vadd.f32 %v3724, 1.0
      %v3856 = vadd.f32 %v3726, 1.0
      %v3857 = vadd.f32 %v3728, 1.0
      %v3858 = vadd.f32 %v3730, 1.0
      %v3859 = vadd.f32 %v3732, 1.0
      %v3860 = vadd.f32 %v3734, 1.0
      %v3861 = vadd.f32 %v3736, 1.0
      %v3862 = vadd.f32 %v3738, 1.0
      %v3863 = vadd.f32 %v3740, 1.0
      %v3864 = vadd.f32 %v3742, 1.0
      %v3865 = vadd.f32 %v3744, 1.0
      %v3866 = vadd.f32 %v3746, 1.0
      %v3867 = vadd.f32 %v3748, 1.0
      %v3868 = vadd.f32 %v3750, 1.0
      %v3869 = vadd.f32 %v3752, 1.0
      %v3870 = vadd.f32 %v3754, 1.0
      %v3871 = vadd.f32 %v3756, 1.0
      %v3872 = vadd.f32 %v3758, 1.0
      %v3873 = vadd.f32 %v3760, 1.0
      %v3874 = vadd.f32 %v3762, 1.0
      %v3875 = vrcp.pop %v3763
      %v3876 = vmul.f32 %v3763, %v3875
      %v3877 = vsub.f32 1.0, %v3876
      %v3878 = vmul.f32 %v3875, %v3877
      %v3879 = vadd.f32 %v3875, %v3878
      %vm3880 = vweird.f32 %v3763
      %vm3881 = vweird.f32 %v3875
      %vm3882 = vmor %vm3880, %vm3881
      %v3883 = vsel %vm3882, %v3875, %v3879
      %v3884 = vand.u32 2147483647, %v3763
      %vm3885 = vcmp.eq.f32.partialorder %v3884, 8.507059e+37
      %v3886 = vand.u32 %v3763, 2147483648
      %v3887 = vor.u32 1.1754944e-38, %v3886
      %v3888 = vsel %vm3885, %v3887, %v3883
      %v3889 = vmul.f32 1.0, %v3888
      %v3890 = vrcp.pop %v3764
      %v3891 = vmul.f32 %v3764, %v3890
      %v3892 = vsub.f32 1.0, %v3891
      %v3893 = vmul.f32 %v3890, %v3892
      %v3894 = vadd.f32 %v3890, %v3893
      %vm3895 = vweird.f32 %v3764
      %vm3896 = vweird.f32 %v3890
      %vm3897 = vmor %vm3895, %vm3896
      %v3898 = vsel %vm3897, %v3890, %v3894
      %v3899 = vand.u32 2147483647, %v3764
      %vm3900 = vcmp.eq.f32.partialorder %v3899, 8.507059e+37
      %v3901 = vand.u32 %v3764, 2147483648
      %v3902 = vor.u32 1.1754944e-38, %v3901
      %v3903 = vsel %vm3900, %v3902, %v3898
      %v3904 = vmul.f32 1.0, %v3903
      %v3905 = vrcp.pop %v3765
      %v3906 = vmul.f32 %v3765, %v3905
      %v3907 = vsub.f32 1.0, %v3906
      %v3908 = vmul.f32 %v3905, %v3907
      %v3909 = vadd.f32 %v3905, %v3908
      %vm3910 = vweird.f32 %v3765
      %vm3911 = vweird.f32 %v3905
      %vm3912 = vmor %vm3910, %vm3911
      %v3913 = vsel %vm3912, %v3905, %v3909
      %v3914 = vand.u32 2147483647, %v3765
      %vm3915 = vcmp.eq.f32.partialorder %v3914, 8.507059e+37
      %v3916 = vand.u32 %v3765, 2147483648
      %v3917 = vor.u32 1.1754944e-38, %v3916
      %v3918 = vsel %vm3915, %v3917, %v3913
      %v3919 = vmul.f32 1.0, %v3918
      %v3920 = vrcp.pop %v3766
      %v3921 = vmul.f32 %v3766, %v3920
      %v3922 = vsub.f32 1.0, %v3921
      %v3923 = vmul.f32 %v3920, %v3922
      %v3924 = vadd.f32 %v3920, %v3923
      %vm3925 = vweird.f32 %v3766
      %vm3926 = vweird.f32 %v3920
      %vm3927 = vmor %vm3925, %vm3926
      %v3928 = vsel %vm3927, %v3920, %v3924
      %v3929 = vand.u32 2147483647, %v3766
      %vm3930 = vcmp.eq.f32.partialorder %v3929, 8.507059e+37
      %v3931 = vand.u32 %v3766, 2147483648
      %v3932 = vor.u32 1.1754944e-38, %v3931
      %v3933 = vsel %vm3930, %v3932, %v3928
      %v3934 = vmul.f32 1.0, %v3933
      %v3935 = vrcp.pop %v3767
      %v3936 = vmul.f32 %v3767, %v3935
      %v3937 = vsub.f32 1.0, %v3936
      %v3938 = vmul.f32 %v3935, %v3937
      %v3939 = vadd.f32 %v3935, %v3938
      %vm3940 = vweird.f32 %v3767
      %vm3941 = vweird.f32 %v3935
      %vm3942 = vmor %vm3940, %vm3941
      %v3943 = vsel %vm3942, %v3935, %v3939
      %v3944 = vand.u32 2147483647, %v3767
      %vm3945 = vcmp.eq.f32.partialorder %v3944, 8.507059e+37
      %v3946 = vand.u32 %v3767, 2147483648
      %v3947 = vor.u32 1.1754944e-38, %v3946
      %v3948 = vsel %vm3945, %v3947, %v3943
      %v3949 = vmul.f32 1.0, %v3948
      %v3950 = vrcp.pop %v3768
      %v3951 = vmul.f32 %v3768, %v3950
      %v3952 = vsub.f32 1.0, %v3951
      %v3953 = vmul.f32 %v3950, %v3952
      %v3954 = vadd.f32 %v3950, %v3953
      %vm3955 = vweird.f32 %v3768
      %vm3956 = vweird.f32 %v3950
      %vm3957 = vmor %vm3955, %vm3956
      %v3958 = vsel %vm3957, %v3950, %v3954
      %v3959 = vand.u32 2147483647, %v3768
      %vm3960 = vcmp.eq.f32.partialorder %v3959, 8.507059e+37
      %v3961 = vand.u32 %v3768, 2147483648
      %v3962 = vor.u32 1.1754944e-38, %v3961
      %v3963 = vsel %vm3960, %v3962, %v3958
      %v3964 = vmul.f32 1.0, %v3963
      %v3965 = vrcp.pop %v3769
      %v3966 = vmul.f32 %v3769, %v3965
      %v3967 = vsub.f32 1.0, %v3966
      %v3968 = vmul.f32 %v3965, %v3967
      %v3969 = vadd.f32 %v3965, %v3968
      %vm3970 = vweird.f32 %v3769
      %vm3971 = vweird.f32 %v3965
      %vm3972 = vmor %vm3970, %vm3971
      %v3973 = vsel %vm3972, %v3965, %v3969
      %v3974 = vand.u32 2147483647, %v3769
      %vm3975 = vcmp.eq.f32.partialorder %v3974, 8.507059e+37
      %v3976 = vand.u32 %v3769, 2147483648
      %v3977 = vor.u32 1.1754944e-38, %v3976
      %v3978 = vsel %vm3975, %v3977, %v3973
      %v3979 = vmul.f32 1.0, %v3978
      %v3980 = vrcp.pop %v3770
      %v3981 = vmul.f32 %v3770, %v3980
      %v3982 = vsub.f32 1.0, %v3981
      %v3983 = vmul.f32 %v3980, %v3982
      %v3984 = vadd.f32 %v3980, %v3983
      %vm3985 = vweird.f32 %v3770
      %vm3986 = vweird.f32 %v3980
      %vm3987 = vmor %vm3985, %vm3986
      %v3988 = vsel %vm3987, %v3980, %v3984
      %v3989 = vand.u32 2147483647, %v3770
      %vm3990 = vcmp.eq.f32.partialorder %v3989, 8.507059e+37
      %v3991 = vand.u32 %v3770, 2147483648
      %v3992 = vor.u32 1.1754944e-38, %v3991
      %v3993 = vsel %vm3990, %v3992, %v3988
      %v3994 = vmul.f32 1.0, %v3993
      %v3995 = vrcp.pop %v3771
      %v3996 = vmul.f32 %v3771, %v3995
      %v3997 = vsub.f32 1.0, %v3996
      %v3998 = vmul.f32 %v3995, %v3997
      %v3999 = vadd.f32 %v3995, %v3998
      %vm4000 = vweird.f32 %v3771
      %vm4001 = vweird.f32 %v3995
      %vm4002 = vmor %vm4000, %vm4001
      %v4003 = vsel %vm4002, %v3995, %v3999
      %v4004 = vand.u32 2147483647, %v3771
      %vm4005 = vcmp.eq.f32.partialorder %v4004, 8.507059e+37
      %v4006 = vand.u32 %v3771, 2147483648
      %v4007 = vor.u32 1.1754944e-38, %v4006
      %v4008 = vsel %vm4005, %v4007, %v4003
      %v4009 = vmul.f32 1.0, %v4008
      %v4010 = vrcp.pop %v3772
      %v4011 = vmul.f32 %v3772, %v4010
      %v4012 = vsub.f32 1.0, %v4011
      %v4013 = vmul.f32 %v4010, %v4012
      %v4014 = vadd.f32 %v4010, %v4013
      %vm4015 = vweird.f32 %v3772
      %vm4016 = vweird.f32 %v4010
      %vm4017 = vmor %vm4015, %vm4016
      %v4018 = vsel %vm4017, %v4010, %v4014
      %v4019 = vand.u32 2147483647, %v3772
      %vm4020 = vcmp.eq.f32.partialorder %v4019, 8.507059e+37
      %v4021 = vand.u32 %v3772, 2147483648
      %v4022 = vor.u32 1.1754944e-38, %v4021
      %v4023 = vsel %vm4020, %v4022, %v4018
      %v4024 = vmul.f32 1.0, %v4023
      %v4025 = vrcp.pop %v3773
      %v4026 = vmul.f32 %v3773, %v4025
      %v4027 = vsub.f32 1.0, %v4026
      %v4028 = vmul.f32 %v4025, %v4027
      %v4029 = vadd.f32 %v4025, %v4028
      %vm4030 = vweird.f32 %v3773
      %vm4031 = vweird.f32 %v4025
      %vm4032 = vmor %vm4030, %vm4031
      %v4033 = vsel %vm4032, %v4025, %v4029
      %v4034 = vand.u32 2147483647, %v3773
      %vm4035 = vcmp.eq.f32.partialorder %v4034, 8.507059e+37
      %v4036 = vand.u32 %v3773, 2147483648
      %v4037 = vor.u32 1.1754944e-38, %v4036
      %v4038 = vsel %vm4035, %v4037, %v4033
      %v4039 = vmul.f32 1.0, %v4038
      %v4040 = vrcp.pop %v3774
      %v4041 = vmul.f32 %v3774, %v4040
      %v4042 = vsub.f32 1.0, %v4041
      %v4043 = vmul.f32 %v4040, %v4042
      %v4044 = vadd.f32 %v4040, %v4043
      %vm4045 = vweird.f32 %v3774
      %vm4046 = vweird.f32 %v4040
      %vm4047 = vmor %vm4045, %vm4046
      %v4048 = vsel %vm4047, %v4040, %v4044
      %v4049 = vand.u32 2147483647, %v3774
      %vm4050 = vcmp.eq.f32.partialorder %v4049, 8.507059e+37
      %v4051 = vand.u32 %v3774, 2147483648
      %v4052 = vor.u32 1.1754944e-38, %v4051
      %v4053 = vsel %vm4050, %v4052, %v4048
      %v4054 = vmul.f32 1.0, %v4053
      %v4055 = vrcp.pop %v3775
      %v4056 = vmul.f32 %v3775, %v4055
      %v4057 = vsub.f32 1.0, %v4056
      %v4058 = vmul.f32 %v4055, %v4057
      %v4059 = vadd.f32 %v4055, %v4058
      %vm4060 = vweird.f32 %v3775
      %vm4061 = vweird.f32 %v4055
      %vm4062 = vmor %vm4060, %vm4061
      %v4063 = vsel %vm4062, %v4055, %v4059
      %v4064 = vand.u32 2147483647, %v3775
      %vm4065 = vcmp.eq.f32.partialorder %v4064, 8.507059e+37
      %v4066 = vand.u32 %v3775, 2147483648
      %v4067 = vor.u32 1.1754944e-38, %v4066
      %v4068 = vsel %vm4065, %v4067, %v4063
      %v4069 = vmul.f32 1.0, %v4068
      %v4070 = vrcp.pop %v3776
      %v4071 = vmul.f32 %v3776, %v4070
      %v4072 = vsub.f32 1.0, %v4071
      %v4073 = vmul.f32 %v4070, %v4072
      %v4074 = vadd.f32 %v4070, %v4073
      %vm4075 = vweird.f32 %v3776
      %vm4076 = vweird.f32 %v4070
      %vm4077 = vmor %vm4075, %vm4076
      %v4078 = vsel %vm4077, %v4070, %v4074
      %v4079 = vand.u32 2147483647, %v3776
      %vm4080 = vcmp.eq.f32.partialorder %v4079, 8.507059e+37
      %v4081 = vand.u32 %v3776, 2147483648
      %v4082 = vor.u32 1.1754944e-38, %v4081
      %v4083 = vsel %vm4080, %v4082, %v4078
      %v4084 = vmul.f32 1.0, %v4083
      %v4085 = vrcp.pop %v3777
      %v4086 = vmul.f32 %v3777, %v4085
      %v4087 = vsub.f32 1.0, %v4086
      %v4088 = vmul.f32 %v4085, %v4087
      %v4089 = vadd.f32 %v4085, %v4088
      %vm4090 = vweird.f32 %v3777
      %vm4091 = vweird.f32 %v4085
      %vm4092 = vmor %vm4090, %vm4091
      %v4093 = vsel %vm4092, %v4085, %v4089
      %v4094 = vand.u32 2147483647, %v3777
      %vm4095 = vcmp.eq.f32.partialorder %v4094, 8.507059e+37
      %v4096 = vand.u32 %v3777, 2147483648
      %v4097 = vor.u32 1.1754944e-38, %v4096
      %v4098 = vsel %vm4095, %v4097, %v4093
      %v4099 = vmul.f32 1.0, %v4098
      %v4100 = vrcp.pop %v3778
      %v4101 = vmul.f32 %v3778, %v4100
      %v4102 = vsub.f32 1.0, %v4101
      %v4103 = vmul.f32 %v4100, %v4102
      %v4104 = vadd.f32 %v4100, %v4103
      %vm4105 = vweird.f32 %v3778
      %vm4106 = vweird.f32 %v4100
      %vm4107 = vmor %vm4105, %vm4106
      %v4108 = vsel %vm4107, %v4100, %v4104
      %v4109 = vand.u32 2147483647, %v3778
      %vm4110 = vcmp.eq.f32.partialorder %v4109, 8.507059e+37
      %v4111 = vand.u32 %v3778, 2147483648
      %v4112 = vor.u32 1.1754944e-38, %v4111
      %v4113 = vsel %vm4110, %v4112, %v4108
      %v4114 = vmul.f32 1.0, %v4113
      %v4115 = vrcp.pop %v3779
      %v4116 = vmul.f32 %v3779, %v4115
      %v4117 = vsub.f32 1.0, %v4116
      %v4118 = vmul.f32 %v4115, %v4117
      %v4119 = vadd.f32 %v4115, %v4118
      %vm4120 = vweird.f32 %v3779
      %vm4121 = vweird.f32 %v4115
      %vm4122 = vmor %vm4120, %vm4121
      %v4123 = vsel %vm4122, %v4115, %v4119
      %v4124 = vand.u32 2147483647, %v3779
      %vm4125 = vcmp.eq.f32.partialorder %v4124, 8.507059e+37
      %v4126 = vand.u32 %v3779, 2147483648
      %v4127 = vor.u32 1.1754944e-38, %v4126
      %v4128 = vsel %vm4125, %v4127, %v4123
      %v4129 = vmul.f32 1.0, %v4128
      %v4130 = vrcp.pop %v3780
      %v4131 = vmul.f32 %v3780, %v4130
      %v4132 = vsub.f32 1.0, %v4131
      %v4133 = vmul.f32 %v4130, %v4132
      %v4134 = vadd.f32 %v4130, %v4133
      %vm4135 = vweird.f32 %v3780
      %vm4136 = vweird.f32 %v4130
      %vm4137 = vmor %vm4135, %vm4136
      %v4138 = vsel %vm4137, %v4130, %v4134
      %v4139 = vand.u32 2147483647, %v3780
      %vm4140 = vcmp.eq.f32.partialorder %v4139, 8.507059e+37
      %v4141 = vand.u32 %v3780, 2147483648
      %v4142 = vor.u32 1.1754944e-38, %v4141
      %v4143 = vsel %vm4140, %v4142, %v4138
      %v4144 = vmul.f32 1.0, %v4143
      %v4145 = vrcp.pop %v3781
      %v4146 = vmul.f32 %v3781, %v4145
      %v4147 = vsub.f32 1.0, %v4146
      %v4148 = vmul.f32 %v4145, %v4147
      %v4149 = vadd.f32 %v4145, %v4148
      %vm4150 = vweird.f32 %v3781
      %vm4151 = vweird.f32 %v4145
      %vm4152 = vmor %vm4150, %vm4151
      %v4153 = vsel %vm4152, %v4145, %v4149
      %v4154 = vand.u32 2147483647, %v3781
      %vm4155 = vcmp.eq.f32.partialorder %v4154, 8.507059e+37
      %v4156 = vand.u32 %v3781, 2147483648
      %v4157 = vor.u32 1.1754944e-38, %v4156
      %v4158 = vsel %vm4155, %v4157, %v4153
      %v4159 = vmul.f32 1.0, %v4158
      %v4160 = vrcp.pop %v3782
      %v4161 = vmul.f32 %v3782, %v4160
      %v4162 = vsub.f32 1.0, %v4161
      %v4163 = vmul.f32 %v4160, %v4162
      %v4164 = vadd.f32 %v4160, %v4163
      %vm4165 = vweird.f32 %v3782
      %vm4166 = vweird.f32 %v4160
      %vm4167 = vmor %vm4165, %vm4166
      %v4168 = vsel %vm4167, %v4160, %v4164
      %v4169 = vand.u32 2147483647, %v3782
      %vm4170 = vcmp.eq.f32.partialorder %v4169, 8.507059e+37
      %v4171 = vand.u32 %v3782, 2147483648
      %v4172 = vor.u32 1.1754944e-38, %v4171
      %v4173 = vsel %vm4170, %v4172, %v4168
      %v4174 = vmul.f32 1.0, %v4173
      %v4175 = vrcp.pop %v3783
      %v4176 = vmul.f32 %v3783, %v4175
      %v4177 = vsub.f32 1.0, %v4176
      %v4178 = vmul.f32 %v4175, %v4177
      %v4179 = vadd.f32 %v4175, %v4178
      %vm4180 = vweird.f32 %v3783
      %vm4181 = vweird.f32 %v4175
      %vm4182 = vmor %vm4180, %vm4181
      %v4183 = vsel %vm4182, %v4175, %v4179
      %v4184 = vand.u32 2147483647, %v3783
      %vm4185 = vcmp.eq.f32.partialorder %v4184, 8.507059e+37
      %v4186 = vand.u32 %v3783, 2147483648
      %v4187 = vor.u32 1.1754944e-38, %v4186
      %v4188 = vsel %vm4185, %v4187, %v4183
      %v4189 = vmul.f32 1.0, %v4188
      %v4190 = vrcp.pop %v3784
      %v4191 = vmul.f32 %v3784, %v4190
      %v4192 = vsub.f32 1.0, %v4191
      %v4193 = vmul.f32 %v4190, %v4192
      %v4194 = vadd.f32 %v4190, %v4193
      %vm4195 = vweird.f32 %v3784
      %vm4196 = vweird.f32 %v4190
      %vm4197 = vmor %vm4195, %vm4196
      %v4198 = vsel %vm4197, %v4190, %v4194
      %v4199 = vand.u32 2147483647, %v3784
      %vm4200 = vcmp.eq.f32.partialorder %v4199, 8.507059e+37
      %v4201 = vand.u32 %v3784, 2147483648
      %v4202 = vor.u32 1.1754944e-38, %v4201
      %v4203 = vsel %vm4200, %v4202, %v4198
      %v4204 = vmul.f32 1.0, %v4203
      %v4205 = vrcp.pop %v3785
      %v4206 = vmul.f32 %v3785, %v4205
      %v4207 = vsub.f32 1.0, %v4206
      %v4208 = vmul.f32 %v4205, %v4207
      %v4209 = vadd.f32 %v4205, %v4208
      %vm4210 = vweird.f32 %v3785
      %vm4211 = vweird.f32 %v4205
      %vm4212 = vmor %vm4210, %vm4211
      %v4213 = vsel %vm4212, %v4205, %v4209
      %v4214 = vand.u32 2147483647, %v3785
      %vm4215 = vcmp.eq.f32.partialorder %v4214, 8.507059e+37
      %v4216 = vand.u32 %v3785, 2147483648
      %v4217 = vor.u32 1.1754944e-38, %v4216
      %v4218 = vsel %vm4215, %v4217, %v4213
      %v4219 = vmul.f32 1.0, %v4218
      %v4220 = vrcp.pop %v3786
      %v4221 = vmul.f32 %v3786, %v4220
      %v4222 = vsub.f32 1.0, %v4221
      %v4223 = vmul.f32 %v4220, %v4222
      %v4224 = vadd.f32 %v4220, %v4223
      %vm4225 = vweird.f32 %v3786
      %vm4226 = vweird.f32 %v4220
      %vm4227 = vmor %vm4225, %vm4226
      %v4228 = vsel %vm4227, %v4220, %v4224
      %v4229 = vand.u32 2147483647, %v3786
      %vm4230 = vcmp.eq.f32.partialorder %v4229, 8.507059e+37
      %v4231 = vand.u32 %v3786, 2147483648
      %v4232 = vor.u32 1.1754944e-38, %v4231
      %v4233 = vsel %vm4230, %v4232, %v4228
      %v4234 = vmul.f32 1.0, %v4233
      %v4235 = vrcp.pop %v3787
      %v4236 = vmul.f32 %v3787, %v4235
      %v4237 = vsub.f32 1.0, %v4236
      %v4238 = vmul.f32 %v4235, %v4237
      %v4239 = vadd.f32 %v4235, %v4238
      %vm4240 = vweird.f32 %v3787
      %vm4241 = vweird.f32 %v4235
      %vm4242 = vmor %vm4240, %vm4241
      %v4243 = vsel %vm4242, %v4235, %v4239
      %v4244 = vand.u32 2147483647, %v3787
      %vm4245 = vcmp.eq.f32.partialorder %v4244, 8.507059e+37
      %v4246 = vand.u32 %v3787, 2147483648
      %v4247 = vor.u32 1.1754944e-38, %v4246
      %v4248 = vsel %vm4245, %v4247, %v4243
      %v4249 = vmul.f32 1.0, %v4248
      %v4250 = vrcp.pop %v3788
      %v4251 = vmul.f32 %v3788, %v4250
      %v4252 = vsub.f32 1.0, %v4251
      %v4253 = vmul.f32 %v4250, %v4252
      %v4254 = vadd.f32 %v4250, %v4253
      %vm4255 = vweird.f32 %v3788
      %vm4256 = vweird.f32 %v4250
      %vm4257 = vmor %vm4255, %vm4256
      %v4258 = vsel %vm4257, %v4250, %v4254
      %v4259 = vand.u32 2147483647, %v3788
      %vm4260 = vcmp.eq.f32.partialorder %v4259, 8.507059e+37
      %v4261 = vand.u32 %v3788, 2147483648
      %v4262 = vor.u32 1.1754944e-38, %v4261
      %v4263 = vsel %vm4260, %v4262, %v4258
      %v4264 = vmul.f32 1.0, %v4263
      %v4265 = vrcp.pop %v3789
      %v4266 = vmul.f32 %v3789, %v4265
      %v4267 = vsub.f32 1.0, %v4266
      %v4268 = vmul.f32 %v4265, %v4267
      %v4269 = vadd.f32 %v4265, %v4268
      %vm4270 = vweird.f32 %v3789
      %vm4271 = vweird.f32 %v4265
      %vm4272 = vmor %vm4270, %vm4271
      %v4273 = vsel %vm4272, %v4265, %v4269
      %v4274 = vand.u32 2147483647, %v3789
      %vm4275 = vcmp.eq.f32.partialorder %v4274, 8.507059e+37
      %v4276 = vand.u32 %v3789, 2147483648
      %v4277 = vor.u32 1.1754944e-38, %v4276
      %v4278 = vsel %vm4275, %v4277, %v4273
      %v4279 = vmul.f32 1.0, %v4278
      %v4280 = vrcp.pop %v3790
      %v4281 = vmul.f32 %v3790, %v4280
      %v4282 = vsub.f32 1.0, %v4281
      %v4283 = vmul.f32 %v4280, %v4282
      %v4284 = vadd.f32 %v4280, %v4283
      %vm4285 = vweird.f32 %v3790
      %vm4286 = vweird.f32 %v4280
      %vm4287 = vmor %vm4285, %vm4286
      %v4288 = vsel %vm4287, %v4280, %v4284
      %v4289 = vand.u32 2147483647, %v3790
      %vm4290 = vcmp.eq.f32.partialorder %v4289, 8.507059e+37
      %v4291 = vand.u32 %v3790, 2147483648
      %v4292 = vor.u32 1.1754944e-38, %v4291
      %v4293 = vsel %vm4290, %v4292, %v4288
      %v4294 = vmul.f32 1.0, %v4293
      %v4295 = vrcp.pop %v3791
      %v4296 = vmul.f32 %v3791, %v4295
      %v4297 = vsub.f32 1.0, %v4296
      %v4298 = vmul.f32 %v4295, %v4297
      %v4299 = vadd.f32 %v4295, %v4298
      %vm4300 = vweird.f32 %v3791
      %vm4301 = vweird.f32 %v4295
      %vm4302 = vmor %vm4300, %vm4301
      %v4303 = vsel %vm4302, %v4295, %v4299
      %v4304 = vand.u32 2147483647, %v3791
      %vm4305 = vcmp.eq.f32.partialorder %v4304, 8.507059e+37
      %v4306 = vand.u32 %v3791, 2147483648
      %v4307 = vor.u32 1.1754944e-38, %v4306
      %v4308 = vsel %vm4305, %v4307, %v4303
      %v4309 = vmul.f32 1.0, %v4308
      %v4310 = vrcp.pop %v3792
      %v4311 = vmul.f32 %v3792, %v4310
      %v4312 = vsub.f32 1.0, %v4311
      %v4313 = vmul.f32 %v4310, %v4312
      %v4314 = vadd.f32 %v4310, %v4313
      %vm4315 = vweird.f32 %v3792
      %vm4316 = vweird.f32 %v4310
      %vm4317 = vmor %vm4315, %vm4316
      %v4318 = vsel %vm4317, %v4310, %v4314
      %v4319 = vand.u32 2147483647, %v3792
      %vm4320 = vcmp.eq.f32.partialorder %v4319, 8.507059e+37
      %v4321 = vand.u32 %v3792, 2147483648
      %v4322 = vor.u32 1.1754944e-38, %v4321
      %v4323 = vsel %vm4320, %v4322, %v4318
      %v4324 = vmul.f32 1.0, %v4323
      %v4325 = vrcp.pop %v3793
      %v4326 = vmul.f32 %v3793, %v4325
      %v4327 = vsub.f32 1.0, %v4326
      %v4328 = vmul.f32 %v4325, %v4327
      %v4329 = vadd.f32 %v4325, %v4328
      %vm4330 = vweird.f32 %v3793
      %vm4331 = vweird.f32 %v4325
      %vm4332 = vmor %vm4330, %vm4331
      %v4333 = vsel %vm4332, %v4325, %v4329
      %v4334 = vand.u32 2147483647, %v3793
      %vm4335 = vcmp.eq.f32.partialorder %v4334, 8.507059e+37
      %v4336 = vand.u32 %v3793, 2147483648
      %v4337 = vor.u32 1.1754944e-38, %v4336
      %v4338 = vsel %vm4335, %v4337, %v4333
      %v4339 = vmul.f32 1.0, %v4338
      %v4340 = vrcp.pop %v3794
      %v4341 = vmul.f32 %v3794, %v4340
      %v4342 = vsub.f32 1.0, %v4341
      %v4343 = vmul.f32 %v4340, %v4342
      %v4344 = vadd.f32 %v4340, %v4343
      %vm4345 = vweird.f32 %v3794
      %vm4346 = vweird.f32 %v4340
      %vm4347 = vmor %vm4345, %vm4346
      %v4348 = vsel %vm4347, %v4340, %v4344
      %v4349 = vand.u32 2147483647, %v3794
      %vm4350 = vcmp.eq.f32.partialorder %v4349, 8.507059e+37
      %v4351 = vand.u32 %v3794, 2147483648
      %v4352 = vor.u32 1.1754944e-38, %v4351
      %v4353 = vsel %vm4350, %v4352, %v4348
      %v4354 = vmul.f32 1.0, %v4353
      %v4355 = vrcp.pop %v3795
      %v4356 = vmul.f32 %v3795, %v4355
      %v4357 = vsub.f32 1.0, %v4356
      %v4358 = vmul.f32 %v4355, %v4357
      %v4359 = vadd.f32 %v4355, %v4358
      %vm4360 = vweird.f32 %v3795
      %vm4361 = vweird.f32 %v4355
      %vm4362 = vmor %vm4360, %vm4361
      %v4363 = vsel %vm4362, %v4355, %v4359
      %v4364 = vand.u32 2147483647, %v3795
      %vm4365 = vcmp.eq.f32.partialorder %v4364, 8.507059e+37
      %v4366 = vand.u32 %v3795, 2147483648
      %v4367 = vor.u32 1.1754944e-38, %v4366
      %v4368 = vsel %vm4365, %v4367, %v4363
      %v4369 = vmul.f32 1.0, %v4368
      %v4370 = vrcp.pop %v3796
      %v4371 = vmul.f32 %v3796, %v4370
      %v4372 = vsub.f32 1.0, %v4371
      %v4373 = vmul.f32 %v4370, %v4372
      %v4374 = vadd.f32 %v4370, %v4373
      %vm4375 = vweird.f32 %v3796
      %vm4376 = vweird.f32 %v4370
      %vm4377 = vmor %vm4375, %vm4376
      %v4378 = vsel %vm4377, %v4370, %v4374
      %v4379 = vand.u32 2147483647, %v3796
      %vm4380 = vcmp.eq.f32.partialorder %v4379, 8.507059e+37
      %v4381 = vand.u32 %v3796, 2147483648
      %v4382 = vor.u32 1.1754944e-38, %v4381
      %v4383 = vsel %vm4380, %v4382, %v4378
      %v4384 = vmul.f32 1.0, %v4383
      %v4385 = vrcp.pop %v3797
      %v4386 = vmul.f32 %v3797, %v4385
      %v4387 = vsub.f32 1.0, %v4386
      %v4388 = vmul.f32 %v4385, %v4387
      %v4389 = vadd.f32 %v4385, %v4388
      %vm4390 = vweird.f32 %v3797
      %vm4391 = vweird.f32 %v4385
      %vm4392 = vmor %vm4390, %vm4391
      %v4393 = vsel %vm4392, %v4385, %v4389
      %v4394 = vand.u32 2147483647, %v3797
      %vm4395 = vcmp.eq.f32.partialorder %v4394, 8.507059e+37
      %v4396 = vand.u32 %v3797, 2147483648
      %v4397 = vor.u32 1.1754944e-38, %v4396
      %v4398 = vsel %vm4395, %v4397, %v4393
      %v4399 = vmul.f32 1.0, %v4398
      %v4400 = vrcp.pop %v3798
      %v4401 = vmul.f32 %v3798, %v4400
      %v4402 = vsub.f32 1.0, %v4401
      %v4403 = vmul.f32 %v4400, %v4402
      %v4404 = vadd.f32 %v4400, %v4403
      %vm4405 = vweird.f32 %v3798
      %vm4406 = vweird.f32 %v4400
      %vm4407 = vmor %vm4405, %vm4406
      %v4408 = vsel %vm4407, %v4400, %v4404
      %v4409 = vand.u32 2147483647, %v3798
      %vm4410 = vcmp.eq.f32.partialorder %v4409, 8.507059e+37
      %v4411 = vand.u32 %v3798, 2147483648
      %v4412 = vor.u32 1.1754944e-38, %v4411
      %v4413 = vsel %vm4410, %v4412, %v4408
      %v4414 = vmul.f32 1.0, %v4413
      %v4415 = vrcp.pop %v3799
      %v4416 = vmul.f32 %v3799, %v4415
      %v4417 = vsub.f32 1.0, %v4416
      %v4418 = vmul.f32 %v4415, %v4417
      %v4419 = vadd.f32 %v4415, %v4418
      %vm4420 = vweird.f32 %v3799
      %vm4421 = vweird.f32 %v4415
      %vm4422 = vmor %vm4420, %vm4421
      %v4423 = vsel %vm4422, %v4415, %v4419
      %v4424 = vand.u32 2147483647, %v3799
      %vm4425 = vcmp.eq.f32.partialorder %v4424, 8.507059e+37
      %v4426 = vand.u32 %v3799, 2147483648
      %v4427 = vor.u32 1.1754944e-38, %v4426
      %v4428 = vsel %vm4425, %v4427, %v4423
      %v4429 = vmul.f32 1.0, %v4428
      %v4430 = vrcp.pop %v3800
      %v4431 = vmul.f32 %v3800, %v4430
      %v4432 = vsub.f32 1.0, %v4431
      %v4433 = vmul.f32 %v4430, %v4432
      %v4434 = vadd.f32 %v4430, %v4433
      %vm4435 = vweird.f32 %v3800
      %vm4436 = vweird.f32 %v4430
      %vm4437 = vmor %vm4435, %vm4436
      %v4438 = vsel %vm4437, %v4430, %v4434
      %v4439 = vand.u32 2147483647, %v3800
      %vm4440 = vcmp.eq.f32.partialorder %v4439, 8.507059e+37
      %v4441 = vand.u32 %v3800, 2147483648
      %v4442 = vor.u32 1.1754944e-38, %v4441
      %v4443 = vsel %vm4440, %v4442, %v4438
      %v4444 = vmul.f32 1.0, %v4443
      %v4445 = vrcp.pop %v3801
      %v4446 = vmul.f32 %v3801, %v4445
      %v4447 = vsub.f32 1.0, %v4446
      %v4448 = vmul.f32 %v4445, %v4447
      %v4449 = vadd.f32 %v4445, %v4448
      %vm4450 = vweird.f32 %v3801
      %vm4451 = vweird.f32 %v4445
      %vm4452 = vmor %vm4450, %vm4451
      %v4453 = vsel %vm4452, %v4445, %v4449
      %v4454 = vand.u32 2147483647, %v3801
      %vm4455 = vcmp.eq.f32.partialorder %v4454, 8.507059e+37
      %v4456 = vand.u32 %v3801, 2147483648
      %v4457 = vor.u32 1.1754944e-38, %v4456
      %v4458 = vsel %vm4455, %v4457, %v4453
      %v4459 = vmul.f32 1.0, %v4458
      %v4460 = vrcp.pop %v3802
      %v4461 = vmul.f32 %v3802, %v4460
      %v4462 = vsub.f32 1.0, %v4461
      %v4463 = vmul.f32 %v4460, %v4462
      %v4464 = vadd.f32 %v4460, %v4463
      %vm4465 = vweird.f32 %v3802
      %vm4466 = vweird.f32 %v4460
      %vm4467 = vmor %vm4465, %vm4466
      %v4468 = vsel %vm4467, %v4460, %v4464
      %v4469 = vand.u32 2147483647, %v3802
      %vm4470 = vcmp.eq.f32.partialorder %v4469, 8.507059e+37
      %v4471 = vand.u32 %v3802, 2147483648
      %v4472 = vor.u32 1.1754944e-38, %v4471
      %v4473 = vsel %vm4470, %v4472, %v4468
      %v4474 = vmul.f32 1.0, %v4473
      %v4475 = vrcp.pop %v3803
      %v4476 = vmul.f32 %v3803, %v4475
      %v4477 = vsub.f32 1.0, %v4476
      %v4478 = vmul.f32 %v4475, %v4477
      %v4479 = vadd.f32 %v4475, %v4478
      %vm4480 = vweird.f32 %v3803
      %vm4481 = vweird.f32 %v4475
      %vm4482 = vmor %vm4480, %vm4481
      %v4483 = vsel %vm4482, %v4475, %v4479
      %v4484 = vand.u32 2147483647, %v3803
      %vm4485 = vcmp.eq.f32.partialorder %v4484, 8.507059e+37
      %v4486 = vand.u32 %v3803, 2147483648
      %v4487 = vor.u32 1.1754944e-38, %v4486
      %v4488 = vsel %vm4485, %v4487, %v4483
      %v4489 = vmul.f32 1.0, %v4488
      %v4490 = vrcp.pop %v3804
      %v4491 = vmul.f32 %v3804, %v4490
      %v4492 = vsub.f32 1.0, %v4491
      %v4493 = vmul.f32 %v4490, %v4492
      %v4494 = vadd.f32 %v4490, %v4493
      %vm4495 = vweird.f32 %v3804
      %vm4496 = vweird.f32 %v4490
      %vm4497 = vmor %vm4495, %vm4496
      %v4498 = vsel %vm4497, %v4490, %v4494
      %v4499 = vand.u32 2147483647, %v3804
      %vm4500 = vcmp.eq.f32.partialorder %v4499, 8.507059e+37
      %v4501 = vand.u32 %v3804, 2147483648
      %v4502 = vor.u32 1.1754944e-38, %v4501
      %v4503 = vsel %vm4500, %v4502, %v4498
      %v4504 = vmul.f32 1.0, %v4503
      %v4505 = vrcp.pop %v3805
      %v4506 = vmul.f32 %v3805, %v4505
      %v4507 = vsub.f32 1.0, %v4506
      %v4508 = vmul.f32 %v4505, %v4507
      %v4509 = vadd.f32 %v4505, %v4508
      %vm4510 = vweird.f32 %v3805
      %vm4511 = vweird.f32 %v4505
      %vm4512 = vmor %vm4510, %vm4511
      %v4513 = vsel %vm4512, %v4505, %v4509
      %v4514 = vand.u32 2147483647, %v3805
      %vm4515 = vcmp.eq.f32.partialorder %v4514, 8.507059e+37
      %v4516 = vand.u32 %v3805, 2147483648
      %v4517 = vor.u32 1.1754944e-38, %v4516
      %v4518 = vsel %vm4515, %v4517, %v4513
      %v4519 = vmul.f32 1.0, %v4518
      %v4520 = vrcp.pop %v3806
      %v4521 = vmul.f32 %v3806, %v4520
      %v4522 = vsub.f32 1.0, %v4521
      %v4523 = vmul.f32 %v4520, %v4522
      %v4524 = vadd.f32 %v4520, %v4523
      %vm4525 = vweird.f32 %v3806
      %vm4526 = vweird.f32 %v4520
      %vm4527 = vmor %vm4525, %vm4526
      %v4528 = vsel %vm4527, %v4520, %v4524
      %v4529 = vand.u32 2147483647, %v3806
      %vm4530 = vcmp.eq.f32.partialorder %v4529, 8.507059e+37
      %v4531 = vand.u32 %v3806, 2147483648
      %v4532 = vor.u32 1.1754944e-38, %v4531
      %v4533 = vsel %vm4530, %v4532, %v4528
      %v4534 = vmul.f32 1.0, %v4533
      %v4535 = vrcp.pop %v3807
      %v4536 = vmul.f32 %v3807, %v4535
      %v4537 = vsub.f32 1.0, %v4536
      %v4538 = vmul.f32 %v4535, %v4537
      %v4539 = vadd.f32 %v4535, %v4538
      %vm4540 = vweird.f32 %v3807
      %vm4541 = vweird.f32 %v4535
      %vm4542 = vmor %vm4540, %vm4541
      %v4543 = vsel %vm4542, %v4535, %v4539
      %v4544 = vand.u32 2147483647, %v3807
      %vm4545 = vcmp.eq.f32.partialorder %v4544, 8.507059e+37
      %v4546 = vand.u32 %v3807, 2147483648
      %v4547 = vor.u32 1.1754944e-38, %v4546
      %v4548 = vsel %vm4545, %v4547, %v4543
      %v4549 = vmul.f32 1.0, %v4548
      %v4550 = vrcp.pop %v3808
      %v4551 = vmul.f32 %v3808, %v4550
      %v4552 = vsub.f32 1.0, %v4551
      %v4553 = vmul.f32 %v4550, %v4552
      %v4554 = vadd.f32 %v4550, %v4553
      %vm4555 = vweird.f32 %v3808
      %vm4556 = vweird.f32 %v4550
      %vm4557 = vmor %vm4555, %vm4556
      %v4558 = vsel %vm4557, %v4550, %v4554
      %v4559 = vand.u32 2147483647, %v3808
      %vm4560 = vcmp.eq.f32.partialorder %v4559, 8.507059e+37
      %v4561 = vand.u32 %v3808, 2147483648
      %v4562 = vor.u32 1.1754944e-38, %v4561
      %v4563 = vsel %vm4560, %v4562, %v4558
      %v4564 = vmul.f32 1.0, %v4563
      %v4565 = vrcp.pop %v3809
      %v4566 = vmul.f32 %v3809, %v4565
      %v4567 = vsub.f32 1.0, %v4566
      %v4568 = vmul.f32 %v4565, %v4567
      %v4569 = vadd.f32 %v4565, %v4568
      %vm4570 = vweird.f32 %v3809
      %vm4571 = vweird.f32 %v4565
      %vm4572 = vmor %vm4570, %vm4571
      %v4573 = vsel %vm4572, %v4565, %v4569
      %v4574 = vand.u32 2147483647, %v3809
      %vm4575 = vcmp.eq.f32.partialorder %v4574, 8.507059e+37
      %v4576 = vand.u32 %v3809, 2147483648
      %v4577 = vor.u32 1.1754944e-38, %v4576
      %v4578 = vsel %vm4575, %v4577, %v4573
      %v4579 = vmul.f32 1.0, %v4578
      %v4580 = vrcp.pop %v3810
      %v4581 = vmul.f32 %v3810, %v4580
      %v4582 = vsub.f32 1.0, %v4581
      %v4583 = vmul.f32 %v4580, %v4582
      %v4584 = vadd.f32 %v4580, %v4583
      %vm4585 = vweird.f32 %v3810
      %vm4586 = vweird.f32 %v4580
      %vm4587 = vmor %vm4585, %vm4586
      %v4588 = vsel %vm4587, %v4580, %v4584
      %v4589 = vand.u32 2147483647, %v3810
      %vm4590 = vcmp.eq.f32.partialorder %v4589, 8.507059e+37
      %v4591 = vand.u32 %v3810, 2147483648
      %v4592 = vor.u32 1.1754944e-38, %v4591
      %v4593 = vsel %vm4590, %v4592, %v4588
      %v4594 = vmul.f32 1.0, %v4593
      %v4595 = vrcp.pop %v3811
      %v4596 = vmul.f32 %v3811, %v4595
      %v4597 = vsub.f32 1.0, %v4596
      %v4598 = vmul.f32 %v4595, %v4597
      %v4599 = vadd.f32 %v4595, %v4598
      %vm4600 = vweird.f32 %v3811
      %vm4601 = vweird.f32 %v4595
      %vm4602 = vmor %vm4600, %vm4601
      %v4603 = vsel %vm4602, %v4595, %v4599
      %v4604 = vand.u32 2147483647, %v3811
      %vm4605 = vcmp.eq.f32.partialorder %v4604, 8.507059e+37
      %v4606 = vand.u32 %v3811, 2147483648
      %v4607 = vor.u32 1.1754944e-38, %v4606
      %v4608 = vsel %vm4605, %v4607, %v4603
      %v4609 = vmul.f32 1.0, %v4608
      %v4610 = vrcp.pop %v3812
      %v4611 = vmul.f32 %v3812, %v4610
      %v4612 = vsub.f32 1.0, %v4611
      %v4613 = vmul.f32 %v4610, %v4612
      %v4614 = vadd.f32 %v4610, %v4613
      %vm4615 = vweird.f32 %v3812
      %vm4616 = vweird.f32 %v4610
      %vm4617 = vmor %vm4615, %vm4616
      %v4618 = vsel %vm4617, %v4610, %v4614
      %v4619 = vand.u32 2147483647, %v3812
      %vm4620 = vcmp.eq.f32.partialorder %v4619, 8.507059e+37
      %v4621 = vand.u32 %v3812, 2147483648
      %v4622 = vor.u32 1.1754944e-38, %v4621
      %v4623 = vsel %vm4620, %v4622, %v4618
      %v4624 = vmul.f32 1.0, %v4623
      %v4625 = vrcp.pop %v3813
      %v4626 = vmul.f32 %v3813, %v4625
      %v4627 = vsub.f32 1.0, %v4626
      %v4628 = vmul.f32 %v4625, %v4627
      %v4629 = vadd.f32 %v4625, %v4628
      %vm4630 = vweird.f32 %v3813
      %vm4631 = vweird.f32 %v4625
      %vm4632 = vmor %vm4630, %vm4631
      %v4633 = vsel %vm4632, %v4625, %v4629
      %v4634 = vand.u32 2147483647, %v3813
      %vm4635 = vcmp.eq.f32.partialorder %v4634, 8.507059e+37
      %v4636 = vand.u32 %v3813, 2147483648
      %v4637 = vor.u32 1.1754944e-38, %v4636
      %v4638 = vsel %vm4635, %v4637, %v4633
      %v4639 = vmul.f32 1.0, %v4638
      %v4640 = vrcp.pop %v3814
      %v4641 = vmul.f32 %v3814, %v4640
      %v4642 = vsub.f32 1.0, %v4641
      %v4643 = vmul.f32 %v4640, %v4642
      %v4644 = vadd.f32 %v4640, %v4643
      %vm4645 = vweird.f32 %v3814
      %vm4646 = vweird.f32 %v4640
      %vm4647 = vmor %vm4645, %vm4646
      %v4648 = vsel %vm4647, %v4640, %v4644
      %v4649 = vand.u32 2147483647, %v3814
      %vm4650 = vcmp.eq.f32.partialorder %v4649, 8.507059e+37
      %v4651 = vand.u32 %v3814, 2147483648
      %v4652 = vor.u32 1.1754944e-38, %v4651
      %v4653 = vsel %vm4650, %v4652, %v4648
      %v4654 = vmul.f32 1.0, %v4653
      %v4655 = vrcp.pop %v3815
      %v4656 = vmul.f32 %v3815, %v4655
      %v4657 = vsub.f32 1.0, %v4656
      %v4658 = vmul.f32 %v4655, %v4657
      %v4659 = vadd.f32 %v4655, %v4658
      %vm4660 = vweird.f32 %v3815
      %vm4661 = vweird.f32 %v4655
      %vm4662 = vmor %vm4660, %vm4661
      %v4663 = vsel %vm4662, %v4655, %v4659
      %v4664 = vand.u32 2147483647, %v3815
      %vm4665 = vcmp.eq.f32.partialorder %v4664, 8.507059e+37
      %v4666 = vand.u32 %v3815, 2147483648
      %v4667 = vor.u32 1.1754944e-38, %v4666
      %v4668 = vsel %vm4665, %v4667, %v4663
      %v4669 = vmul.f32 1.0, %v4668
      %v4670 = vrcp.pop %v3816
      %v4671 = vmul.f32 %v3816, %v4670
      %v4672 = vsub.f32 1.0, %v4671
      %v4673 = vmul.f32 %v4670, %v4672
      %v4674 = vadd.f32 %v4670, %v4673
      %vm4675 = vweird.f32 %v3816
      %vm4676 = vweird.f32 %v4670
      %vm4677 = vmor %vm4675, %vm4676
      %v4678 = vsel %vm4677, %v4670, %v4674
      %v4679 = vand.u32 2147483647, %v3816
      %vm4680 = vcmp.eq.f32.partialorder %v4679, 8.507059e+37
      %v4681 = vand.u32 %v3816, 2147483648
      %v4682 = vor.u32 1.1754944e-38, %v4681
      %v4683 = vsel %vm4680, %v4682, %v4678
      %v4684 = vmul.f32 1.0, %v4683
      %v4685 = vrcp.pop %v3817
      %v4686 = vmul.f32 %v3817, %v4685
      %v4687 = vsub.f32 1.0, %v4686
      %v4688 = vmul.f32 %v4685, %v4687
      %v4689 = vadd.f32 %v4685, %v4688
      %vm4690 = vweird.f32 %v3817
      %vm4691 = vweird.f32 %v4685
      %vm4692 = vmor %vm4690, %vm4691
      %v4693 = vsel %vm4692, %v4685, %v4689
      %v4694 = vand.u32 2147483647, %v3817
      %vm4695 = vcmp.eq.f32.partialorder %v4694, 8.507059e+37
      %v4696 = vand.u32 %v3817, 2147483648
      %v4697 = vor.u32 1.1754944e-38, %v4696
      %v4698 = vsel %vm4695, %v4697, %v4693
      %v4699 = vmul.f32 1.0, %v4698
      %v4700 = vrcp.pop %v3818
      %v4701 = vmul.f32 %v3818, %v4700
      %v4702 = vsub.f32 1.0, %v4701
      %v4703 = vmul.f32 %v4700, %v4702
      %v4704 = vadd.f32 %v4700, %v4703
      %vm4705 = vweird.f32 %v3818
      %vm4706 = vweird.f32 %v4700
      %vm4707 = vmor %vm4705, %vm4706
      %v4708 = vsel %vm4707, %v4700, %v4704
      %v4709 = vand.u32 2147483647, %v3818
      %vm4710 = vcmp.eq.f32.partialorder %v4709, 8.507059e+37
      %v4711 = vand.u32 %v3818, 2147483648
      %v4712 = vor.u32 1.1754944e-38, %v4711
      %v4713 = vsel %vm4710, %v4712, %v4708
      %v4714 = vmul.f32 1.0, %v4713
      %v4715 = vrcp.pop %v3819
      %v4716 = vmul.f32 %v3819, %v4715
      %v4717 = vsub.f32 1.0, %v4716
      %v4718 = vmul.f32 %v4715, %v4717
      %v4719 = vadd.f32 %v4715, %v4718
      %vm4720 = vweird.f32 %v3819
      %vm4721 = vweird.f32 %v4715
      %vm4722 = vmor %vm4720, %vm4721
      %v4723 = vsel %vm4722, %v4715, %v4719
      %v4724 = vand.u32 2147483647, %v3819
      %vm4725 = vcmp.eq.f32.partialorder %v4724, 8.507059e+37
      %v4726 = vand.u32 %v3819, 2147483648
      %v4727 = vor.u32 1.1754944e-38, %v4726
      %v4728 = vsel %vm4725, %v4727, %v4723
      %v4729 = vmul.f32 1.0, %v4728
      %v4730 = vrcp.pop %v3820
      %v4731 = vmul.f32 %v3820, %v4730
      %v4732 = vsub.f32 1.0, %v4731
      %v4733 = vmul.f32 %v4730, %v4732
      %v4734 = vadd.f32 %v4730, %v4733
      %vm4735 = vweird.f32 %v3820
      %vm4736 = vweird.f32 %v4730
      %vm4737 = vmor %vm4735, %vm4736
      %v4738 = vsel %vm4737, %v4730, %v4734
      %v4739 = vand.u32 2147483647, %v3820
      %vm4740 = vcmp.eq.f32.partialorder %v4739, 8.507059e+37
      %v4741 = vand.u32 %v3820, 2147483648
      %v4742 = vor.u32 1.1754944e-38, %v4741
      %v4743 = vsel %vm4740, %v4742, %v4738
      %v4744 = vmul.f32 1.0, %v4743
      %v4745 = vrcp.pop %v3821
      %v4746 = vmul.f32 %v3821, %v4745
      %v4747 = vsub.f32 1.0, %v4746
      %v4748 = vmul.f32 %v4745, %v4747
      %v4749 = vadd.f32 %v4745, %v4748
      %vm4750 = vweird.f32 %v3821
      %vm4751 = vweird.f32 %v4745
      %vm4752 = vmor %vm4750, %vm4751
      %v4753 = vsel %vm4752, %v4745, %v4749
      %v4754 = vand.u32 2147483647, %v3821
      %vm4755 = vcmp.eq.f32.partialorder %v4754, 8.507059e+37
      %v4756 = vand.u32 %v3821, 2147483648
      %v4757 = vor.u32 1.1754944e-38, %v4756
      %v4758 = vsel %vm4755, %v4757, %v4753
      %v4759 = vmul.f32 1.0, %v4758
      %v4760 = vrcp.pop %v3822
      %v4761 = vmul.f32 %v3822, %v4760
      %v4762 = vsub.f32 1.0, %v4761
      %v4763 = vmul.f32 %v4760, %v4762
      %v4764 = vadd.f32 %v4760, %v4763
      %vm4765 = vweird.f32 %v3822
      %vm4766 = vweird.f32 %v4760
      %vm4767 = vmor %vm4765, %vm4766
      %v4768 = vsel %vm4767, %v4760, %v4764
      %v4769 = vand.u32 2147483647, %v3822
      %vm4770 = vcmp.eq.f32.partialorder %v4769, 8.507059e+37
      %v4771 = vand.u32 %v3822, 2147483648
      %v4772 = vor.u32 1.1754944e-38, %v4771
      %v4773 = vsel %vm4770, %v4772, %v4768
      %v4774 = vmul.f32 1.0, %v4773
      %v4775 = vrcp.pop %v3823
      %v4776 = vmul.f32 %v3823, %v4775
      %v4777 = vsub.f32 1.0, %v4776
      %v4778 = vmul.f32 %v4775, %v4777
      %v4779 = vadd.f32 %v4775, %v4778
      %vm4780 = vweird.f32 %v3823
      %vm4781 = vweird.f32 %v4775
      %vm4782 = vmor %vm4780, %vm4781
      %v4783 = vsel %vm4782, %v4775, %v4779
      %v4784 = vand.u32 2147483647, %v3823
      %vm4785 = vcmp.eq.f32.partialorder %v4784, 8.507059e+37
      %v4786 = vand.u32 %v3823, 2147483648
      %v4787 = vor.u32 1.1754944e-38, %v4786
      %v4788 = vsel %vm4785, %v4787, %v4783
      %v4789 = vmul.f32 1.0, %v4788
      %v4790 = vrcp.pop %v3824
      %v4791 = vmul.f32 %v3824, %v4790
      %v4792 = vsub.f32 1.0, %v4791
      %v4793 = vmul.f32 %v4790, %v4792
      %v4794 = vadd.f32 %v4790, %v4793
      %vm4795 = vweird.f32 %v3824
      %vm4796 = vweird.f32 %v4790
      %vm4797 = vmor %vm4795, %vm4796
      %v4798 = vsel %vm4797, %v4790, %v4794
      %v4799 = vand.u32 2147483647, %v3824
      %vm4800 = vcmp.eq.f32.partialorder %v4799, 8.507059e+37
      %v4801 = vand.u32 %v3824, 2147483648
      %v4802 = vor.u32 1.1754944e-38, %v4801
      %v4803 = vsel %vm4800, %v4802, %v4798
      %v4804 = vmul.f32 1.0, %v4803
      %v4805 = vrcp.pop %v3825
      %v4806 = vmul.f32 %v3825, %v4805
      %v4807 = vsub.f32 1.0, %v4806
      %v4808 = vmul.f32 %v4805, %v4807
      %v4809 = vadd.f32 %v4805, %v4808
      %vm4810 = vweird.f32 %v3825
      %vm4811 = vweird.f32 %v4805
      %vm4812 = vmor %vm4810, %vm4811
      %v4813 = vsel %vm4812, %v4805, %v4809
      %v4814 = vand.u32 2147483647, %v3825
      %vm4815 = vcmp.eq.f32.partialorder %v4814, 8.507059e+37
      %v4816 = vand.u32 %v3825, 2147483648
      %v4817 = vor.u32 1.1754944e-38, %v4816
      %v4818 = vsel %vm4815, %v4817, %v4813
      %v4819 = vmul.f32 1.0, %v4818
      %v4820 = vrcp.pop %v3826
      %v4821 = vmul.f32 %v3826, %v4820
      %v4822 = vsub.f32 1.0, %v4821
      %v4823 = vmul.f32 %v4820, %v4822
      %v4824 = vadd.f32 %v4820, %v4823
      %vm4825 = vweird.f32 %v3826
      %vm4826 = vweird.f32 %v4820
      %vm4827 = vmor %vm4825, %vm4826
      %v4828 = vsel %vm4827, %v4820, %v4824
      %v4829 = vand.u32 2147483647, %v3826
      %vm4830 = vcmp.eq.f32.partialorder %v4829, 8.507059e+37
      %v4831 = vand.u32 %v3826, 2147483648
      %v4832 = vor.u32 1.1754944e-38, %v4831
      %v4833 = vsel %vm4830, %v4832, %v4828
      %v4834 = vmul.f32 1.0, %v4833
      %v4835 = vrcp.pop %v3827
      %v4836 = vmul.f32 %v3827, %v4835
      %v4837 = vsub.f32 1.0, %v4836
      %v4838 = vmul.f32 %v4835, %v4837
      %v4839 = vadd.f32 %v4835, %v4838
      %vm4840 = vweird.f32 %v3827
      %vm4841 = vweird.f32 %v4835
      %vm4842 = vmor %vm4840, %vm4841
      %v4843 = vsel %vm4842, %v4835, %v4839
      %v4844 = vand.u32 2147483647, %v3827
      %vm4845 = vcmp.eq.f32.partialorder %v4844, 8.507059e+37
      %v4846 = vand.u32 %v3827, 2147483648
      %v4847 = vor.u32 1.1754944e-38, %v4846
      %v4848 = vsel %vm4845, %v4847, %v4843
      %v4849 = vmul.f32 1.0, %v4848
      %v4850 = vrcp.pop %v3828
      %v4851 = vmul.f32 %v3828, %v4850
      %v4852 = vsub.f32 1.0, %v4851
      %v4853 = vmul.f32 %v4850, %v4852
      %v4854 = vadd.f32 %v4850, %v4853
      %vm4855 = vweird.f32 %v3828
      %vm4856 = vweird.f32 %v4850
      %vm4857 = vmor %vm4855, %vm4856
      %v4858 = vsel %vm4857, %v4850, %v4854
      %v4859 = vand.u32 2147483647, %v3828
      %vm4860 = vcmp.eq.f32.partialorder %v4859, 8.507059e+37
      %v4861 = vand.u32 %v3828, 2147483648
      %v4862 = vor.u32 1.1754944e-38, %v4861
      %v4863 = vsel %vm4860, %v4862, %v4858
      %v4864 = vmul.f32 1.0, %v4863
      %v4865 = vrcp.pop %v3829
      %v4866 = vmul.f32 %v3829, %v4865
      %v4867 = vsub.f32 1.0, %v4866
      %v4868 = vmul.f32 %v4865, %v4867
      %v4869 = vadd.f32 %v4865, %v4868
      %vm4870 = vweird.f32 %v3829
      %vm4871 = vweird.f32 %v4865
      %vm4872 = vmor %vm4870, %vm4871
      %v4873 = vsel %vm4872, %v4865, %v4869
      %v4874 = vand.u32 2147483647, %v3829
      %vm4875 = vcmp.eq.f32.partialorder %v4874, 8.507059e+37
      %v4876 = vand.u32 %v3829, 2147483648
      %v4877 = vor.u32 1.1754944e-38, %v4876
      %v4878 = vsel %vm4875, %v4877, %v4873
      %v4879 = vmul.f32 1.0, %v4878
      %v4880 = vrcp.pop %v3830
      %v4881 = vmul.f32 %v3830, %v4880
      %v4882 = vsub.f32 1.0, %v4881
      %v4883 = vmul.f32 %v4880, %v4882
      %v4884 = vadd.f32 %v4880, %v4883
      %vm4885 = vweird.f32 %v3830
      %vm4886 = vweird.f32 %v4880
      %vm4887 = vmor %vm4885, %vm4886
      %v4888 = vsel %vm4887, %v4880, %v4884
      %v4889 = vand.u32 2147483647, %v3830
      %vm4890 = vcmp.eq.f32.partialorder %v4889, 8.507059e+37
      %v4891 = vand.u32 %v3830, 2147483648
      %v4892 = vor.u32 1.1754944e-38, %v4891
      %v4893 = vsel %vm4890, %v4892, %v4888
      %v4894 = vmul.f32 1.0, %v4893
      %v4895 = vrcp.pop %v3831
      %v4896 = vmul.f32 %v3831, %v4895
      %v4897 = vsub.f32 1.0, %v4896
      %v4898 = vmul.f32 %v4895, %v4897
      %v4899 = vadd.f32 %v4895, %v4898
      %vm4900 = vweird.f32 %v3831
      %vm4901 = vweird.f32 %v4895
      %vm4902 = vmor %vm4900, %vm4901
      %v4903 = vsel %vm4902, %v4895, %v4899
      %v4904 = vand.u32 2147483647, %v3831
      %vm4905 = vcmp.eq.f32.partialorder %v4904, 8.507059e+37
      %v4906 = vand.u32 %v3831, 2147483648
      %v4907 = vor.u32 1.1754944e-38, %v4906
      %v4908 = vsel %vm4905, %v4907, %v4903
      %v4909 = vmul.f32 1.0, %v4908
      %v4910 = vrcp.pop %v3832
      %v4911 = vmul.f32 %v3832, %v4910
      %v4912 = vsub.f32 1.0, %v4911
      %v4913 = vmul.f32 %v4910, %v4912
      %v4914 = vadd.f32 %v4910, %v4913
      %vm4915 = vweird.f32 %v3832
      %vm4916 = vweird.f32 %v4910
      %vm4917 = vmor %vm4915, %vm4916
      %v4918 = vsel %vm4917, %v4910, %v4914
      %v4919 = vand.u32 2147483647, %v3832
      %vm4920 = vcmp.eq.f32.partialorder %v4919, 8.507059e+37
      %v4921 = vand.u32 %v3832, 2147483648
      %v4922 = vor.u32 1.1754944e-38, %v4921
      %v4923 = vsel %vm4920, %v4922, %v4918
      %v4924 = vmul.f32 1.0, %v4923
      %v4925 = vrcp.pop %v3833
      %v4926 = vmul.f32 %v3833, %v4925
      %v4927 = vsub.f32 1.0, %v4926
      %v4928 = vmul.f32 %v4925, %v4927
      %v4929 = vadd.f32 %v4925, %v4928
      %vm4930 = vweird.f32 %v3833
      %vm4931 = vweird.f32 %v4925
      %vm4932 = vmor %vm4930, %vm4931
      %v4933 = vsel %vm4932, %v4925, %v4929
      %v4934 = vand.u32 2147483647, %v3833
      %vm4935 = vcmp.eq.f32.partialorder %v4934, 8.507059e+37
      %v4936 = vand.u32 %v3833, 2147483648
      %v4937 = vor.u32 1.1754944e-38, %v4936
      %v4938 = vsel %vm4935, %v4937, %v4933
      %v4939 = vmul.f32 1.0, %v4938
      %v4940 = vrcp.pop %v3834
      %v4941 = vmul.f32 %v3834, %v4940
      %v4942 = vsub.f32 1.0, %v4941
      %v4943 = vmul.f32 %v4940, %v4942
      %v4944 = vadd.f32 %v4940, %v4943
      %vm4945 = vweird.f32 %v3834
      %vm4946 = vweird.f32 %v4940
      %vm4947 = vmor %vm4945, %vm4946
      %v4948 = vsel %vm4947, %v4940, %v4944
      %v4949 = vand.u32 2147483647, %v3834
      %vm4950 = vcmp.eq.f32.partialorder %v4949, 8.507059e+37
      %v4951 = vand.u32 %v3834, 2147483648
      %v4952 = vor.u32 1.1754944e-38, %v4951
      %v4953 = vsel %vm4950, %v4952, %v4948
      %v4954 = vmul.f32 1.0, %v4953
      %v4955 = vrcp.pop %v3835
      %v4956 = vmul.f32 %v3835, %v4955
      %v4957 = vsub.f32 1.0, %v4956
      %v4958 = vmul.f32 %v4955, %v4957
      %v4959 = vadd.f32 %v4955, %v4958
      %vm4960 = vweird.f32 %v3835
      %vm4961 = vweird.f32 %v4955
      %vm4962 = vmor %vm4960, %vm4961
      %v4963 = vsel %vm4962, %v4955, %v4959
      %v4964 = vand.u32 2147483647, %v3835
      %vm4965 = vcmp.eq.f32.partialorder %v4964, 8.507059e+37
      %v4966 = vand.u32 %v3835, 2147483648
      %v4967 = vor.u32 1.1754944e-38, %v4966
      %v4968 = vsel %vm4965, %v4967, %v4963
      %v4969 = vmul.f32 1.0, %v4968
      %v4970 = vrcp.pop %v3836
      %v4971 = vmul.f32 %v3836, %v4970
      %v4972 = vsub.f32 1.0, %v4971
      %v4973 = vmul.f32 %v4970, %v4972
      %v4974 = vadd.f32 %v4970, %v4973
      %vm4975 = vweird.f32 %v3836
      %vm4976 = vweird.f32 %v4970
      %vm4977 = vmor %vm4975, %vm4976
      %v4978 = vsel %vm4977, %v4970, %v4974
      %v4979 = vand.u32 2147483647, %v3836
      %vm4980 = vcmp.eq.f32.partialorder %v4979, 8.507059e+37
      %v4981 = vand.u32 %v3836, 2147483648
      %v4982 = vor.u32 1.1754944e-38, %v4981
      %v4983 = vsel %vm4980, %v4982, %v4978
      %v4984 = vmul.f32 1.0, %v4983
      %v4985 = vrcp.pop %v3837
      %v4986 = vmul.f32 %v3837, %v4985
      %v4987 = vsub.f32 1.0, %v4986
      %v4988 = vmul.f32 %v4985, %v4987
      %v4989 = vadd.f32 %v4985, %v4988
      %vm4990 = vweird.f32 %v3837
      %vm4991 = vweird.f32 %v4985
      %vm4992 = vmor %vm4990, %vm4991
      %v4993 = vsel %vm4992, %v4985, %v4989
      %v4994 = vand.u32 2147483647, %v3837
      %vm4995 = vcmp.eq.f32.partialorder %v4994, 8.507059e+37
      %v4996 = vand.u32 %v3837, 2147483648
      %v4997 = vor.u32 1.1754944e-38, %v4996
      %v4998 = vsel %vm4995, %v4997, %v4993
      %v4999 = vmul.f32 1.0, %v4998
      %v5000 = vrcp.pop %v3838
      %v5001 = vmul.f32 %v3838, %v5000
      %v5002 = vsub.f32 1.0, %v5001
      %v5003 = vmul.f32 %v5000, %v5002
      %v5004 = vadd.f32 %v5000, %v5003
      %vm5005 = vweird.f32 %v3838
      %vm5006 = vweird.f32 %v5000
      %vm5007 = vmor %vm5005, %vm5006
      %v5008 = vsel %vm5007, %v5000, %v5004
      %v5009 = vand.u32 2147483647, %v3838
      %vm5010 = vcmp.eq.f32.partialorder %v5009, 8.507059e+37
      %v5011 = vand.u32 %v3838, 2147483648
      %v5012 = vor.u32 1.1754944e-38, %v5011
      %v5013 = vsel %vm5010, %v5012, %v5008
      %v5014 = vmul.f32 1.0, %v5013
      %v5015 = vrcp.pop %v3839
      %v5016 = vmul.f32 %v3839, %v5015
      %v5017 = vsub.f32 1.0, %v5016
      %v5018 = vmul.f32 %v5015, %v5017
      %v5019 = vadd.f32 %v5015, %v5018
      %vm5020 = vweird.f32 %v3839
      %vm5021 = vweird.f32 %v5015
      %vm5022 = vmor %vm5020, %vm5021
      %v5023 = vsel %vm5022, %v5015, %v5019
      %v5024 = vand.u32 2147483647, %v3839
      %vm5025 = vcmp.eq.f32.partialorder %v5024, 8.507059e+37
      %v5026 = vand.u32 %v3839, 2147483648
      %v5027 = vor.u32 1.1754944e-38, %v5026
      %v5028 = vsel %vm5025, %v5027, %v5023
      %v5029 = vmul.f32 1.0, %v5028
      %v5030 = vrcp.pop %v3840
      %v5031 = vmul.f32 %v3840, %v5030
      %v5032 = vsub.f32 1.0, %v5031
      %v5033 = vmul.f32 %v5030, %v5032
      %v5034 = vadd.f32 %v5030, %v5033
      %vm5035 = vweird.f32 %v3840
      %vm5036 = vweird.f32 %v5030
      %vm5037 = vmor %vm5035, %vm5036
      %v5038 = vsel %vm5037, %v5030, %v5034
      %v5039 = vand.u32 2147483647, %v3840
      %vm5040 = vcmp.eq.f32.partialorder %v5039, 8.507059e+37
      %v5041 = vand.u32 %v3840, 2147483648
      %v5042 = vor.u32 1.1754944e-38, %v5041
      %v5043 = vsel %vm5040, %v5042, %v5038
      %v5044 = vmul.f32 1.0, %v5043
      %v5045 = vrcp.pop %v3841
      %v5046 = vmul.f32 %v3841, %v5045
      %v5047 = vsub.f32 1.0, %v5046
      %v5048 = vmul.f32 %v5045, %v5047
      %v5049 = vadd.f32 %v5045, %v5048
      %vm5050 = vweird.f32 %v3841
      %vm5051 = vweird.f32 %v5045
      %vm5052 = vmor %vm5050, %vm5051
      %v5053 = vsel %vm5052, %v5045, %v5049
      %v5054 = vand.u32 2147483647, %v3841
      %vm5055 = vcmp.eq.f32.partialorder %v5054, 8.507059e+37
      %v5056 = vand.u32 %v3841, 2147483648
      %v5057 = vor.u32 1.1754944e-38, %v5056
      %v5058 = vsel %vm5055, %v5057, %v5053
      %v5059 = vmul.f32 1.0, %v5058
      %v5060 = vrcp.pop %v3842
      %v5061 = vmul.f32 %v3842, %v5060
      %v5062 = vsub.f32 1.0, %v5061
      %v5063 = vmul.f32 %v5060, %v5062
      %v5064 = vadd.f32 %v5060, %v5063
      %vm5065 = vweird.f32 %v3842
      %vm5066 = vweird.f32 %v5060
      %vm5067 = vmor %vm5065, %vm5066
      %v5068 = vsel %vm5067, %v5060, %v5064
      %v5069 = vand.u32 2147483647, %v3842
      %vm5070 = vcmp.eq.f32.partialorder %v5069, 8.507059e+37
      %v5071 = vand.u32 %v3842, 2147483648
      %v5072 = vor.u32 1.1754944e-38, %v5071
      %v5073 = vsel %vm5070, %v5072, %v5068
      %v5074 = vmul.f32 1.0, %v5073
      %v5075 = vrcp.pop %v3843
      %v5076 = vmul.f32 %v3843, %v5075
      %v5077 = vsub.f32 1.0, %v5076
      %v5078 = vmul.f32 %v5075, %v5077
      %v5079 = vadd.f32 %v5075, %v5078
      %vm5080 = vweird.f32 %v3843
      %vm5081 = vweird.f32 %v5075
      %vm5082 = vmor %vm5080, %vm5081
      %v5083 = vsel %vm5082, %v5075, %v5079
      %v5084 = vand.u32 2147483647, %v3843
      %vm5085 = vcmp.eq.f32.partialorder %v5084, 8.507059e+37
      %v5086 = vand.u32 %v3843, 2147483648
      %v5087 = vor.u32 1.1754944e-38, %v5086
      %v5088 = vsel %vm5085, %v5087, %v5083
      %v5089 = vmul.f32 1.0, %v5088
      %v5090 = vrcp.pop %v3844
      %v5091 = vmul.f32 %v3844, %v5090
      %v5092 = vsub.f32 1.0, %v5091
      %v5093 = vmul.f32 %v5090, %v5092
      %v5094 = vadd.f32 %v5090, %v5093
      %vm5095 = vweird.f32 %v3844
      %vm5096 = vweird.f32 %v5090
      %vm5097 = vmor %vm5095, %vm5096
      %v5098 = vsel %vm5097, %v5090, %v5094
      %v5099 = vand.u32 2147483647, %v3844
      %vm5100 = vcmp.eq.f32.partialorder %v5099, 8.507059e+37
      %v5101 = vand.u32 %v3844, 2147483648
      %v5102 = vor.u32 1.1754944e-38, %v5101
      %v5103 = vsel %vm5100, %v5102, %v5098
      %v5104 = vmul.f32 1.0, %v5103
      %v5105 = vrcp.pop %v3845
      %v5106 = vmul.f32 %v3845, %v5105
      %v5107 = vsub.f32 1.0, %v5106
      %v5108 = vmul.f32 %v5105, %v5107
      %v5109 = vadd.f32 %v5105, %v5108
      %vm5110 = vweird.f32 %v3845
      %vm5111 = vweird.f32 %v5105
      %vm5112 = vmor %vm5110, %vm5111
      %v5113 = vsel %vm5112, %v5105, %v5109
      %v5114 = vand.u32 2147483647, %v3845
      %vm5115 = vcmp.eq.f32.partialorder %v5114, 8.507059e+37
      %v5116 = vand.u32 %v3845, 2147483648
      %v5117 = vor.u32 1.1754944e-38, %v5116
      %v5118 = vsel %vm5115, %v5117, %v5113
      %v5119 = vmul.f32 1.0, %v5118
      %v5120 = vrcp.pop %v3846
      %v5121 = vmul.f32 %v3846, %v5120
      %v5122 = vsub.f32 1.0, %v5121
      %v5123 = vmul.f32 %v5120, %v5122
      %v5124 = vadd.f32 %v5120, %v5123
      %vm5125 = vweird.f32 %v3846
      %vm5126 = vweird.f32 %v5120
      %vm5127 = vmor %vm5125, %vm5126
      %v5128 = vsel %vm5127, %v5120, %v5124
      %v5129 = vand.u32 2147483647, %v3846
      %vm5130 = vcmp.eq.f32.partialorder %v5129, 8.507059e+37
      %v5131 = vand.u32 %v3846, 2147483648
      %v5132 = vor.u32 1.1754944e-38, %v5131
      %v5133 = vsel %vm5130, %v5132, %v5128
      %v5134 = vmul.f32 1.0, %v5133
      %v5135 = vrcp.pop %v3847
      %v5136 = vmul.f32 %v3847, %v5135
      %v5137 = vsub.f32 1.0, %v5136
      %v5138 = vmul.f32 %v5135, %v5137
      %v5139 = vadd.f32 %v5135, %v5138
      %vm5140 = vweird.f32 %v3847
      %vm5141 = vweird.f32 %v5135
      %vm5142 = vmor %vm5140, %vm5141
      %v5143 = vsel %vm5142, %v5135, %v5139
      %v5144 = vand.u32 2147483647, %v3847
      %vm5145 = vcmp.eq.f32.partialorder %v5144, 8.507059e+37
      %v5146 = vand.u32 %v3847, 2147483648
      %v5147 = vor.u32 1.1754944e-38, %v5146
      %v5148 = vsel %vm5145, %v5147, %v5143
      %v5149 = vmul.f32 1.0, %v5148
      %v5150 = vrcp.pop %v3848
      %v5151 = vmul.f32 %v3848, %v5150
      %v5152 = vsub.f32 1.0, %v5151
      %v5153 = vmul.f32 %v5150, %v5152
      %v5154 = vadd.f32 %v5150, %v5153
      %vm5155 = vweird.f32 %v3848
      %vm5156 = vweird.f32 %v5150
      %vm5157 = vmor %vm5155, %vm5156
      %v5158 = vsel %vm5157, %v5150, %v5154
      %v5159 = vand.u32 2147483647, %v3848
      %vm5160 = vcmp.eq.f32.partialorder %v5159, 8.507059e+37
      %v5161 = vand.u32 %v3848, 2147483648
      %v5162 = vor.u32 1.1754944e-38, %v5161
      %v5163 = vsel %vm5160, %v5162, %v5158
      %v5164 = vmul.f32 1.0, %v5163
      %v5165 = vrcp.pop %v3849
      %v5166 = vmul.f32 %v3849, %v5165
      %v5167 = vsub.f32 1.0, %v5166
      %v5168 = vmul.f32 %v5165, %v5167
      %v5169 = vadd.f32 %v5165, %v5168
      %vm5170 = vweird.f32 %v3849
      %vm5171 = vweird.f32 %v5165
      %vm5172 = vmor %vm5170, %vm5171
      %v5173 = vsel %vm5172, %v5165, %v5169
      %v5174 = vand.u32 2147483647, %v3849
      %vm5175 = vcmp.eq.f32.partialorder %v5174, 8.507059e+37
      %v5176 = vand.u32 %v3849, 2147483648
      %v5177 = vor.u32 1.1754944e-38, %v5176
      %v5178 = vsel %vm5175, %v5177, %v5173
      %v5179 = vmul.f32 1.0, %v5178
      %v5180 = vrcp.pop %v3850
      %v5181 = vmul.f32 %v3850, %v5180
      %v5182 = vsub.f32 1.0, %v5181
      %v5183 = vmul.f32 %v5180, %v5182
      %v5184 = vadd.f32 %v5180, %v5183
      %vm5185 = vweird.f32 %v3850
      %vm5186 = vweird.f32 %v5180
      %vm5187 = vmor %vm5185, %vm5186
      %v5188 = vsel %vm5187, %v5180, %v5184
      %v5189 = vand.u32 2147483647, %v3850
      %vm5190 = vcmp.eq.f32.partialorder %v5189, 8.507059e+37
      %v5191 = vand.u32 %v3850, 2147483648
      %v5192 = vor.u32 1.1754944e-38, %v5191
      %v5193 = vsel %vm5190, %v5192, %v5188
      %v5194 = vmul.f32 1.0, %v5193
      %v5195 = vrcp.pop %v3851
      %v5196 = vmul.f32 %v3851, %v5195
      %v5197 = vsub.f32 1.0, %v5196
      %v5198 = vmul.f32 %v5195, %v5197
      %v5199 = vadd.f32 %v5195, %v5198
      %vm5200 = vweird.f32 %v3851
      %vm5201 = vweird.f32 %v5195
      %vm5202 = vmor %vm5200, %vm5201
      %v5203 = vsel %vm5202, %v5195, %v5199
      %v5204 = vand.u32 2147483647, %v3851
      %vm5205 = vcmp.eq.f32.partialorder %v5204, 8.507059e+37
      %v5206 = vand.u32 %v3851, 2147483648
      %v5207 = vor.u32 1.1754944e-38, %v5206
      %v5208 = vsel %vm5205, %v5207, %v5203
      %v5209 = vmul.f32 1.0, %v5208
      %v5210 = vrcp.pop %v3852
      %v5211 = vmul.f32 %v3852, %v5210
      %v5212 = vsub.f32 1.0, %v5211
      %v5213 = vmul.f32 %v5210, %v5212
      %v5214 = vadd.f32 %v5210, %v5213
      %vm5215 = vweird.f32 %v3852
      %vm5216 = vweird.f32 %v5210
      %vm5217 = vmor %vm5215, %vm5216
      %v5218 = vsel %vm5217, %v5210, %v5214
      %v5219 = vand.u32 2147483647, %v3852
      %vm5220 = vcmp.eq.f32.partialorder %v5219, 8.507059e+37
      %v5221 = vand.u32 %v3852, 2147483648
      %v5222 = vor.u32 1.1754944e-38, %v5221
      %v5223 = vsel %vm5220, %v5222, %v5218
      %v5224 = vmul.f32 1.0, %v5223
      %v5225 = vrcp.pop %v3853
      %v5226 = vmul.f32 %v3853, %v5225
      %v5227 = vsub.f32 1.0, %v5226
      %v5228 = vmul.f32 %v5225, %v5227
      %v5229 = vadd.f32 %v5225, %v5228
      %vm5230 = vweird.f32 %v3853
      %vm5231 = vweird.f32 %v5225
      %vm5232 = vmor %vm5230, %vm5231
      %v5233 = vsel %vm5232, %v5225, %v5229
      %v5234 = vand.u32 2147483647, %v3853
      %vm5235 = vcmp.eq.f32.partialorder %v5234, 8.507059e+37
      %v5236 = vand.u32 %v3853, 2147483648
      %v5237 = vor.u32 1.1754944e-38, %v5236
      %v5238 = vsel %vm5235, %v5237, %v5233
      %v5239 = vmul.f32 1.0, %v5238
      %v5240 = vrcp.pop %v3854
      %v5241 = vmul.f32 %v3854, %v5240
      %v5242 = vsub.f32 1.0, %v5241
      %v5243 = vmul.f32 %v5240, %v5242
      %v5244 = vadd.f32 %v5240, %v5243
      %vm5245 = vweird.f32 %v3854
      %vm5246 = vweird.f32 %v5240
      %vm5247 = vmor %vm5245, %vm5246
      %v5248 = vsel %vm5247, %v5240, %v5244
      %v5249 = vand.u32 2147483647, %v3854
      %vm5250 = vcmp.eq.f32.partialorder %v5249, 8.507059e+37
      %v5251 = vand.u32 %v3854, 2147483648
      %v5252 = vor.u32 1.1754944e-38, %v5251
      %v5253 = vsel %vm5250, %v5252, %v5248
      %v5254 = vmul.f32 1.0, %v5253
      %v5255 = vrcp.pop %v3855
      %v5256 = vmul.f32 %v3855, %v5255
      %v5257 = vsub.f32 1.0, %v5256
      %v5258 = vmul.f32 %v5255, %v5257
      %v5259 = vadd.f32 %v5255, %v5258
      %vm5260 = vweird.f32 %v3855
      %vm5261 = vweird.f32 %v5255
      %vm5262 = vmor %vm5260, %vm5261
      %v5263 = vsel %vm5262, %v5255, %v5259
      %v5264 = vand.u32 2147483647, %v3855
      %vm5265 = vcmp.eq.f32.partialorder %v5264, 8.507059e+37
      %v5266 = vand.u32 %v3855, 2147483648
      %v5267 = vor.u32 1.1754944e-38, %v5266
      %v5268 = vsel %vm5265, %v5267, %v5263
      %v5269 = vmul.f32 1.0, %v5268
      %v5270 = vrcp.pop %v3856
      %v5271 = vmul.f32 %v3856, %v5270
      %v5272 = vsub.f32 1.0, %v5271
      %v5273 = vmul.f32 %v5270, %v5272
      %v5274 = vadd.f32 %v5270, %v5273
      %vm5275 = vweird.f32 %v3856
      %vm5276 = vweird.f32 %v5270
      %vm5277 = vmor %vm5275, %vm5276
      %v5278 = vsel %vm5277, %v5270, %v5274
      %v5279 = vand.u32 2147483647, %v3856
      %vm5280 = vcmp.eq.f32.partialorder %v5279, 8.507059e+37
      %v5281 = vand.u32 %v3856, 2147483648
      %v5282 = vor.u32 1.1754944e-38, %v5281
      %v5283 = vsel %vm5280, %v5282, %v5278
      %v5284 = vmul.f32 1.0, %v5283
      %v5285 = vrcp.pop %v3857
      %v5286 = vmul.f32 %v3857, %v5285
      %v5287 = vsub.f32 1.0, %v5286
      %v5288 = vmul.f32 %v5285, %v5287
      %v5289 = vadd.f32 %v5285, %v5288
      %vm5290 = vweird.f32 %v3857
      %vm5291 = vweird.f32 %v5285
      %vm5292 = vmor %vm5290, %vm5291
      %v5293 = vsel %vm5292, %v5285, %v5289
      %v5294 = vand.u32 2147483647, %v3857
      %vm5295 = vcmp.eq.f32.partialorder %v5294, 8.507059e+37
      %v5296 = vand.u32 %v3857, 2147483648
      %v5297 = vor.u32 1.1754944e-38, %v5296
      %v5298 = vsel %vm5295, %v5297, %v5293
      %v5299 = vmul.f32 1.0, %v5298
      %v5300 = vrcp.pop %v3858
      %v5301 = vmul.f32 %v3858, %v5300
      %v5302 = vsub.f32 1.0, %v5301
      %v5303 = vmul.f32 %v5300, %v5302
      %v5304 = vadd.f32 %v5300, %v5303
      %vm5305 = vweird.f32 %v3858
      %vm5306 = vweird.f32 %v5300
      %vm5307 = vmor %vm5305, %vm5306
      %v5308 = vsel %vm5307, %v5300, %v5304
      %v5309 = vand.u32 2147483647, %v3858
      %vm5310 = vcmp.eq.f32.partialorder %v5309, 8.507059e+37
      %v5311 = vand.u32 %v3858, 2147483648
      %v5312 = vor.u32 1.1754944e-38, %v5311
      %v5313 = vsel %vm5310, %v5312, %v5308
      %v5314 = vmul.f32 1.0, %v5313
      %v5315 = vrcp.pop %v3859
      %v5316 = vmul.f32 %v3859, %v5315
      %v5317 = vsub.f32 1.0, %v5316
      %v5318 = vmul.f32 %v5315, %v5317
      %v5319 = vadd.f32 %v5315, %v5318
      %vm5320 = vweird.f32 %v3859
      %vm5321 = vweird.f32 %v5315
      %vm5322 = vmor %vm5320, %vm5321
      %v5323 = vsel %vm5322, %v5315, %v5319
      %v5324 = vand.u32 2147483647, %v3859
      %vm5325 = vcmp.eq.f32.partialorder %v5324, 8.507059e+37
      %v5326 = vand.u32 %v3859, 2147483648
      %v5327 = vor.u32 1.1754944e-38, %v5326
      %v5328 = vsel %vm5325, %v5327, %v5323
      %v5329 = vmul.f32 1.0, %v5328
      %v5330 = vrcp.pop %v3860
      %v5331 = vmul.f32 %v3860, %v5330
      %v5332 = vsub.f32 1.0, %v5331
      %v5333 = vmul.f32 %v5330, %v5332
      %v5334 = vadd.f32 %v5330, %v5333
      %vm5335 = vweird.f32 %v3860
      %vm5336 = vweird.f32 %v5330
      %vm5337 = vmor %vm5335, %vm5336
      %v5338 = vsel %vm5337, %v5330, %v5334
      %v5339 = vand.u32 2147483647, %v3860
      %vm5340 = vcmp.eq.f32.partialorder %v5339, 8.507059e+37
      %v5341 = vand.u32 %v3860, 2147483648
      %v5342 = vor.u32 1.1754944e-38, %v5341
      %v5343 = vsel %vm5340, %v5342, %v5338
      %v5344 = vmul.f32 1.0, %v5343
      %v5345 = vrcp.pop %v3861
      %v5346 = vmul.f32 %v3861, %v5345
      %v5347 = vsub.f32 1.0, %v5346
      %v5348 = vmul.f32 %v5345, %v5347
      %v5349 = vadd.f32 %v5345, %v5348
      %vm5350 = vweird.f32 %v3861
      %vm5351 = vweird.f32 %v5345
      %vm5352 = vmor %vm5350, %vm5351
      %v5353 = vsel %vm5352, %v5345, %v5349
      %v5354 = vand.u32 2147483647, %v3861
      %vm5355 = vcmp.eq.f32.partialorder %v5354, 8.507059e+37
      %v5356 = vand.u32 %v3861, 2147483648
      %v5357 = vor.u32 1.1754944e-38, %v5356
      %v5358 = vsel %vm5355, %v5357, %v5353
      %v5359 = vmul.f32 1.0, %v5358
      %v5360 = vrcp.pop %v3862
      %v5361 = vmul.f32 %v3862, %v5360
      %v5362 = vsub.f32 1.0, %v5361
      %v5363 = vmul.f32 %v5360, %v5362
      %v5364 = vadd.f32 %v5360, %v5363
      %vm5365 = vweird.f32 %v3862
      %vm5366 = vweird.f32 %v5360
      %vm5367 = vmor %vm5365, %vm5366
      %v5368 = vsel %vm5367, %v5360, %v5364
      %v5369 = vand.u32 2147483647, %v3862
      %vm5370 = vcmp.eq.f32.partialorder %v5369, 8.507059e+37
      %v5371 = vand.u32 %v3862, 2147483648
      %v5372 = vor.u32 1.1754944e-38, %v5371
      %v5373 = vsel %vm5370, %v5372, %v5368
      %v5374 = vmul.f32 1.0, %v5373
      %v5375 = vrcp.pop %v3863
      %v5376 = vmul.f32 %v3863, %v5375
      %v5377 = vsub.f32 1.0, %v5376
      %v5378 = vmul.f32 %v5375, %v5377
      %v5379 = vadd.f32 %v5375, %v5378
      %vm5380 = vweird.f32 %v3863
      %vm5381 = vweird.f32 %v5375
      %vm5382 = vmor %vm5380, %vm5381
      %v5383 = vsel %vm5382, %v5375, %v5379
      %v5384 = vand.u32 2147483647, %v3863
      %vm5385 = vcmp.eq.f32.partialorder %v5384, 8.507059e+37
      %v5386 = vand.u32 %v3863, 2147483648
      %v5387 = vor.u32 1.1754944e-38, %v5386
      %v5388 = vsel %vm5385, %v5387, %v5383
      %v5389 = vmul.f32 1.0, %v5388
      %v5390 = vrcp.pop %v3864
      %v5391 = vmul.f32 %v3864, %v5390
      %v5392 = vsub.f32 1.0, %v5391
      %v5393 = vmul.f32 %v5390, %v5392
      %v5394 = vadd.f32 %v5390, %v5393
      %vm5395 = vweird.f32 %v3864
      %vm5396 = vweird.f32 %v5390
      %vm5397 = vmor %vm5395, %vm5396
      %v5398 = vsel %vm5397, %v5390, %v5394
      %v5399 = vand.u32 2147483647, %v3864
      %vm5400 = vcmp.eq.f32.partialorder %v5399, 8.507059e+37
      %v5401 = vand.u32 %v3864, 2147483648
      %v5402 = vor.u32 1.1754944e-38, %v5401
      %v5403 = vsel %vm5400, %v5402, %v5398
      %v5404 = vmul.f32 1.0, %v5403
      %v5405 = vrcp.pop %v3865
      %v5406 = vmul.f32 %v3865, %v5405
      %v5407 = vsub.f32 1.0, %v5406
      %v5408 = vmul.f32 %v5405, %v5407
      %v5409 = vadd.f32 %v5405, %v5408
      %vm5410 = vweird.f32 %v3865
      %vm5411 = vweird.f32 %v5405
      %vm5412 = vmor %vm5410, %vm5411
      %v5413 = vsel %vm5412, %v5405, %v5409
      %v5414 = vand.u32 2147483647, %v3865
      %vm5415 = vcmp.eq.f32.partialorder %v5414, 8.507059e+37
      %v5416 = vand.u32 %v3865, 2147483648
      %v5417 = vor.u32 1.1754944e-38, %v5416
      %v5418 = vsel %vm5415, %v5417, %v5413
      %v5419 = vmul.f32 1.0, %v5418
      %v5420 = vrcp.pop %v3866
      %v5421 = vmul.f32 %v3866, %v5420
      %v5422 = vsub.f32 1.0, %v5421
      %v5423 = vmul.f32 %v5420, %v5422
      %v5424 = vadd.f32 %v5420, %v5423
      %vm5425 = vweird.f32 %v3866
      %vm5426 = vweird.f32 %v5420
      %vm5427 = vmor %vm5425, %vm5426
      %v5428 = vsel %vm5427, %v5420, %v5424
      %v5429 = vand.u32 2147483647, %v3866
      %vm5430 = vcmp.eq.f32.partialorder %v5429, 8.507059e+37
      %v5431 = vand.u32 %v3866, 2147483648
      %v5432 = vor.u32 1.1754944e-38, %v5431
      %v5433 = vsel %vm5430, %v5432, %v5428
      %v5434 = vmul.f32 1.0, %v5433
      %v5435 = vrcp.pop %v3867
      %v5436 = vmul.f32 %v3867, %v5435
      %v5437 = vsub.f32 1.0, %v5436
      %v5438 = vmul.f32 %v5435, %v5437
      %v5439 = vadd.f32 %v5435, %v5438
      %vm5440 = vweird.f32 %v3867
      %vm5441 = vweird.f32 %v5435
      %vm5442 = vmor %vm5440, %vm5441
      %v5443 = vsel %vm5442, %v5435, %v5439
      %v5444 = vand.u32 2147483647, %v3867
      %vm5445 = vcmp.eq.f32.partialorder %v5444, 8.507059e+37
      %v5446 = vand.u32 %v3867, 2147483648
      %v5447 = vor.u32 1.1754944e-38, %v5446
      %v5448 = vsel %vm5445, %v5447, %v5443
      %v5449 = vmul.f32 1.0, %v5448
      %v5450 = vrcp.pop %v3868
      %v5451 = vmul.f32 %v3868, %v5450
      %v5452 = vsub.f32 1.0, %v5451
      %v5453 = vmul.f32 %v5450, %v5452
      %v5454 = vadd.f32 %v5450, %v5453
      %vm5455 = vweird.f32 %v3868
      %vm5456 = vweird.f32 %v5450
      %vm5457 = vmor %vm5455, %vm5456
      %v5458 = vsel %vm5457, %v5450, %v5454
      %v5459 = vand.u32 2147483647, %v3868
      %vm5460 = vcmp.eq.f32.partialorder %v5459, 8.507059e+37
      %v5461 = vand.u32 %v3868, 2147483648
      %v5462 = vor.u32 1.1754944e-38, %v5461
      %v5463 = vsel %vm5460, %v5462, %v5458
      %v5464 = vmul.f32 1.0, %v5463
      %v5465 = vrcp.pop %v3869
      %v5466 = vmul.f32 %v3869, %v5465
      %v5467 = vsub.f32 1.0, %v5466
      %v5468 = vmul.f32 %v5465, %v5467
      %v5469 = vadd.f32 %v5465, %v5468
      %vm5470 = vweird.f32 %v3869
      %vm5471 = vweird.f32 %v5465
      %vm5472 = vmor %vm5470, %vm5471
      %v5473 = vsel %vm5472, %v5465, %v5469
      %v5474 = vand.u32 2147483647, %v3869
      %vm5475 = vcmp.eq.f32.partialorder %v5474, 8.507059e+37
      %v5476 = vand.u32 %v3869, 2147483648
      %v5477 = vor.u32 1.1754944e-38, %v5476
      %v5478 = vsel %vm5475, %v5477, %v5473
      %v5479 = vmul.f32 1.0, %v5478
      %v5480 = vrcp.pop %v3870
      %v5481 = vmul.f32 %v3870, %v5480
      %v5482 = vsub.f32 1.0, %v5481
      %v5483 = vmul.f32 %v5480, %v5482
      %v5484 = vadd.f32 %v5480, %v5483
      %vm5485 = vweird.f32 %v3870
      %vm5486 = vweird.f32 %v5480
      %vm5487 = vmor %vm5485, %vm5486
      %v5488 = vsel %vm5487, %v5480, %v5484
      %v5489 = vand.u32 2147483647, %v3870
      %vm5490 = vcmp.eq.f32.partialorder %v5489, 8.507059e+37
      %v5491 = vand.u32 %v3870, 2147483648
      %v5492 = vor.u32 1.1754944e-38, %v5491
      %v5493 = vsel %vm5490, %v5492, %v5488
      %v5494 = vmul.f32 1.0, %v5493
      %v5495 = vrcp.pop %v3871
      %v5496 = vmul.f32 %v3871, %v5495
      %v5497 = vsub.f32 1.0, %v5496
      %v5498 = vmul.f32 %v5495, %v5497
      %v5499 = vadd.f32 %v5495, %v5498
      %vm5500 = vweird.f32 %v3871
      %vm5501 = vweird.f32 %v5495
      %vm5502 = vmor %vm5500, %vm5501
      %v5503 = vsel %vm5502, %v5495, %v5499
      %v5504 = vand.u32 2147483647, %v3871
      %vm5505 = vcmp.eq.f32.partialorder %v5504, 8.507059e+37
      %v5506 = vand.u32 %v3871, 2147483648
      %v5507 = vor.u32 1.1754944e-38, %v5506
      %v5508 = vsel %vm5505, %v5507, %v5503
      %v5509 = vmul.f32 1.0, %v5508
      %v5510 = vrcp.pop %v3872
      %v5511 = vmul.f32 %v3872, %v5510
      %v5512 = vsub.f32 1.0, %v5511
      %v5513 = vmul.f32 %v5510, %v5512
      %v5514 = vadd.f32 %v5510, %v5513
      %vm5515 = vweird.f32 %v3872
      %vm5516 = vweird.f32 %v5510
      %vm5517 = vmor %vm5515, %vm5516
      %v5518 = vsel %vm5517, %v5510, %v5514
      %v5519 = vand.u32 2147483647, %v3872
      %vm5520 = vcmp.eq.f32.partialorder %v5519, 8.507059e+37
      %v5521 = vand.u32 %v3872, 2147483648
      %v5522 = vor.u32 1.1754944e-38, %v5521
      %v5523 = vsel %vm5520, %v5522, %v5518
      %v5524 = vmul.f32 1.0, %v5523
      %v5525 = vrcp.pop %v3873
      %v5526 = vmul.f32 %v3873, %v5525
      %v5527 = vsub.f32 1.0, %v5526
      %v5528 = vmul.f32 %v5525, %v5527
      %v5529 = vadd.f32 %v5525, %v5528
      %vm5530 = vweird.f32 %v3873
      %vm5531 = vweird.f32 %v5525
      %vm5532 = vmor %vm5530, %vm5531
      %v5533 = vsel %vm5532, %v5525, %v5529
      %v5534 = vand.u32 2147483647, %v3873
      %vm5535 = vcmp.eq.f32.partialorder %v5534, 8.507059e+37
      %v5536 = vand.u32 %v3873, 2147483648
      %v5537 = vor.u32 1.1754944e-38, %v5536
      %v5538 = vsel %vm5535, %v5537, %v5533
      %v5539 = vmul.f32 1.0, %v5538
      %v5540 = vrcp.pop %v3874
      %v5541 = vmul.f32 %v3874, %v5540
      %v5542 = vsub.f32 1.0, %v5541
      %v5543 = vmul.f32 %v5540, %v5542
      %v5544 = vadd.f32 %v5540, %v5543
      %vm5545 = vweird.f32 %v3874
      %vm5546 = vweird.f32 %v5540
      %vm5547 = vmor %vm5545, %vm5546
      %v5548 = vsel %vm5547, %v5540, %v5544
      %v5549 = vand.u32 2147483647, %v3874
      %vm5550 = vcmp.eq.f32.partialorder %v5549, 8.507059e+37
      %v5551 = vand.u32 %v3874, 2147483648
      %v5552 = vor.u32 1.1754944e-38, %v5551
      %v5553 = vsel %vm5550, %v5552, %v5548
      %v5554 = vmul.f32 1.0, %v5553
      %5555 = vst [vmem:[%s228] sm:$0xff] %v3889
      %5556 = vst [vmem:[%s228 + $0x8] sm:$0xff] %v3904
      %5557 = vst [vmem:[%s228 + $0x10] sm:$0xff] %v3919
      %5558 = vst [vmem:[%s228 + $0x18] sm:$0xff] %v3934
      %5559 = vst [vmem:[%s228 + $0x20] sm:$0xff] %v3949
      %5560 = vst [vmem:[%s228 + $0x28] sm:$0xff] %v3964
      %5561 = vst [vmem:[%s228 + $0x30] sm:$0xff] %v3979
      %5562 = vst [vmem:[%s228 + $0x38] sm:$0xff] %v3994
      %5563 = vst [vmem:[%s228 + $0x40] sm:$0xff] %v4009
      %5564 = vst [vmem:[%s228 + $0x48] sm:$0xff] %v4024
      %5565 = vst [vmem:[%s228 + $0x50] sm:$0xff] %v4039
      %5566 = vst [vmem:[%s228 + $0x58] sm:$0xff] %v4054
      %5567 = vst [vmem:[%s228 + $0x60] sm:$0xff] %v4069
      %5568 = vst [vmem:[%s228 + $0x68] sm:$0xff] %v4084
      %5569 = vst [vmem:[%s228 + $0x70] sm:$0xff] %v4099
      %5570 = vst [vmem:[%s228 + $0x78] sm:$0xff] %v4114
      %5571 = vst [vmem:[%s228 + $0x80] sm:$0xff] %v4129
      %5572 = vst [vmem:[%s228 + $0x88] sm:$0xff] %v4144
      %5573 = vst [vmem:[%s228 + $0x90] sm:$0xff] %v4159
      %5574 = vst [vmem:[%s228 + $0x98] sm:$0xff] %v4174
      %5575 = vst [vmem:[%s228 + $0xa0] sm:$0xff] %v4189
      %5576 = vst [vmem:[%s228 + $0xa8] sm:$0xff] %v4204
      %5577 = vst [vmem:[%s228 + $0xb0] sm:$0xff] %v4219
      %5578 = vst [vmem:[%s228 + $0xb8] sm:$0xff] %v4234
      %5579 = vst [vmem:[%s228 + $0xc0] sm:$0xff] %v4249
      %5580 = vst [vmem:[%s228 + $0xc8] sm:$0xff] %v4264
      %5581 = vst [vmem:[%s228 + $0xd0] sm:$0xff] %v4279
      %5582 = vst [vmem:[%s228 + $0xd8] sm:$0xff] %v4294
      %5583 = vst [vmem:[%s228 + $0xe0] sm:$0xff] %v4309
      %5584 = vst [vmem:[%s228 + $0xe8] sm:$0xff] %v4324
      %5585 = vst [vmem:[%s228 + $0xf0] sm:$0xff] %v4339
      %5586 = vst [vmem:[%s228 + $0xf8] sm:$0xff] %v4354
      %5587 = vst [vmem:[%s228 + $0x100] sm:$0xff] %v4369
      %5588 = vst [vmem:[%s228 + $0x108] sm:$0xff] %v4384
      %5589 = vst [vmem:[%s228 + $0x110] sm:$0xff] %v4399
      %5590 = vst [vmem:[%s228 + $0x118] sm:$0xff] %v4414
      %5591 = vst [vmem:[%s228 + $0x120] sm:$0xff] %v4429
      %5592 = vst [vmem:[%s228 + $0x128] sm:$0xff] %v4444
      %5593 = vst [vmem:[%s228 + $0x130] sm:$0xff] %v4459
      %5594 = vst [vmem:[%s228 + $0x138] sm:$0xff] %v4474
      %5595 = vst [vmem:[%s228 + $0x140] sm:$0xff] %v4489
      %5596 = vst [vmem:[%s228 + $0x148] sm:$0xff] %v4504
      %5597 = vst [vmem:[%s228 + $0x150] sm:$0xff] %v4519
      %5598 = vst [vmem:[%s228 + $0x158] sm:$0xff] %v4534
      %5599 = vst [vmem:[%s228 + $0x160] sm:$0xff] %v4549
      %5600 = vst [vmem:[%s228 + $0x168] sm:$0xff] %v4564
      %5601 = vst [vmem:[%s228 + $0x170] sm:$0xff] %v4579
      %5602 = vst [vmem:[%s228 + $0x178] sm:$0xff] %v4594
      %5603 = vst [vmem:[%s228 + $0x180] sm:$0xff] %v4609
      %5604 = vst [vmem:[%s228 + $0x188] sm:$0xff] %v4624
      %5605 = vst [vmem:[%s228 + $0x190] sm:$0xff] %v4639
      %5606 = vst [vmem:[%s228 + $0x198] sm:$0xff] %v4654
      %5607 = vst [vmem:[%s228 + $0x1a0] sm:$0xff] %v4669
      %5608 = vst [vmem:[%s228 + $0x1a8] sm:$0xff] %v4684
      %5609 = vst [vmem:[%s228 + $0x1b0] sm:$0xff] %v4699
      %5610 = vst [vmem:[%s228 + $0x1b8] sm:$0xff] %v4714
      %5611 = vst [vmem:[%s228 + $0x1c0] sm:$0xff] %v4729
      %5612 = vst [vmem:[%s228 + $0x1c8] sm:$0xff] %v4744
      %5613 = vst [vmem:[%s228 + $0x1d0] sm:$0xff] %v4759
      %5614 = vst [vmem:[%s228 + $0x1d8] sm:$0xff] %v4774
      %5615 = vst [vmem:[%s228 + $0x1e0] sm:$0xff] %v4789
      %5616 = vst [vmem:[%s228 + $0x1e8] sm:$0xff] %v4804
      %5617 = vst [vmem:[%s228 + $0x1f0] sm:$0xff] %v4819
      %5618 = vst [vmem:[%s228 + $0x1f8] sm:$0xff] %v4834
      %5619 = vst [vmem:[%s228 + $0x200] sm:$0xff] %v4849
      %5620 = vst [vmem:[%s228 + $0x208] sm:$0xff] %v4864
      %5621 = vst [vmem:[%s228 + $0x210] sm:$0xff] %v4879
      %5622 = vst [vmem:[%s228 + $0x218] sm:$0xff] %v4894
      %5623 = vst [vmem:[%s228 + $0x220] sm:$0xff] %v4909
      %5624 = vst [vmem:[%s228 + $0x228] sm:$0xff] %v4924
      %5625 = vst [vmem:[%s228 + $0x230] sm:$0xff] %v4939
      %5626 = vst [vmem:[%s228 + $0x238] sm:$0xff] %v4954
      %5627 = vst [vmem:[%s228 + $0x240] sm:$0xff] %v4969
      %5628 = vst [vmem:[%s228 + $0x248] sm:$0xff] %v4984
      %5629 = vst [vmem:[%s228 + $0x250] sm:$0xff] %v4999
      %5630 = vst [vmem:[%s228 + $0x258] sm:$0xff] %v5014
      %5631 = vst [vmem:[%s228 + $0x260] sm:$0xff] %v5029
      %5632 = vst [vmem:[%s228 + $0x268] sm:$0xff] %v5044
      %5633 = vst [vmem:[%s228 + $0x270] sm:$0xff] %v5059
      %5634 = vst [vmem:[%s228 + $0x278] sm:$0xff] %v5074
      %5635 = vst [vmem:[%s228 + $0x280] sm:$0xff] %v5089
      %5636 = vst [vmem:[%s228 + $0x288] sm:$0xff] %v5104
      %5637 = vst [vmem:[%s228 + $0x290] sm:$0xff] %v5119
      %5638 = vst [vmem:[%s228 + $0x298] sm:$0xff] %v5134
      %5639 = vst [vmem:[%s228 + $0x2a0] sm:$0xff] %v5149
      %5640 = vst [vmem:[%s228 + $0x2a8] sm:$0xff] %v5164
      %5641 = vst [vmem:[%s228 + $0x2b0] sm:$0xff] %v5179
      %5642 = vst [vmem:[%s228 + $0x2b8] sm:$0xff] %v5194
      %5643 = vst [vmem:[%s228 + $0x2c0] sm:$0xff] %v5209
      %5644 = vst [vmem:[%s228 + $0x2c8] sm:$0xff] %v5224
      %5645 = vst [vmem:[%s228 + $0x2d0] sm:$0xff] %v5239
      %5646 = vst [vmem:[%s228 + $0x2d8] sm:$0xff] %v5254
      %5647 = vst [vmem:[%s228 + $0x2e0] sm:$0xff] %v5269
      %5648 = vst [vmem:[%s228 + $0x2e8] sm:$0xff] %v5284
      %5649 = vst [vmem:[%s228 + $0x2f0] sm:$0xff] %v5299
      %5650 = vst [vmem:[%s228 + $0x2f8] sm:$0xff] %v5314
      %5651 = vst [vmem:[%s228 + $0x300] sm:$0xff] %v5329
      %5652 = vst [vmem:[%s228 + $0x308] sm:$0xff] %v5344
      %5653 = vst [vmem:[%s228 + $0x310] sm:$0xff] %v5359
      %5654 = vst [vmem:[%s228 + $0x318] sm:$0xff] %v5374
      %5655 = vst [vmem:[%s228 + $0x320] sm:$0xff] %v5389
      %5656 = vst [vmem:[%s228 + $0x328] sm:$0xff] %v5404
      %5657 = vst [vmem:[%s228 + $0x330] sm:$0xff] %v5419
      %5658 = vst [vmem:[%s228 + $0x338] sm:$0xff] %v5434
      %5659 = vst [vmem:[%s228 + $0x340] sm:$0xff] %v5449
      %5660 = vst [vmem:[%s228 + $0x348] sm:$0xff] %v5464
      %5661 = vst [vmem:[%s228 + $0x350] sm:$0xff] %v5479
      %5662 = vst [vmem:[%s228 + $0x358] sm:$0xff] %v5494
      %5663 = vst [vmem:[%s228 + $0x360] sm:$0xff] %v5509
      %5664 = vst [vmem:[%s228 + $0x368] sm:$0xff] %v5524
      %5665 = vst [vmem:[%s228 + $0x370] sm:$0xff] %v5539
      %5666 = vst [vmem:[%s228 + $0x378] sm:$0xff] %v5554
      %s5667 = smul.u32 16, %s16
      %p5668 = scmp.lt.s32.totalorder %s5667, 31
      %s5669 = scalar_select %p5668, %s5667, 31
      %s5670 = smul.addr %s5669, 7
      %s5671 = smul.addr %s5670, 8
      %s5672 = scalar_lea.vmem %s5, %s5671
      // Predicated region
      $region41: #{decoder_forward.1} parent=39 // pred_check
        %p5673 = pneg %p144
      $region42: #{decoder_forward.1} parent=39 // pred_check_branch
        %5675 = sbr.rel (%p5673) target = $region44
      $region43: #{decoder_forward.1} parent=39 // pred_region
        %s5676 = smul.u32 16, %s16
      $region44: #{decoder_forward.1} parent=39 // pred_fallthru
        _
    $region40: #{decoder_forward.1} parent=5 // pred_fallthru
      _
    %p5677 = scmp.le.s32.totalorder 2, %s11
    // Predicated region
    $region45: #{decoder_forward.1} parent=5 // pred_check
      %p5678 = pneg %p5677
    $region46: #{decoder_forward.1} parent=5 // pred_check_branch
      %5680 = sbr.rel (%p5678) target = $region48
    $region47: #{decoder_forward.1} parent=5 // pred_region
      %s5681 = ssub.s32 %s11, 2
      // Predicated region
      $region49: #{decoder_forward.1} parent=47 // pred_check
        %p5682 = pneg %p150
      $region50: #{decoder_forward.1} parent=47 // pred_check_branch
        %5684 = sbr.rel (%p5682) target = $region52
      $region51: #{decoder_forward.1} parent=47 // pred_region
        %s5685 = smul.u32 16, %s17
        %p5686 = scmp.lt.s32.totalorder %s5685, 31
        %s5687 = scalar_select %p5686, %s5685, 31
        %s5688 = smul.addr %s5687, 7
        %s5689 = smul.addr %s5688, 8
        %s5690 = scalar_lea.vmem %s5, %s5689
      $region52: #{decoder_forward.1} parent=47 // pred_fallthru
        _
    $region48: #{decoder_forward.1} parent=5 // pred_fallthru
      _
  $region6: #{decoder_forward.1} parent=0 // loop_footer
    %s15 = sadd.s32 1, %s11
  $region7: #{decoder_forward.1} parent=0 // loop_footer_branch
    %10 = sbr.rel target = $region3
  $region8: #{decoder_forward.1} parent=0 // loop_exit
    _

</llo_original>
